<compile_context>
chip_gen: v6e
topology: v6e:2x2x1
jax: 0.10.0
libtpu: 0.0.40
codegen_flags: <defaults>
</compile_context>

<pallas_src>
import functools

import jax
import jax.numpy as jnp
from jax.experimental import pallas as pl
from jax.experimental.pallas import tpu as pltpu


def _round_up(x, m):
    return ((x + m - 1) // m) * m


# ----------------------------------------------------------------------------
# Fused kernel: full ConvLSTM recurrence + heads + fuse for ONE batch element.
#
# Flat layout: output positions are p = r*Wp + c (r in [0,H), c in [0,Wp)),
# Lo = H*Wp (multiple of 128).  Columns c >= W are garbage lanes, masked to
# zero before being reused as hidden state and sliced off by the wrapper.
# ----------------------------------------------------------------------------
def bdclstm_kernel(xcol_ref, wx_ref, wh_ref, bc_ref, whd_ref, bhd_ref,
                   out_ref, accx_ref, hbuf_ref, hs_ref,
                   *, T, W, K, Ch, Wp, Lo, OFF):
    pad = (K - 1) // 2
    shift = pad * Wp + pad
    taps = [dy * Wp + dx for dy in range(K) for dx in range(K)]

    # Frame contribution for ALL T steps: one weight-stationary MXU pass,
    # off the serial recurrence path.  (4Ch, KKCin) @ (KKCin, T*Lo) + bias.
    accx_ref[...] = (jnp.dot(wx_ref[...], xcol_ref[0],
                             preferred_element_type=jnp.float32)
                     + bc_ref[...])

    # Lane mask of valid image columns (c < W) in the flat (H, Wp) layout.
    col = jax.lax.broadcasted_iota(jnp.int32, (1, Lo), 1) % Wp
    colmask = (col < W).astype(jnp.float32)

    # Persistent zero-padded hidden buffer (scratch persists across the batch
    # grid -> re-zero for every batch element).  Interior lives at [OFF, OFF+Lo).
    hbuf_ref[...] = jnp.zeros_like(hbuf_ref)

    wh = wh_ref[...]                                   # (4Ch, K*K*Ch)
    c_st = jnp.zeros((Ch, Lo), jnp.float32)
    for t in range(T):                                 # T static & small -> unrolled
        acc = accx_ref[:, t * Lo:(t + 1) * Lo]         # lane-aligned slice load
        if t > 0:                                      # h == 0 on the first step
            hfull = hbuf_ref[...]                      # (Ch, Lhb), aligned load
            h_col = jnp.concatenate(
                [hfull[:, OFF - shift + s:OFF - shift + s + Lo] for s in taps],
                axis=0)                                # (K*K*Ch, Lo)
            acc = acc + jnp.dot(wh, h_col, preferred_element_type=jnp.float32)

        i_g = jax.nn.sigmoid(acc[0 * Ch:1 * Ch])
        f_g = jax.nn.sigmoid(acc[1 * Ch:2 * Ch])
        o_g = jax.nn.sigmoid(acc[2 * Ch:3 * Ch])
        g_g = jnp.tanh(acc[3 * Ch:4 * Ch])
        c_st = c_st * f_g + i_g * g_g
        h_t = o_g * jnp.tanh(c_st)                     # (Ch, Lo)
        hs_ref[t * Ch:(t + 1) * Ch, :] = h_t           # sublane/lane-aligned store

        if t + 1 < T:
            # Re-embed h into the zero-padded layout with ONE lane-aligned
            # store; garbage columns zeroed so they act as conv zero-padding.
            hbuf_ref[:, OFF:OFF + Lo] = (h_t * colmask).astype(hbuf_ref.dtype)

    # Five 1x1 heads + final Conv3d(1x1) fuse folded into ONE matmul:
    # rows 0..T-1 -> per-step head outputs, row T -> fused `current_y`.
    out = (jnp.dot(whd_ref[...], hs_ref[...],
                   preferred_element_type=jnp.float32) + bhd_ref[...])
    out_ref[0] = out                                   # lane-dense (T+1, Lo) store


def bdclstm_pallas(x_col, wx, wh, bc, whd, bhd, *, T, W, K, Ch, Wp, Lo, OFF,
                   Lhb, compute_dtype):
    B, KKCin, _ = x_col.shape
    kern = functools.partial(bdclstm_kernel, T=T, W=W, K=K, Ch=Ch, Wp=Wp,
                             Lo=Lo, OFF=OFF)
    out = pl.pallas_call(
        kern,
        out_shape=jax.ShapeDtypeStruct((B, T + 1, Lo), jnp.float32),
        grid=(B,),
        in_specs=[
            pl.BlockSpec((1, KKCin, T * Lo), lambda b: (b, 0, 0)),
            pl.BlockSpec(wx.shape, lambda b: (0, 0)),
            pl.BlockSpec(wh.shape, lambda b: (0, 0)),
            pl.BlockSpec(bc.shape, lambda b: (0, 0)),
            pl.BlockSpec(whd.shape, lambda b: (0, 0)),
            pl.BlockSpec(bhd.shape, lambda b: (0, 0)),
        ],
        out_specs=pl.BlockSpec((1, T + 1, Lo), lambda b: (b, 0, 0)),
        scratch_shapes=[
            pltpu.VMEM((4 * Ch, T * Lo), jnp.float32),   # all-step x pre-acts
            pltpu.VMEM((Ch, Lhb), compute_dtype),        # zero-padded hidden
            pltpu.VMEM((T * Ch, Lo), jnp.float32),       # stacked h_t for heads
        ],
        compiler_params=pltpu.CompilerParams(
            dimension_semantics=("parallel",)),
    )(x_col, wx, wh, bc, whd, bhd)
    return out


# ----------------------------------------------------------------------------
# Wrapper = New_BDCLSTM.forward (PyTorch semantics, list of NCHW frames in,
# (current_y, total_y) NCHW out).  compute_dtype=jnp.bfloat16 = v6e/v7x path.
# ----------------------------------------------------------------------------
def bdclstm_forward(params, continue_list, *, compute_dtype=jnp.float32):
    frames = list(continue_list)
    T = len(frames)
    B, Cin, H, W = frames[0].shape
    Ch, K = params["hidden"], params["K"]
    pad = (K - 1) // 2

    # Row stride Wp padded so Lo = H*Wp is a multiple of 128 (lane-dense).
    Wp = W + 2 * pad
    while (H * Wp) % 128:
        Wp += 1
    Lo = H * Wp
    shift = pad * Wp + pad
    OFF = _round_up(shift, 128)                 # aligned interior offset in hbuf
    Lhb = _round_up(OFF + shift + Lo, 128)
    assert Lo % 128 == 0

    # im2col of the zero-padded frames, done ONCE in XLA (off the serial path),
    # pre-cast to the MXU operand dtype.
    x = jnp.stack(frames, axis=1).astype(compute_dtype)          # (B,T,Cin,H,W)
    xp = jnp.pad(x, ((0, 0), (0, 0), (0, 0),
                     (pad, K - pad), (pad, Wp - W - pad)))        # rows H+K, cols Wp
    xf = xp.reshape(B, T, Cin, (H + K) * Wp)
    taps = [dy * Wp + dx for dy in range(K) for dx in range(K)]
    x_col = jnp.concatenate([xf[..., s:s + Lo] for s in taps], axis=2)
    x_col = jnp.transpose(x_col, (0, 2, 1, 3)).reshape(B, K * K * Cin, T * Lo)

    # Cell weights in im2col layout (tiny, done once).
    w = params["w_cell_oihw"]                                     # (4Ch,Cin+Ch,K,K)
    wx = jnp.transpose(w[:, :Cin], (0, 2, 3, 1)).reshape(4 * Ch, K * K * Cin)
    wh = jnp.transpose(w[:, Cin:], (0, 2, 3, 1)).reshape(4 * Ch, K * K * Ch)
    bc = params["b_cell"].reshape(4 * Ch, 1).astype(jnp.float32)

    # Block-diagonal per-step heads + fused final-conv row (row T).
    wheads = params["w_heads"]                                    # (Ch, T)
    wf = params["w_final"]                                        # (T,)
    blockdiag = (jnp.eye(T, dtype=jnp.float32)[:, :, None]
                 * wheads.T[None]).reshape(T, T * Ch)
    fuse_row = (wf[:, None] * wheads.T).reshape(1, T * Ch)
    whd = jnp.concatenate([blockdiag, fuse_row], axis=0).astype(jnp.float32)
    bhd = jnp.concatenate(
        [params["b_heads"],
         jnp.sum(wf * params["b_heads"], keepdims=True) + params["b_final"]],
        axis=0).reshape(T + 1, 1).astype(jnp.float32)

    out = bdclstm_pallas(x_col, wx.astype(compute_dtype), wh.astype(compute_dtype),
                         bc, whd, bhd, T=T, W=W, K=K, Ch=Ch, Wp=Wp, Lo=Lo,
                         OFF=OFF, Lhb=Lhb, compute_dtype=compute_dtype)

    out = out.reshape(B, T + 1, H, Wp)[..., :W]                   # drop garbage cols
    total_y = out[:, :T]                                          # (B,T,H,W)
    current_y = out[:, T:T + 1]                                   # (B,1,H,W)
    return current_y, total_y


# ----------------------------------------------------------------------------
# Pure-JAX reference (mirrors the PyTorch code with lax.conv) for validation.
# ----------------------------------------------------------------------------
def reference_forward(params, continue_list):
    frames = list(continue_list)
    T = len(frames)
    B, Cin, H, W = frames[0].shape
    Ch, K = params["hidden"], params["K"]
    pad = (K - 1) // 2
    w = params["w_cell_oihw"]
    b = params["b_cell"]

    h = jnp.zeros((B, Ch, H, W), jnp.float32)
    c = jnp.zeros((B, Ch, H, W), jnp.float32)
    hs = []
    for t in range(T):
        comb = jnp.concatenate([frames[t], h], axis=1)
        A = jax.lax.conv_general_dilated(
            comb, w, (1, 1), [(pad, pad), (pad, pad)],
            dimension_numbers=("NCHW", "OIHW", "NCHW")) + b[None, :, None, None]
        Ai, Af, Ao, Ag = jnp.split(A, 4, axis=1)
        i, f = jax.nn.sigmoid(Ai), jax.nn.sigmoid(Af)
        o, g = jax.nn.sigmoid(Ao), jnp.tanh(Ag)
        c = c * f + i * g
        h = o * jnp.tanh(c)
        hs.append(h)

    ys = [jnp.einsum("bchw,c->bhw", hs[t], params["w_heads"][:, t])
          + params["b_heads"][t] for t in range(T)]
    total = jnp.stack(ys, axis=1)
    cur = jnp.einsum("bthw,t->bhw", total, params["w_final"]) + params["b_final"][0]
    return cur[:, None], total


def init_params(key, Cin, Ch, K, T):
    Cc = Cin + Ch
    ks = jax.random.split(key, 6)
    return dict(
        hidden=Ch, K=K,
        w_cell_oihw=0.1 * jax.random.normal(ks[0], (4 * Ch, Cc, K, K), jnp.float32),
        b_cell=0.1 * jax.random.normal(ks[1], (4 * Ch,), jnp.float32),
        w_heads=0.1 * jax.random.normal(ks[2], (Ch, T), jnp.float32),
        b_heads=0.1 * jax.random.normal(ks[3], (T,), jnp.float32),
        w_final=0.1 * jax.random.normal(ks[4], (T,), jnp.float32),
        b_final=0.1 * jax.random.normal(ks[5], (1,), jnp.float32),
    )


if __name__ == "__main__":
    B, Cin, H, W = 2, 4, 16, 16
    Ch, K, T = 8, 5, 5              # hidden must be even; 5 frames total

    key = jax.random.PRNGKey(0)
    kf, kp = jax.random.split(key)
    fkeys = jax.random.split(kf, T)
    frames = [jax.random.normal(fkeys[i], (B, Cin, H, W), jnp.float32)
              for i in range(T)]
    params = init_params(kp, Cin, Ch, K, T)

    # f32 path (strict check against the lax.conv reference).
    current_y, total_y = bdclstm_forward(params, frames)
    jax.block_until_ready((current_y, total_y))

    ref_cur, ref_total = reference_forward(params, frames)
    assert current_y.shape == (B, 1, H, W)
    assert total_y.shape == (B, T, H, W)
    err = max(float(jnp.max(jnp.abs(current_y - ref_cur))),
              float(jnp.max(jnp.abs(total_y - ref_total))))
    assert err < 1e-4, f"f32 mismatch vs reference: {err}"

    # bf16 MXU-operand path (v6e/v7x fast path, f32 accumulation) - loose check.
    cur_bf, tot_bf = bdclstm_forward(params, frames, compute_dtype=jnp.bfloat16)
    jax.block_until_ready((cur_bf, tot_bf))
    err_bf = max(float(jnp.max(jnp.abs(cur_bf - ref_cur))),
                 float(jnp.max(jnp.abs(tot_bf - ref_total))))
    assert err_bf < 1e-1, f"bf16 mismatch vs reference: {err_bf}"

    print("KERNEL_OK")
</pallas_src>

<mosaic_0001>
module attributes {stable_mosaic.version = 11 : i64} {
  func.func @bdclstm_kernel(%arg0: i32, %arg1: memref<1x100x1920xf32, #tpu.memory_space<vmem>>, %arg2: memref<32x100xf32, #tpu.memory_space<vmem>>, %arg3: memref<32x200xf32, #tpu.memory_space<vmem>>, %arg4: memref<32x1xf32, #tpu.memory_space<vmem>>, %arg5: memref<6x40xf32, #tpu.memory_space<vmem>>, %arg6: memref<6x1xf32, #tpu.memory_space<vmem>>, %arg7: memref<1x6x384xf32, #tpu.memory_space<vmem>>, %arg8: memref<32x1920xf32, #tpu.memory_space<vmem>>, %arg9: memref<8x640xf32, #tpu.memory_space<vmem>>, %arg10: memref<40x384xf32, #tpu.memory_space<vmem>>) attributes {dimension_semantics = [#tpu.dimension_semantics<parallel>], iteration_bounds = array<i64: 2>, scalar_prefetch = 0 : i64, scratch_operands = 3 : i64, tpu.core_type = #tpu.core_type<tc>, window_params = [{transform_indices = @transform_0, window_bounds = array<i64: 1, 100, 1920>}, {pipeline_mode = #tpu.pipeline_mode<synchronous>, transform_indices = @transform_1, window_bounds = array<i64: 32, 100>}, {pipeline_mode = #tpu.pipeline_mode<synchronous>, transform_indices = @transform_2, window_bounds = array<i64: 32, 200>}, {pipeline_mode = #tpu.pipeline_mode<synchronous>, transform_indices = @transform_3, window_bounds = array<i64: 32, 1>}, {pipeline_mode = #tpu.pipeline_mode<synchronous>, transform_indices = @transform_4, window_bounds = array<i64: 6, 40>}, {pipeline_mode = #tpu.pipeline_mode<synchronous>, transform_indices = @transform_5, window_bounds = array<i64: 6, 1>}, {transform_indices = @transform_6, window_bounds = array<i64: 1, 6, 384>}]} {
    %c0 = arith.constant 0 : index
    %c0_0 = arith.constant 0 : index
    %0 = vector.load %arg2[%c0, %c0_0] : memref<32x100xf32, #tpu.memory_space<vmem>>, vector<32x100xf32>
    %c0_1 = arith.constant 0 : index
    %c0_2 = arith.constant 0 : index
    %c0_3 = arith.constant 0 : index
    %1 = vector.load %arg1[%c0_1, %c0_2, %c0_3] : memref<1x100x1920xf32, #tpu.memory_space<vmem>>, vector<1x100x1920xf32>
    %2 = vector.shape_cast %1 : vector<1x100x1920xf32> to vector<100x1920xf32>
    %cst = arith.constant dense<0.000000e+00> : vector<32x1920xf32>
    %3 = tpu.matmul %0, %2, %cst {dimension_numbers = #tpu.dot_dimension_numbers<[1], [0], [0], [1], [0, 0, 1, 1], [], []>} : vector<32x100xf32>, vector<100x1920xf32>, vector<32x1920xf32> -> vector<32x1920xf32>
    %c0_4 = arith.constant 0 : index
    %c0_5 = arith.constant 0 : index
    %4 = vector.load %arg4[%c0_4, %c0_5] : memref<32x1xf32, #tpu.memory_space<vmem>>, vector<32x1xf32>
    %5 = vector.broadcast %4 : vector<32x1xf32> to vector<32x1920xf32>
    %6 = arith.addf %3, %5 : vector<32x1920xf32>
    %c0_6 = arith.constant 0 : index
    %c0_7 = arith.constant 0 : index
    %7 = vector.load %arg8[%c0_6, %c0_7] : memref<32x1920xf32, #tpu.memory_space<vmem>>, vector<32x1920xf32>
    tpu.vector_store %arg8[%c0_6, %c0_7], %6 {strides = array<i32>} : memref<32x1920xf32, #tpu.memory_space<vmem>>, vector<32x1920xf32>,
    %8 = tpu.iota {dimensions = array<i32: 1>} : vector<1x384xi32>
    %c24_i32 = arith.constant 24 : i32
    %c0_i32 = arith.constant 0 : i32
    %9 = arith.cmpi eq, %c24_i32, %c0_i32 : i32
    %c1_i32 = arith.constant 1 : i32
    %10 = arith.select %9, %c1_i32, %c24_i32 : i32
    %11 = vector.broadcast %10 : i32 to vector<1x384xi32>
    %12 = arith.remsi %8, %11 : vector<1x384xi32>
    %c0_i32_8 = arith.constant 0 : i32
    %13 = vector.broadcast %c0_i32_8 : i32 to vector<1x384xi32>
    %14 = arith.cmpi ne, %12, %13 : vector<1x384xi32>
    %c0_i32_9 = arith.constant 0 : i32
    %15 = vector.broadcast %c0_i32_9 : i32 to vector<1x384xi32>
    %16 = arith.cmpi slt, %12, %15 : vector<1x384xi32>
    %c0_i32_10 = arith.constant 0 : i32
    %17 = arith.cmpi slt, %10, %c0_i32_10 : i32
    %18 = vector.broadcast %17 : i1 to vector<1x384xi1>
    %19 = vector.broadcast %18 : vector<1x384xi1> to vector<1x384xi1>
    %20 = arith.xori %16, %19 : vector<1x384xi1>
    %21 = arith.andi %20, %14 : vector<1x384xi1>
    %22 = vector.broadcast %10 : i32 to vector<1x384xi32>
    %23 = arith.addi %12, %22 : vector<1x384xi32>
    %24 = arith.select %21, %23, %12 : vector<1x384xi1>, vector<1x384xi32>
    %c16_i32 = arith.constant 16 : i32
    %25 = vector.broadcast %c16_i32 : i32 to vector<1x384xi32>
    %26 = arith.cmpi slt, %24, %25 : vector<1x384xi32>
    %27 = arith.extui %26 : vector<1x384xi1> to vector<1x384xi32>
    %28 = arith.sitofp %27 : vector<1x384xi32> to vector<1x384xf32>
    %cst_11 = arith.constant 0.000000e+00 : f32
    %29 = vector.broadcast %cst_11 : f32 to vector<8x640xf32>
    %c0_12 = arith.constant 0 : index
    %c0_13 = arith.constant 0 : index
    %30 = vector.load %arg9[%c0_12, %c0_13] : memref<8x640xf32, #tpu.memory_space<vmem>>, vector<8x640xf32>
    tpu.vector_store %arg9[%c0_12, %c0_13], %29 {strides = array<i32>} : memref<8x640xf32, #tpu.memory_space<vmem>>, vector<8x640xf32>,
    %c0_14 = arith.constant 0 : index
    %c0_15 = arith.constant 0 : index
    %31 = vector.load %arg3[%c0_14, %c0_15] : memref<32x200xf32, #tpu.memory_space<vmem>>, vector<32x200xf32>
    %cst_16 = arith.constant 0.000000e+00 : f32
    %32 = vector.broadcast %cst_16 : f32 to vector<8x384xf32>
    %c0_17 = arith.constant 0 : index
    %c0_18 = arith.constant 0 : index
    %33 = vector.load %arg8[%c0_17, %c0_18] : memref<32x1920xf32, #tpu.memory_space<vmem>>, vector<32x384xf32>
    %34 = vector.extract_strided_slice %33 {offsets = [0, 0], sizes = [8, 384], strides = [1, 1]} : vector<32x384xf32> to vector<8x384xf32>
    %35 = arith.negf %34 : vector<8x384xf32>
    %36 = math.exp %35 : vector<8x384xf32>
    %cst_19 = arith.constant 1.000000e+00 : f32
    %37 = vector.broadcast %cst_19 : f32 to vector<8x384xf32>
    %38 = arith.addf %37, %36 : vector<8x384xf32>
    %39 = arith.divf %37, %38 : vector<8x384xf32>
    %40 = vector.extract_strided_slice %33 {offsets = [8, 0], sizes = [8, 384], strides = [1, 1]} : vector<32x384xf32> to vector<8x384xf32>
    %41 = arith.negf %40 : vector<8x384xf32>
    %42 = math.exp %41 : vector<8x384xf32>
    %cst_20 = arith.constant 1.000000e+00 : f32
    %43 = vector.broadcast %cst_20 : f32 to vector<8x384xf32>
    %44 = arith.addf %43, %42 : vector<8x384xf32>
    %45 = arith.divf %43, %44 : vector<8x384xf32>
    %46 = vector.extract_strided_slice %33 {offsets = [16, 0], sizes = [8, 384], strides = [1, 1]} : vector<32x384xf32> to vector<8x384xf32>
    %47 = arith.negf %46 : vector<8x384xf32>
    %48 = math.exp %47 : vector<8x384xf32>
    %cst_21 = arith.constant 1.000000e+00 : f32
    %49 = vector.broadcast %cst_21 : f32 to vector<8x384xf32>
    %50 = arith.addf %49, %48 : vector<8x384xf32>
    %51 = arith.divf %49, %50 : vector<8x384xf32>
    %52 = vector.extract_strided_slice %33 {offsets = [24, 0], sizes = [8, 384], strides = [1, 1]} : vector<32x384xf32> to vector<8x384xf32>
    %53 = math.tanh %52 : vector<8x384xf32>
    %54 = arith.mulf %32, %45 : vector<8x384xf32>
    %55 = arith.mulf %39, %53 : vector<8x384xf32>
    %56 = arith.addf %54, %55 : vector<8x384xf32>
    %57 = math.tanh %56 : vector<8x384xf32>
    %58 = arith.mulf %51, %57 : vector<8x384xf32>
    %c0_22 = arith.constant 0 : index
    %c0_23 = arith.constant 0 : index
    %59 = vector.load %arg10[%c0_22, %c0_23] : memref<40x384xf32, #tpu.memory_space<vmem>>, vector<8x384xf32>
    tpu.vector_store %arg10[%c0_22, %c0_23], %58 {strides = array<i32>} : memref<40x384xf32, #tpu.memory_space<vmem>>, vector<8x384xf32>,
    %60 = vector.broadcast %28 : vector<1x384xf32> to vector<8x384xf32>
    %61 = arith.mulf %58, %60 : vector<8x384xf32>
    %c0_24 = arith.constant 0 : index
    %c128 = arith.constant 128 : index
    %62 = vector.load %arg9[%c0_24, %c128] : memref<8x640xf32, #tpu.memory_space<vmem>>, vector<8x384xf32>
    tpu.vector_store %arg9[%c0_24, %c128], %61 {strides = array<i32>} : memref<8x640xf32, #tpu.memory_space<vmem>>, vector<8x384xf32>,
    %c0_25 = arith.constant 0 : index
    %c384 = arith.constant 384 : index
    %63 = vector.load %arg8[%c0_25, %c384] : memref<32x1920xf32, #tpu.memory_space<vmem>>, vector<32x384xf32>
    %c0_26 = arith.constant 0 : index
    %c0_27 = arith.constant 0 : index
    %64 = vector.load %arg9[%c0_26, %c0_27] : memref<8x640xf32, #tpu.memory_space<vmem>>, vector<8x640xf32>
    %65 = vector.extract_strided_slice %64 {offsets = [0, 78], sizes = [8, 384], strides = [1, 1]} : vector<8x640xf32> to vector<8x384xf32>
    %66 = vector.extract_strided_slice %64 {offsets = [0, 79], sizes = [8, 384], strides = [1, 1]} : vector<8x640xf32> to vector<8x384xf32>
    %67 = vector.extract_strided_slice %64 {offsets = [0, 80], sizes = [8, 384], strides = [1, 1]} : vector<8x640xf32> to vector<8x384xf32>
    %68 = vector.extract_strided_slice %64 {offsets = [0, 81], sizes = [8, 384], strides = [1, 1]} : vector<8x640xf32> to vector<8x384xf32>
    %69 = vector.extract_strided_slice %64 {offsets = [0, 82], sizes = [8, 384], strides = [1, 1]} : vector<8x640xf32> to vector<8x384xf32>
    %70 = vector.extract_strided_slice %64 {offsets = [0, 102], sizes = [8, 384], strides = [1, 1]} : vector<8x640xf32> to vector<8x384xf32>
    %71 = vector.extract_strided_slice %64 {offsets = [0, 103], sizes = [8, 384], strides = [1, 1]} : vector<8x640xf32> to vector<8x384xf32>
    %72 = vector.extract_strided_slice %64 {offsets = [0, 104], sizes = [8, 384], strides = [1, 1]} : vector<8x640xf32> to vector<8x384xf32>
    %73 = vector.extract_strided_slice %64 {offsets = [0, 105], sizes = [8, 384], strides = [1, 1]} : vector<8x640xf32> to vector<8x384xf32>
    %74 = vector.extract_strided_slice %64 {offsets = [0, 106], sizes = [8, 384], strides = [1, 1]} : vector<8x640xf32> to vector<8x384xf32>
    %75 = vector.extract_strided_slice %64 {offsets = [0, 126], sizes = [8, 384], strides = [1, 1]} : vector<8x640xf32> to vector<8x384xf32>
    %76 = vector.extract_strided_slice %64 {offsets = [0, 127], sizes = [8, 384], strides = [1, 1]} : vector<8x640xf32> to vector<8x384xf32>
    %77 = vector.extract_strided_slice %64 {offsets = [0, 128], sizes = [8, 384], strides = [1, 1]} : vector<8x640xf32> to vector<8x384xf32>
    %78 = vector.extract_strided_slice %64 {offsets = [0, 129], sizes = [8, 384], strides = [1, 1]} : vector<8x640xf32> to vector<8x384xf32>
    %79 = vector.extract_strided_slice %64 {offsets = [0, 130], sizes = [8, 384], strides = [1, 1]} : vector<8x640xf32> to vector<8x384xf32>
    %80 = vector.extract_strided_slice %64 {offsets = [0, 150], sizes = [8, 384], strides = [1, 1]} : vector<8x640xf32> to vector<8x384xf32>
    %81 = vector.extract_strided_slice %64 {offsets = [0, 151], sizes = [8, 384], strides = [1, 1]} : vector<8x640xf32> to vector<8x384xf32>
    %82 = vector.extract_strided_slice %64 {offsets = [0, 152], sizes = [8, 384], strides = [1, 1]} : vector<8x640xf32> to vector<8x384xf32>
    %83 = vector.extract_strided_slice %64 {offsets = [0, 153], sizes = [8, 384], strides = [1, 1]} : vector<8x640xf32> to vector<8x384xf32>
    %84 = vector.extract_strided_slice %64 {offsets = [0, 154], sizes = [8, 384], strides = [1, 1]} : vector<8x640xf32> to vector<8x384xf32>
    %85 = vector.extract_strided_slice %64 {offsets = [0, 174], sizes = [8, 384], strides = [1, 1]} : vector<8x640xf32> to vector<8x384xf32>
    %86 = vector.extract_strided_slice %64 {offsets = [0, 175], sizes = [8, 384], strides = [1, 1]} : vector<8x640xf32> to vector<8x384xf32>
    %87 = vector.extract_strided_slice %64 {offsets = [0, 176], sizes = [8, 384], strides = [1, 1]} : vector<8x640xf32> to vector<8x384xf32>
    %88 = vector.extract_strided_slice %64 {offsets = [0, 177], sizes = [8, 384], strides = [1, 1]} : vector<8x640xf32> to vector<8x384xf32>
    %89 = vector.extract_strided_slice %64 {offsets = [0, 178], sizes = [8, 384], strides = [1, 1]} : vector<8x640xf32> to vector<8x384xf32>
    %90 = tpu.concatenate %65, %66, %67, %68, %69, %70, %71, %72, %73, %74, %75, %76, %77, %78, %79, %80 in 0 : vector<8x384xf32>, vector<8x384xf32>, vector<8x384xf32>, vector<8x384xf32>, vector<8x384xf32>, vector<8x384xf32>, vector<8x384xf32>, vector<8x384xf32>, vector<8x384xf32>, vector<8x384xf32>, vector<8x384xf32>, vector<8x384xf32>, vector<8x384xf32>, vector<8x384xf32>, vector<8x384xf32>, vector<8x384xf32> -> vector<128x384xf32>
    %91 = tpu.concatenate %81, %82, %83, %84, %85, %86, %87, %88, %89 in 0 : vector<8x384xf32>, vector<8x384xf32>, vector<8x384xf32>, vector<8x384xf32>, vector<8x384xf32>, vector<8x384xf32>, vector<8x384xf32>, vector<8x384xf32>, vector<8x384xf32> -> vector<72x384xf32>
    %92 = tpu.concatenate %90, %91 in 0 : vector<128x384xf32>, vector<72x384xf32> -> vector<200x384xf32>
    %cst_28 = arith.constant dense<0.000000e+00> : vector<32x384xf32>
    %93 = tpu.matmul %31, %92, %cst_28 {dimension_numbers = #tpu.dot_dimension_numbers<[1], [0], [0], [1], [0, 0, 1, 1], [], []>} : vector<32x200xf32>, vector<200x384xf32>, vector<32x384xf32> -> vector<32x384xf32>
    %94 = arith.addf %63, %93 : vector<32x384xf32>
    %95 = vector.extract_strided_slice %94 {offsets = [0, 0], sizes = [8, 384], strides = [1, 1]} : vector<32x384xf32> to vector<8x384xf32>
    %96 = arith.negf %95 : vector<8x384xf32>
    %97 = math.exp %96 : vector<8x384xf32>
    %cst_29 = arith.constant 1.000000e+00 : f32
    %98 = vector.broadcast %cst_29 : f32 to vector<8x384xf32>
    %99 = arith.addf %98, %97 : vector<8x384xf32>
    %100 = arith.divf %98, %99 : vector<8x384xf32>
    %101 = vector.extract_strided_slice %94 {offsets = [8, 0], sizes = [8, 384], strides = [1, 1]} : vector<32x384xf32> to vector<8x384xf32>
    %102 = arith.negf %101 : vector<8x384xf32>
    %103 = math.exp %102 : vector<8x384xf32>
    %cst_30 = arith.constant 1.000000e+00 : f32
    %104 = vector.broadcast %cst_30 : f32 to vector<8x384xf32>
    %105 = arith.addf %104, %103 : vector<8x384xf32>
    %106 = arith.divf %104, %105 : vector<8x384xf32>
    %107 = vector.extract_strided_slice %94 {offsets = [16, 0], sizes = [8, 384], strides = [1, 1]} : vector<32x384xf32> to vector<8x384xf32>
    %108 = arith.negf %107 : vector<8x384xf32>
    %109 = math.exp %108 : vector<8x384xf32>
    %cst_31 = arith.constant 1.000000e+00 : f32
    %110 = vector.broadcast %cst_31 : f32 to vector<8x384xf32>
    %111 = arith.addf %110, %109 : vector<8x384xf32>
    %112 = arith.divf %110, %111 : vector<8x384xf32>
    %113 = vector.extract_strided_slice %94 {offsets = [24, 0], sizes = [8, 384], strides = [1, 1]} : vector<32x384xf32> to vector<8x384xf32>
    %114 = math.tanh %113 : vector<8x384xf32>
    %115 = arith.mulf %56, %106 : vector<8x384xf32>
    %116 = arith.mulf %100, %114 : vector<8x384xf32>
    %117 = arith.addf %115, %116 : vector<8x384xf32>
    %118 = math.tanh %117 : vector<8x384xf32>
    %119 = arith.mulf %112, %118 : vector<8x384xf32>
    %c8 = arith.constant 8 : index
    %c0_32 = arith.constant 0 : index
    %120 = vector.load %arg10[%c8, %c0_32] : memref<40x384xf32, #tpu.memory_space<vmem>>, vector<8x384xf32>
    tpu.vector_store %arg10[%c8, %c0_32], %119 {strides = array<i32>} : memref<40x384xf32, #tpu.memory_space<vmem>>, vector<8x384xf32>,
    %121 = vector.broadcast %28 : vector<1x384xf32> to vector<8x384xf32>
    %122 = arith.mulf %119, %121 : vector<8x384xf32>
    %c0_33 = arith.constant 0 : index
    %c128_34 = arith.constant 128 : index
    %123 = vector.load %arg9[%c0_33, %c128_34] : memref<8x640xf32, #tpu.memory_space<vmem>>, vector<8x384xf32>
    tpu.vector_store %arg9[%c0_33, %c128_34], %122 {strides = array<i32>} : memref<8x640xf32, #tpu.memory_space<vmem>>, vector<8x384xf32>,
    %c0_35 = arith.constant 0 : index
    %c768 = arith.constant 768 : index
    %124 = vector.load %arg8[%c0_35, %c768] : memref<32x1920xf32, #tpu.memory_space<vmem>>, vector<32x384xf32>
    %c0_36 = arith.constant 0 : index
    %c0_37 = arith.constant 0 : index
    %125 = vector.load %arg9[%c0_36, %c0_37] : memref<8x640xf32, #tpu.memory_space<vmem>>, vector<8x640xf32>
    %126 = vector.extract_strided_slice %125 {offsets = [0, 78], sizes = [8, 384], strides = [1, 1]} : vector<8x640xf32> to vector<8x384xf32>
    %127 = vector.extract_strided_slice %125 {offsets = [0, 79], sizes = [8, 384], strides = [1, 1]} : vector<8x640xf32> to vector<8x384xf32>
    %128 = vector.extract_strided_slice %125 {offsets = [0, 80], sizes = [8, 384], strides = [1, 1]} : vector<8x640xf32> to vector<8x384xf32>
    %129 = vector.extract_strided_slice %125 {offsets = [0, 81], sizes = [8, 384], strides = [1, 1]} : vector<8x640xf32> to vector<8x384xf32>
    %130 = vector.extract_strided_slice %125 {offsets = [0, 82], sizes = [8, 384], strides = [1, 1]} : vector<8x640xf32> to vector<8x384xf32>
    %131 = vector.extract_strided_slice %125 {offsets = [0, 102], sizes = [8, 384], strides = [1, 1]} : vector<8x640xf32> to vector<8x384xf32>
    %132 = vector.extract_strided_slice %125 {offsets = [0, 103], sizes = [8, 384], strides = [1, 1]} : vector<8x640xf32> to vector<8x384xf32>
    %133 = vector.extract_strided_slice %125 {offsets = [0, 104], sizes = [8, 384], strides = [1, 1]} : vector<8x640xf32> to vector<8x384xf32>
    %134 = vector.extract_strided_slice %125 {offsets = [0, 105], sizes = [8, 384], strides = [1, 1]} : vector<8x640xf32> to vector<8x384xf32>
    %135 = vector.extract_strided_slice %125 {offsets = [0, 106], sizes = [8, 384], strides = [1, 1]} : vector<8x640xf32> to vector<8x384xf32>
    %136 = vector.extract_strided_slice %125 {offsets = [0, 126], sizes = [8, 384], strides = [1, 1]} : vector<8x640xf32> to vector<8x384xf32>
    %137 = vector.extract_strided_slice %125 {offsets = [0, 127], sizes = [8, 384], strides = [1, 1]} : vector<8x640xf32> to vector<8x384xf32>
    %138 = vector.extract_strided_slice %125 {offsets = [0, 128], sizes = [8, 384], strides = [1, 1]} : vector<8x640xf32> to vector<8x384xf32>
    %139 = vector.extract_strided_slice %125 {offsets = [0, 129], sizes = [8, 384], strides = [1, 1]} : vector<8x640xf32> to vector<8x384xf32>
    %140 = vector.extract_strided_slice %125 {offsets = [0, 130], sizes = [8, 384], strides = [1, 1]} : vector<8x640xf32> to vector<8x384xf32>
    %141 = vector.extract_strided_slice %125 {offsets = [0, 150], sizes = [8, 384], strides = [1, 1]} : vector<8x640xf32> to vector<8x384xf32>
    %142 = vector.extract_strided_slice %125 {offsets = [0, 151], sizes = [8, 384], strides = [1, 1]} : vector<8x640xf32> to vector<8x384xf32>
    %143 = vector.extract_strided_slice %125 {offsets = [0, 152], sizes = [8, 384], strides = [1, 1]} : vector<8x640xf32> to vector<8x384xf32>
    %144 = vector.extract_strided_slice %125 {offsets = [0, 153], sizes = [8, 384], strides = [1, 1]} : vector<8x640xf32> to vector<8x384xf32>
    %145 = vector.extract_strided_slice %125 {offsets = [0, 154], sizes = [8, 384], strides = [1, 1]} : vector<8x640xf32> to vector<8x384xf32>
    %146 = vector.extract_strided_slice %125 {offsets = [0, 174], sizes = [8, 384], strides = [1, 1]} : vector<8x640xf32> to vector<8x384xf32>
    %147 = vector.extract_strided_slice %125 {offsets = [0, 175], sizes = [8, 384], strides = [1, 1]} : vector<8x640xf32> to vector<8x384xf32>
    %148 = vector.extract_strided_slice %125 {offsets = [0, 176], sizes = [8, 384], strides = [1, 1]} : vector<8x640xf32> to vector<8x384xf32>
    %149 = vector.extract_strided_slice %125 {offsets = [0, 177], sizes = [8, 384], strides = [1, 1]} : vector<8x640xf32> to vector<8x384xf32>
    %150 = vector.extract_strided_slice %125 {offsets = [0, 178], sizes = [8, 384], strides = [1, 1]} : vector<8x640xf32> to vector<8x384xf32>
    %151 = tpu.concatenate %126, %127, %128, %129, %130, %131, %132, %133, %134, %135, %136, %137, %138, %139, %140, %141 in 0 : vector<8x384xf32>, vector<8x384xf32>, vector<8x384xf32>, vector<8x384xf32>, vector<8x384xf32>, vector<8x384xf32>, vector<8x384xf32>, vector<8x384xf32>, vector<8x384xf32>, vector<8x384xf32>, vector<8x384xf32>, vector<8x384xf32>, vector<8x384xf32>, vector<8x384xf32>, vector<8x384xf32>, vector<8x384xf32> -> vector<128x384xf32>
    %152 = tpu.concatenate %142, %143, %144, %145, %146, %147, %148, %149, %150 in 0 : vector<8x384xf32>, vector<8x384xf32>, vector<8x384xf32>, vector<8x384xf32>, vector<8x384xf32>, vector<8x384xf32>, vector<8x384xf32>, vector<8x384xf32>, vector<8x384xf32> -> vector<72x384xf32>
    %153 = tpu.concatenate %151, %152 in 0 : vector<128x384xf32>, vector<72x384xf32> -> vector<200x384xf32>
    %cst_38 = arith.constant dense<0.000000e+00> : vector<32x384xf32>
    %154 = tpu.matmul %31, %153, %cst_38 {dimension_numbers = #tpu.dot_dimension_numbers<[1], [0], [0], [1], [0, 0, 1, 1], [], []>} : vector<32x200xf32>, vector<200x384xf32>, vector<32x384xf32> -> vector<32x384xf32>
    %155 = arith.addf %124, %154 : vector<32x384xf32>
    %156 = vector.extract_strided_slice %155 {offsets = [0, 0], sizes = [8, 384], strides = [1, 1]} : vector<32x384xf32> to vector<8x384xf32>
    %157 = arith.negf %156 : vector<8x384xf32>
    %158 = math.exp %157 : vector<8x384xf32>
    %cst_39 = arith.constant 1.000000e+00 : f32
    %159 = vector.broadcast %cst_39 : f32 to vector<8x384xf32>
    %160 = arith.addf %159, %158 : vector<8x384xf32>
    %161 = arith.divf %159, %160 : vector<8x384xf32>
    %162 = vector.extract_strided_slice %155 {offsets = [8, 0], sizes = [8, 384], strides = [1, 1]} : vector<32x384xf32> to vector<8x384xf32>
    %163 = arith.negf %162 : vector<8x384xf32>
    %164 = math.exp %163 : vector<8x384xf32>
    %cst_40 = arith.constant 1.000000e+00 : f32
    %165 = vector.broadcast %cst_40 : f32 to vector<8x384xf32>
    %166 = arith.addf %165, %164 : vector<8x384xf32>
    %167 = arith.divf %165, %166 : vector<8x384xf32>
    %168 = vector.extract_strided_slice %155 {offsets = [16, 0], sizes = [8, 384], strides = [1, 1]} : vector<32x384xf32> to vector<8x384xf32>
    %169 = arith.negf %168 : vector<8x384xf32>
    %170 = math.exp %169 : vector<8x384xf32>
    %cst_41 = arith.constant 1.000000e+00 : f32
    %171 = vector.broadcast %cst_41 : f32 to vector<8x384xf32>
    %172 = arith.addf %171, %170 : vector<8x384xf32>
    %173 = arith.divf %171, %172 : vector<8x384xf32>
    %174 = vector.extract_strided_slice %155 {offsets = [24, 0], sizes = [8, 384], strides = [1, 1]} : vector<32x384xf32> to vector<8x384xf32>
    %175 = math.tanh %174 : vector<8x384xf32>
    %176 = arith.mulf %117, %167 : vector<8x384xf32>
    %177 = arith.mulf %161, %175 : vector<8x384xf32>
    %178 = arith.addf %176, %177 : vector<8x384xf32>
    %179 = math.tanh %178 : vector<8x384xf32>
    %180 = arith.mulf %173, %179 : vector<8x384xf32>
    %c16 = arith.constant 16 : index
    %c0_42 = arith.constant 0 : index
    %181 = vector.load %arg10[%c16, %c0_42] : memref<40x384xf32, #tpu.memory_space<vmem>>, vector<8x384xf32>
    tpu.vector_store %arg10[%c16, %c0_42], %180 {strides = array<i32>} : memref<40x384xf32, #tpu.memory_space<vmem>>, vector<8x384xf32>,
    %182 = vector.broadcast %28 : vector<1x384xf32> to vector<8x384xf32>
    %183 = arith.mulf %180, %182 : vector<8x384xf32>
    %c0_43 = arith.constant 0 : index
    %c128_44 = arith.constant 128 : index
    %184 = vector.load %arg9[%c0_43, %c128_44] : memref<8x640xf32, #tpu.memory_space<vmem>>, vector<8x384xf32>
    tpu.vector_store %arg9[%c0_43, %c128_44], %183 {strides = array<i32>} : memref<8x640xf32, #tpu.memory_space<vmem>>, vector<8x384xf32>,
    %c0_45 = arith.constant 0 : index
    %c1152 = arith.constant 1152 : index
    %185 = vector.load %arg8[%c0_45, %c1152] : memref<32x1920xf32, #tpu.memory_space<vmem>>, vector<32x384xf32>
    %c0_46 = arith.constant 0 : index
    %c0_47 = arith.constant 0 : index
    %186 = vector.load %arg9[%c0_46, %c0_47] : memref<8x640xf32, #tpu.memory_space<vmem>>, vector<8x640xf32>
    %187 = vector.extract_strided_slice %186 {offsets = [0, 78], sizes = [8, 384], strides = [1, 1]} : vector<8x640xf32> to vector<8x384xf32>
    %188 = vector.extract_strided_slice %186 {offsets = [0, 79], sizes = [8, 384], strides = [1, 1]} : vector<8x640xf32> to vector<8x384xf32>
    %189 = vector.extract_strided_slice %186 {offsets = [0, 80], sizes = [8, 384], strides = [1, 1]} : vector<8x640xf32> to vector<8x384xf32>
    %190 = vector.extract_strided_slice %186 {offsets = [0, 81], sizes = [8, 384], strides = [1, 1]} : vector<8x640xf32> to vector<8x384xf32>
    %191 = vector.extract_strided_slice %186 {offsets = [0, 82], sizes = [8, 384], strides = [1, 1]} : vector<8x640xf32> to vector<8x384xf32>
    %192 = vector.extract_strided_slice %186 {offsets = [0, 102], sizes = [8, 384], strides = [1, 1]} : vector<8x640xf32> to vector<8x384xf32>
    %193 = vector.extract_strided_slice %186 {offsets = [0, 103], sizes = [8, 384], strides = [1, 1]} : vector<8x640xf32> to vector<8x384xf32>
    %194 = vector.extract_strided_slice %186 {offsets = [0, 104], sizes = [8, 384], strides = [1, 1]} : vector<8x640xf32> to vector<8x384xf32>
    %195 = vector.extract_strided_slice %186 {offsets = [0, 105], sizes = [8, 384], strides = [1, 1]} : vector<8x640xf32> to vector<8x384xf32>
    %196 = vector.extract_strided_slice %186 {offsets = [0, 106], sizes = [8, 384], strides = [1, 1]} : vector<8x640xf32> to vector<8x384xf32>
    %197 = vector.extract_strided_slice %186 {offsets = [0, 126], sizes = [8, 384], strides = [1, 1]} : vector<8x640xf32> to vector<8x384xf32>
    %198 = vector.extract_strided_slice %186 {offsets = [0, 127], sizes = [8, 384], strides = [1, 1]} : vector<8x640xf32> to vector<8x384xf32>
    %199 = vector.extract_strided_slice %186 {offsets = [0, 128], sizes = [8, 384], strides = [1, 1]} : vector<8x640xf32> to vector<8x384xf32>
    %200 = vector.extract_strided_slice %186 {offsets = [0, 129], sizes = [8, 384], strides = [1, 1]} : vector<8x640xf32> to vector<8x384xf32>
    %201 = vector.extract_strided_slice %186 {offsets = [0, 130], sizes = [8, 384], strides = [1, 1]} : vector<8x640xf32> to vector<8x384xf32>
    %202 = vector.extract_strided_slice %186 {offsets = [0, 150], sizes = [8, 384], strides = [1, 1]} : vector<8x640xf32> to vector<8x384xf32>
    %203 = vector.extract_strided_slice %186 {offsets = [0, 151], sizes = [8, 384], strides = [1, 1]} : vector<8x640xf32> to vector<8x384xf32>
    %204 = vector.extract_strided_slice %186 {offsets = [0, 152], sizes = [8, 384], strides = [1, 1]} : vector<8x640xf32> to vector<8x384xf32>
    %205 = vector.extract_strided_slice %186 {offsets = [0, 153], sizes = [8, 384], strides = [1, 1]} : vector<8x640xf32> to vector<8x384xf32>
    %206 = vector.extract_strided_slice %186 {offsets = [0, 154], sizes = [8, 384], strides = [1, 1]} : vector<8x640xf32> to vector<8x384xf32>
    %207 = vector.extract_strided_slice %186 {offsets = [0, 174], sizes = [8, 384], strides = [1, 1]} : vector<8x640xf32> to vector<8x384xf32>
    %208 = vector.extract_strided_slice %186 {offsets = [0, 175], sizes = [8, 384], strides = [1, 1]} : vector<8x640xf32> to vector<8x384xf32>
    %209 = vector.extract_strided_slice %186 {offsets = [0, 176], sizes = [8, 384], strides = [1, 1]} : vector<8x640xf32> to vector<8x384xf32>
    %210 = vector.extract_strided_slice %186 {offsets = [0, 177], sizes = [8, 384], strides = [1, 1]} : vector<8x640xf32> to vector<8x384xf32>
    %211 = vector.extract_strided_slice %186 {offsets = [0, 178], sizes = [8, 384], strides = [1, 1]} : vector<8x640xf32> to vector<8x384xf32>
    %212 = tpu.concatenate %187, %188, %189, %190, %191, %192, %193, %194, %195, %196, %197, %198, %199, %200, %201, %202 in 0 : vector<8x384xf32>, vector<8x384xf32>, vector<8x384xf32>, vector<8x384xf32>, vector<8x384xf32>, vector<8x384xf32>, vector<8x384xf32>, vector<8x384xf32>, vector<8x384xf32>, vector<8x384xf32>, vector<8x384xf32>, vector<8x384xf32>, vector<8x384xf32>, vector<8x384xf32>, vector<8x384xf32>, vector<8x384xf32> -> vector<128x384xf32>
    %213 = tpu.concatenate %203, %204, %205, %206, %207, %208, %209, %210, %211 in 0 : vector<8x384xf32>, vector<8x384xf32>, vector<8x384xf32>, vector<8x384xf32>, vector<8x384xf32>, vector<8x384xf32>, vector<8x384xf32>, vector<8x384xf32>, vector<8x384xf32> -> vector<72x384xf32>
    %214 = tpu.concatenate %212, %213 in 0 : vector<128x384xf32>, vector<72x384xf32> -> vector<200x384xf32>
    %cst_48 = arith.constant dense<0.000000e+00> : vector<32x384xf32>
    %215 = tpu.matmul %31, %214, %cst_48 {dimension_numbers = #tpu.dot_dimension_numbers<[1], [0], [0], [1], [0, 0, 1, 1], [], []>} : vector<32x200xf32>, vector<200x384xf32>, vector<32x384xf32> -> vector<32x384xf32>
    %216 = arith.addf %185, %215 : vector<32x384xf32>
    %217 = vector.extract_strided_slice %216 {offsets = [0, 0], sizes = [8, 384], strides = [1, 1]} : vector<32x384xf32> to vector<8x384xf32>
    %218 = arith.negf %217 : vector<8x384xf32>
    %219 = math.exp %218 : vector<8x384xf32>
    %cst_49 = arith.constant 1.000000e+00 : f32
    %220 = vector.broadcast %cst_49 : f32 to vector<8x384xf32>
    %221 = arith.addf %220, %219 : vector<8x384xf32>
    %222 = arith.divf %220, %221 : vector<8x384xf32>
    %223 = vector.extract_strided_slice %216 {offsets = [8, 0], sizes = [8, 384], strides = [1, 1]} : vector<32x384xf32> to vector<8x384xf32>
    %224 = arith.negf %223 : vector<8x384xf32>
    %225 = math.exp %224 : vector<8x384xf32>
    %cst_50 = arith.constant 1.000000e+00 : f32
    %226 = vector.broadcast %cst_50 : f32 to vector<8x384xf32>
    %227 = arith.addf %226, %225 : vector<8x384xf32>
    %228 = arith.divf %226, %227 : vector<8x384xf32>
    %229 = vector.extract_strided_slice %216 {offsets = [16, 0], sizes = [8, 384], strides = [1, 1]} : vector<32x384xf32> to vector<8x384xf32>
    %230 = arith.negf %229 : vector<8x384xf32>
    %231 = math.exp %230 : vector<8x384xf32>
    %cst_51 = arith.constant 1.000000e+00 : f32
    %232 = vector.broadcast %cst_51 : f32 to vector<8x384xf32>
    %233 = arith.addf %232, %231 : vector<8x384xf32>
    %234 = arith.divf %232, %233 : vector<8x384xf32>
    %235 = vector.extract_strided_slice %216 {offsets = [24, 0], sizes = [8, 384], strides = [1, 1]} : vector<32x384xf32> to vector<8x384xf32>
    %236 = math.tanh %235 : vector<8x384xf32>
    %237 = arith.mulf %178, %228 : vector<8x384xf32>
    %238 = arith.mulf %222, %236 : vector<8x384xf32>
    %239 = arith.addf %237, %238 : vector<8x384xf32>
    %240 = math.tanh %239 : vector<8x384xf32>
    %241 = arith.mulf %234, %240 : vector<8x384xf32>
    %c24 = arith.constant 24 : index
    %c0_52 = arith.constant 0 : index
    %242 = vector.load %arg10[%c24, %c0_52] : memref<40x384xf32, #tpu.memory_space<vmem>>, vector<8x384xf32>
    tpu.vector_store %arg10[%c24, %c0_52], %241 {strides = array<i32>} : memref<40x384xf32, #tpu.memory_space<vmem>>, vector<8x384xf32>,
    %243 = vector.broadcast %28 : vector<1x384xf32> to vector<8x384xf32>
    %244 = arith.mulf %241, %243 : vector<8x384xf32>
    %c0_53 = arith.constant 0 : index
    %c128_54 = arith.constant 128 : index
    %245 = vector.load %arg9[%c0_53, %c128_54] : memref<8x640xf32, #tpu.memory_space<vmem>>, vector<8x384xf32>
    tpu.vector_store %arg9[%c0_53, %c128_54], %244 {strides = array<i32>} : memref<8x640xf32, #tpu.memory_space<vmem>>, vector<8x384xf32>,
    %c0_55 = arith.constant 0 : index
    %c1536 = arith.constant 1536 : index
    %246 = vector.load %arg8[%c0_55, %c1536] : memref<32x1920xf32, #tpu.memory_space<vmem>>, vector<32x384xf32>
    %c0_56 = arith.constant 0 : index
    %c0_57 = arith.constant 0 : index
    %247 = vector.load %arg9[%c0_56, %c0_57] : memref<8x640xf32, #tpu.memory_space<vmem>>, vector<8x640xf32>
    %248 = vector.extract_strided_slice %247 {offsets = [0, 78], sizes = [8, 384], strides = [1, 1]} : vector<8x640xf32> to vector<8x384xf32>
    %249 = vector.extract_strided_slice %247 {offsets = [0, 79], sizes = [8, 384], strides = [1, 1]} : vector<8x640xf32> to vector<8x384xf32>
    %250 = vector.extract_strided_slice %247 {offsets = [0, 80], sizes = [8, 384], strides = [1, 1]} : vector<8x640xf32> to vector<8x384xf32>
    %251 = vector.extract_strided_slice %247 {offsets = [0, 81], sizes = [8, 384], strides = [1, 1]} : vector<8x640xf32> to vector<8x384xf32>
    %252 = vector.extract_strided_slice %247 {offsets = [0, 82], sizes = [8, 384], strides = [1, 1]} : vector<8x640xf32> to vector<8x384xf32>
    %253 = vector.extract_strided_slice %247 {offsets = [0, 102], sizes = [8, 384], strides = [1, 1]} : vector<8x640xf32> to vector<8x384xf32>
    %254 = vector.extract_strided_slice %247 {offsets = [0, 103], sizes = [8, 384], strides = [1, 1]} : vector<8x640xf32> to vector<8x384xf32>
    %255 = vector.extract_strided_slice %247 {offsets = [0, 104], sizes = [8, 384], strides = [1, 1]} : vector<8x640xf32> to vector<8x384xf32>
    %256 = vector.extract_strided_slice %247 {offsets = [0, 105], sizes = [8, 384], strides = [1, 1]} : vector<8x640xf32> to vector<8x384xf32>
    %257 = vector.extract_strided_slice %247 {offsets = [0, 106], sizes = [8, 384], strides = [1, 1]} : vector<8x640xf32> to vector<8x384xf32>
    %258 = vector.extract_strided_slice %247 {offsets = [0, 126], sizes = [8, 384], strides = [1, 1]} : vector<8x640xf32> to vector<8x384xf32>
    %259 = vector.extract_strided_slice %247 {offsets = [0, 127], sizes = [8, 384], strides = [1, 1]} : vector<8x640xf32> to vector<8x384xf32>
    %260 = vector.extract_strided_slice %247 {offsets = [0, 128], sizes = [8, 384], strides = [1, 1]} : vector<8x640xf32> to vector<8x384xf32>
    %261 = vector.extract_strided_slice %247 {offsets = [0, 129], sizes = [8, 384], strides = [1, 1]} : vector<8x640xf32> to vector<8x384xf32>
    %262 = vector.extract_strided_slice %247 {offsets = [0, 130], sizes = [8, 384], strides = [1, 1]} : vector<8x640xf32> to vector<8x384xf32>
    %263 = vector.extract_strided_slice %247 {offsets = [0, 150], sizes = [8, 384], strides = [1, 1]} : vector<8x640xf32> to vector<8x384xf32>
    %264 = vector.extract_strided_slice %247 {offsets = [0, 151], sizes = [8, 384], strides = [1, 1]} : vector<8x640xf32> to vector<8x384xf32>
    %265 = vector.extract_strided_slice %247 {offsets = [0, 152], sizes = [8, 384], strides = [1, 1]} : vector<8x640xf32> to vector<8x384xf32>
    %266 = vector.extract_strided_slice %247 {offsets = [0, 153], sizes = [8, 384], strides = [1, 1]} : vector<8x640xf32> to vector<8x384xf32>
    %267 = vector.extract_strided_slice %247 {offsets = [0, 154], sizes = [8, 384], strides = [1, 1]} : vector<8x640xf32> to vector<8x384xf32>
    %268 = vector.extract_strided_slice %247 {offsets = [0, 174], sizes = [8, 384], strides = [1, 1]} : vector<8x640xf32> to vector<8x384xf32>
    %269 = vector.extract_strided_slice %247 {offsets = [0, 175], sizes = [8, 384], strides = [1, 1]} : vector<8x640xf32> to vector<8x384xf32>
    %270 = vector.extract_strided_slice %247 {offsets = [0, 176], sizes = [8, 384], strides = [1, 1]} : vector<8x640xf32> to vector<8x384xf32>
    %271 = vector.extract_strided_slice %247 {offsets = [0, 177], sizes = [8, 384], strides = [1, 1]} : vector<8x640xf32> to vector<8x384xf32>
    %272 = vector.extract_strided_slice %247 {offsets = [0, 178], sizes = [8, 384], strides = [1, 1]} : vector<8x640xf32> to vector<8x384xf32>
    %273 = tpu.concatenate %248, %249, %250, %251, %252, %253, %254, %255, %256, %257, %258, %259, %260, %261, %262, %263 in 0 : vector<8x384xf32>, vector<8x384xf32>, vector<8x384xf32>, vector<8x384xf32>, vector<8x384xf32>, vector<8x384xf32>, vector<8x384xf32>, vector<8x384xf32>, vector<8x384xf32>, vector<8x384xf32>, vector<8x384xf32>, vector<8x384xf32>, vector<8x384xf32>, vector<8x384xf32>, vector<8x384xf32>, vector<8x384xf32> -> vector<128x384xf32>
    %274 = tpu.concatenate %264, %265, %266, %267, %268, %269, %270, %271, %272 in 0 : vector<8x384xf32>, vector<8x384xf32>, vector<8x384xf32>, vector<8x384xf32>, vector<8x384xf32>, vector<8x384xf32>, vector<8x384xf32>, vector<8x384xf32>, vector<8x384xf32> -> vector<72x384xf32>
    %275 = tpu.concatenate %273, %274 in 0 : vector<128x384xf32>, vector<72x384xf32> -> vector<200x384xf32>
    %cst_58 = arith.constant dense<0.000000e+00> : vector<32x384xf32>
    %276 = tpu.matmul %31, %275, %cst_58 {dimension_numbers = #tpu.dot_dimension_numbers<[1], [0], [0], [1], [0, 0, 1, 1], [], []>} : vector<32x200xf32>, vector<200x384xf32>, vector<32x384xf32> -> vector<32x384xf32>
    %277 = arith.addf %246, %276 : vector<32x384xf32>
    %278 = vector.extract_strided_slice %277 {offsets = [0, 0], sizes = [8, 384], strides = [1, 1]} : vector<32x384xf32> to vector<8x384xf32>
    %279 = arith.negf %278 : vector<8x384xf32>
    %280 = math.exp %279 : vector<8x384xf32>
    %cst_59 = arith.constant 1.000000e+00 : f32
    %281 = vector.broadcast %cst_59 : f32 to vector<8x384xf32>
    %282 = arith.addf %281, %280 : vector<8x384xf32>
    %283 = arith.divf %281, %282 : vector<8x384xf32>
    %284 = vector.extract_strided_slice %277 {offsets = [8, 0], sizes = [8, 384], strides = [1, 1]} : vector<32x384xf32> to vector<8x384xf32>
    %285 = arith.negf %284 : vector<8x384xf32>
    %286 = math.exp %285 : vector<8x384xf32>
    %cst_60 = arith.constant 1.000000e+00 : f32
    %287 = vector.broadcast %cst_60 : f32 to vector<8x384xf32>
    %288 = arith.addf %287, %286 : vector<8x384xf32>
    %289 = arith.divf %287, %288 : vector<8x384xf32>
    %290 = vector.extract_strided_slice %277 {offsets = [16, 0], sizes = [8, 384], strides = [1, 1]} : vector<32x384xf32> to vector<8x384xf32>
    %291 = arith.negf %290 : vector<8x384xf32>
    %292 = math.exp %291 : vector<8x384xf32>
    %cst_61 = arith.constant 1.000000e+00 : f32
    %293 = vector.broadcast %cst_61 : f32 to vector<8x384xf32>
    %294 = arith.addf %293, %292 : vector<8x384xf32>
    %295 = arith.divf %293, %294 : vector<8x384xf32>
    %296 = vector.extract_strided_slice %277 {offsets = [24, 0], sizes = [8, 384], strides = [1, 1]} : vector<32x384xf32> to vector<8x384xf32>
    %297 = math.tanh %296 : vector<8x384xf32>
    %298 = arith.mulf %239, %289 : vector<8x384xf32>
    %299 = arith.mulf %283, %297 : vector<8x384xf32>
    %300 = arith.addf %298, %299 : vector<8x384xf32>
    %301 = math.tanh %300 : vector<8x384xf32>
    %302 = arith.mulf %295, %301 : vector<8x384xf32>
    %c32 = arith.constant 32 : index
    %c0_62 = arith.constant 0 : index
    %303 = vector.load %arg10[%c32, %c0_62] : memref<40x384xf32, #tpu.memory_space<vmem>>, vector<8x384xf32>
    tpu.vector_store %arg10[%c32, %c0_62], %302 {strides = array<i32>} : memref<40x384xf32, #tpu.memory_space<vmem>>, vector<8x384xf32>,
    %c0_63 = arith.constant 0 : index
    %c0_64 = arith.constant 0 : index
    %304 = vector.load %arg5[%c0_63, %c0_64] : memref<6x40xf32, #tpu.memory_space<vmem>>, vector<6x40xf32>
    %c0_65 = arith.constant 0 : index
    %c0_66 = arith.constant 0 : index
    %305 = vector.load %arg10[%c0_65, %c0_66] : memref<40x384xf32, #tpu.memory_space<vmem>>, vector<40x384xf32>
    %cst_67 = arith.constant dense<0.000000e+00> : vector<6x384xf32>
    %306 = tpu.matmul %304, %305, %cst_67 {dimension_numbers = #tpu.dot_dimension_numbers<[1], [0], [0], [1], [0, 0, 1, 1], [], []>} : vector<6x40xf32>, vector<40x384xf32>, vector<6x384xf32> -> vector<6x384xf32>
    %c0_68 = arith.constant 0 : index
    %c0_69 = arith.constant 0 : index
    %307 = vector.load %arg6[%c0_68, %c0_69] : memref<6x1xf32, #tpu.memory_space<vmem>>, vector<6x1xf32>
    %308 = vector.broadcast %307 : vector<6x1xf32> to vector<6x384xf32>
    %309 = arith.addf %306, %308 : vector<6x384xf32>
    %c0_70 = arith.constant 0 : index
    %c0_71 = arith.constant 0 : index
    %c0_72 = arith.constant 0 : index
    %310 = vector.load %arg7[%c0_70, %c0_71, %c0_72] : memref<1x6x384xf32, #tpu.memory_space<vmem>>, vector<1x6x384xf32>
    %311 = vector.shape_cast %310 : vector<1x6x384xf32> to vector<6x384xf32>
    %312 = vector.shape_cast %309 : vector<6x384xf32> to vector<1x6x384xf32>
    tpu.vector_store %arg7[%c0_70, %c0_71, %c0_72], %312 {strides = array<i32>} : memref<1x6x384xf32, #tpu.memory_space<vmem>>, vector<1x6x384xf32>,
    return
  }
  func.func @transform_0(%arg0: i32) -> (i32, i32, i32) {
    %c0_i32 = arith.constant 0 : i32
    %c0_i32_0 = arith.constant 0 : i32
    %c0_i32_1 = arith.constant 0 : i32
    return %arg0, %c0_i32, %c0_i32_0 : i32, i32, i32
  }
  func.func @transform_1(%arg0: i32) -> (i32, i32) {
    %c0_i32 = arith.constant 0 : i32
    %c0_i32_0 = arith.constant 0 : i32
    %c0_i32_1 = arith.constant 0 : i32
    return %c0_i32, %c0_i32_0 : i32, i32
  }
  func.func @transform_2(%arg0: i32) -> (i32, i32) {
    %c0_i32 = arith.constant 0 : i32
    %c0_i32_0 = arith.constant 0 : i32
    %c0_i32_1 = arith.constant 0 : i32
    return %c0_i32, %c0_i32_0 : i32, i32
  }
  func.func @transform_3(%arg0: i32) -> (i32, i32) {
    %c0_i32 = arith.constant 0 : i32
    %c0_i32_0 = arith.constant 0 : i32
    %c0_i32_1 = arith.constant 0 : i32
    return %c0_i32, %c0_i32_0 : i32, i32
  }
  func.func @transform_4(%arg0: i32) -> (i32, i32) {
    %c0_i32 = arith.constant 0 : i32
    %c0_i32_0 = arith.constant 0 : i32
    %c0_i32_1 = arith.constant 0 : i32
    return %c0_i32, %c0_i32_0 : i32, i32
  }
  func.func @transform_5(%arg0: i32) -> (i32, i32) {
    %c0_i32 = arith.constant 0 : i32
    %c0_i32_0 = arith.constant 0 : i32
    %c0_i32_1 = arith.constant 0 : i32
    return %c0_i32, %c0_i32_0 : i32, i32
  }
  func.func @transform_6(%arg0: i32) -> (i32, i32, i32) {
    %c0_i32 = arith.constant 0 : i32
    %c0_i32_0 = arith.constant 0 : i32
    %c0_i32_1 = arith.constant 0 : i32
    return %arg0, %c0_i32, %c0_i32_0 : i32, i32, i32
  }
}

</mosaic_0001>

<llo_original>
// kernel: tpu_custom_call.1
$region0: #{tpu_custom_call.1}
  #allocation0 [shape = 'u32[]', space=smem, size = 0x4, offset = 0x4, fixed_abs, tag = 'smem constant byte address 0x4 - core index']
  #allocation1 [shape = 'u32[144,128]{1,0:T(1,128)}', space=vmem, size = 0x12000, scoped, tag = 'internal scratch']
  #allocation2 [shape = 'f32[32,1920]{1,0:T(8,128)}', space=vmem, size = 0x3c000, scoped, tag = 'scratch operand']
  #allocation3 [shape = 'f32[8,640]{1,0:T(8,128)}', space=vmem, size = 0x5000, scoped, tag = 'scratch operand']
  #allocation4 [shape = 'f32[40,384]{1,0:T(8,128)}', space=vmem, size = 0xf000, scoped, tag = 'scratch operand']
  %s0 = inlined_call_operand.vmem [shape: f32[2,100,1920], index: 0, kind: input, shape index: {}]
  %s1 = inlined_call_operand.vmem [shape: f32[32,100], index: 1, kind: input, shape index: {}]
  %s2 = inlined_call_operand.vmem [shape: f32[32,200], index: 2, kind: input, shape index: {}]
  %s3 = inlined_call_operand.vmem [shape: f32[32,1], index: 3, kind: input, shape index: {}]
  %s4 = inlined_call_operand.vmem [shape: f32[6,40], index: 4, kind: input, shape index: {}]
  %s5 = inlined_call_operand.vmem [shape: f32[6,1], index: 5, kind: input, shape index: {}]
  %s6 = inlined_call_operand.vmem [shape: f32[2,6,384], index: 6, kind: output, shape index: {}]
  %s7 = sld [smem:[#allocation0]]
  $region57: #{tpu_custom_call.1} parent=0
    _
  %s9 = ssub.s32 1, %s7
  %s10 = scalar_select 0, %s9, %s7
  loop: start=0, step=1, limit=4
  $region2: #{tpu_custom_call.1} parent=0 // loop_pre_header
    _
  $region3: #{tpu_custom_call.1} parent=0 // loop_header
    %s12 = sphi 0, %s16
    %p13 = scmp.ge.s32.totalorder %s12, 4
    %s22 = sphi 0, %s24
    %s25 = sphi 0, %s22
    %s26 = sphi 0, %s25
    %s42 = sphi 0, %s26
    %s46 = sphi 0, %s46
    %s48 = sphi 0, %s46
    %s49 = sphi 0, %s48
    %s63 = sphi 0, %s49
    %s67 = sphi 0, %s67
    %s69 = sphi 0, %s67
    %s70 = sphi 0, %s69
    %s84 = sphi 0, %s70
    %s88 = sphi 0, %s88
    %s90 = sphi 0, %s88
    %s91 = sphi 0, %s90
    %s105 = sphi 0, %s91
    %s109 = sphi 0, %s109
    %s111 = sphi 0, %s109
    %s112 = sphi 0, %s111
    %s126 = sphi 0, %s112
    %s130 = sphi 0, %s130
    %s132 = sphi 0, %s130
    %s133 = sphi 0, %s132
    %s147 = sphi 0, %s133
    %s153 = sphi 0, %s155
    %s156 = sphi 0, %s153
    %s157 = sphi 0, %s156
    %s173 = sphi 0, %s157
  $region4: #{tpu_custom_call.1} parent=0 // loop_header_branch
    %15 = sbr.rel (%p13) target = $region8
  $region5: #{tpu_custom_call.1} parent=0 // loop_body
    %s17 = ssub.s32 %s12, 1
    %s18 = ssub.s32 %s12, 2
    %s19 = sadd.s32 %s12, 1
    %s20 = ssub.s32 %s12, %s19
    %p21 = scmp.eq.s32.totalorder %s20, 0
    %s23 = sadd.s32 %s22, 1
    %s24 = scalar_select %p21, %s22, %s23
    %p27 = pneg %p21
    %p28 = scmp.eq.s32.totalorder %s12, 1
    %p29 = por %p27, %p28
    %p30 = scmp.ne.s32.totalorder %s22, %s25
    %p31 = scmp.eq.s32.totalorder %s12, 0
    %p32 = por %p30, %p31
    %p33 = scmp.ne.s32.totalorder %s22, %s25
    %p34 = scmp.eq.s32.totalorder %s17, 1
    %p35 = por %p33, %p34
    %p36 = scmp.ne.s32.totalorder %s25, %s26
    %p37 = scmp.eq.s32.totalorder %s17, 0
    %p38 = por %p36, %p37
    %p39 = scmp.ne.s32.totalorder %s25, %s26
    %p40 = scmp.eq.s32.totalorder %s18, 1
    %p41 = por %p39, %p40
    %p43 = scmp.ne.s32.totalorder %s26, %s42
    %p44 = scmp.eq.s32.totalorder %s18, 0
    %p45 = por %p43, %p44
    %s47 = sadd.s32 %s46, 1
    %p50 = scmp.eq.s32.totalorder %s12, 1
    %p51 = scmp.ne.s32.totalorder %s46, %s48
    %p52 = scmp.eq.s32.totalorder %s12, 0
    %p53 = por %p51, %p52
    %p54 = scmp.ne.s32.totalorder %s46, %s48
    %p55 = scmp.eq.s32.totalorder %s17, 1
    %p56 = por %p54, %p55
    %p57 = scmp.ne.s32.totalorder %s48, %s49
    %p58 = scmp.eq.s32.totalorder %s17, 0
    %p59 = por %p57, %p58
    %p60 = scmp.ne.s32.totalorder %s48, %s49
    %p61 = scmp.eq.s32.totalorder %s18, 1
    %p62 = por %p60, %p61
    %p64 = scmp.ne.s32.totalorder %s49, %s63
    %p65 = scmp.eq.s32.totalorder %s18, 0
    %p66 = por %p64, %p65
    %s68 = sadd.s32 %s67, 1
    %p71 = scmp.eq.s32.totalorder %s12, 1
    %p72 = scmp.ne.s32.totalorder %s67, %s69
    %p73 = scmp.eq.s32.totalorder %s12, 0
    %p74 = por %p72, %p73
    %p75 = scmp.ne.s32.totalorder %s67, %s69
    %p76 = scmp.eq.s32.totalorder %s17, 1
    %p77 = por %p75, %p76
    %p78 = scmp.ne.s32.totalorder %s69, %s70
    %p79 = scmp.eq.s32.totalorder %s17, 0
    %p80 = por %p78, %p79
    %p81 = scmp.ne.s32.totalorder %s69, %s70
    %p82 = scmp.eq.s32.totalorder %s18, 1
    %p83 = por %p81, %p82
    %p85 = scmp.ne.s32.totalorder %s70, %s84
    %p86 = scmp.eq.s32.totalorder %s18, 0
    %p87 = por %p85, %p86
    %s89 = sadd.s32 %s88, 1
    %p92 = scmp.eq.s32.totalorder %s12, 1
    %p93 = scmp.ne.s32.totalorder %s88, %s90
    %p94 = scmp.eq.s32.totalorder %s12, 0
    %p95 = por %p93, %p94
    %p96 = scmp.ne.s32.totalorder %s88, %s90
    %p97 = scmp.eq.s32.totalorder %s17, 1
    %p98 = por %p96, %p97
    %p99 = scmp.ne.s32.totalorder %s90, %s91
    %p100 = scmp.eq.s32.totalorder %s17, 0
    %p101 = por %p99, %p100
    %p102 = scmp.ne.s32.totalorder %s90, %s91
    %p103 = scmp.eq.s32.totalorder %s18, 1
    %p104 = por %p102, %p103
    %p106 = scmp.ne.s32.totalorder %s91, %s105
    %p107 = scmp.eq.s32.totalorder %s18, 0
    %p108 = por %p106, %p107
    %s110 = sadd.s32 %s109, 1
    %p113 = scmp.eq.s32.totalorder %s12, 1
    %p114 = scmp.ne.s32.totalorder %s109, %s111
    %p115 = scmp.eq.s32.totalorder %s12, 0
    %p116 = por %p114, %p115
    %p117 = scmp.ne.s32.totalorder %s109, %s111
    %p118 = scmp.eq.s32.totalorder %s17, 1
    %p119 = por %p117, %p118
    %p120 = scmp.ne.s32.totalorder %s111, %s112
    %p121 = scmp.eq.s32.totalorder %s17, 0
    %p122 = por %p120, %p121
    %p123 = scmp.ne.s32.totalorder %s111, %s112
    %p124 = scmp.eq.s32.totalorder %s18, 1
    %p125 = por %p123, %p124
    %p127 = scmp.ne.s32.totalorder %s112, %s126
    %p128 = scmp.eq.s32.totalorder %s18, 0
    %p129 = por %p127, %p128
    %s131 = sadd.s32 %s130, 1
    %p134 = scmp.eq.s32.totalorder %s12, 1
    %p135 = scmp.ne.s32.totalorder %s130, %s132
    %p136 = scmp.eq.s32.totalorder %s12, 0
    %p137 = por %p135, %p136
    %p138 = scmp.ne.s32.totalorder %s130, %s132
    %p139 = scmp.eq.s32.totalorder %s17, 1
    %p140 = por %p138, %p139
    %p141 = scmp.ne.s32.totalorder %s132, %s133
    %p142 = scmp.eq.s32.totalorder %s17, 0
    %p143 = por %p141, %p142
    %p144 = scmp.ne.s32.totalorder %s132, %s133
    %p145 = scmp.eq.s32.totalorder %s18, 1
    %p146 = por %p144, %p145
    %p148 = scmp.ne.s32.totalorder %s133, %s147
    %p149 = scmp.eq.s32.totalorder %s18, 0
    %p150 = por %p148, %p149
    %s151 = ssub.s32 %s12, %s19
    %p152 = scmp.eq.s32.totalorder %s151, 0
    %s154 = sadd.s32 %s153, 1
    %s155 = scalar_select %p152, %s153, %s154
    %p158 = pneg %p152
    %p159 = scmp.eq.s32.totalorder %s12, 1
    %p160 = por %p158, %p159
    %p161 = scmp.ne.s32.totalorder %s153, %s156
    %p162 = scmp.eq.s32.totalorder %s12, 0
    %p163 = por %p161, %p162
    %p164 = scmp.ne.s32.totalorder %s153, %s156
    %p165 = scmp.eq.s32.totalorder %s17, 1
    %p166 = por %p164, %p165
    %p167 = scmp.ne.s32.totalorder %s156, %s157
    %p168 = scmp.eq.s32.totalorder %s17, 0
    %p169 = por %p167, %p168
    %p170 = scmp.ne.s32.totalorder %s156, %s157
    %p171 = scmp.eq.s32.totalorder %s18, 1
    %p172 = por %p170, %p171
    %p174 = scmp.ne.s32.totalorder %s157, %s173
    %p175 = scmp.eq.s32.totalorder %s18, 0
    %p176 = por %p174, %p175
    %p177 = scmp.le.s32.totalorder 1, %s12
    %p178 = scmp.lt.s32.totalorder %s12, 3
    %p179 = pnand %p177, %p178
    %p180 = pneg %p179
    // Predicated region
    $region9: #{tpu_custom_call.1} parent=5 // pred_check
      _
    $region10: #{tpu_custom_call.1} parent=5 // pred_check_branch
      %182 = sbr.rel (%p179) target = $region12
    $region11: #{tpu_custom_call.1} parent=5 // pred_region
      %s183 = ssub.s32 %s12, 1
      // Predicated region
      $region13: #{tpu_custom_call.1} parent=11 // pred_check
        %p184 = pneg %p59
      $region14: #{tpu_custom_call.1} parent=11 // pred_check_branch
        %186 = sbr.rel (%p184) target = $region16
      $region15: #{tpu_custom_call.1} parent=11 // pred_region
        _
      $region16: #{tpu_custom_call.1} parent=11 // pred_fallthru
        _
      // Predicated region
      $region17: #{tpu_custom_call.1} parent=11 // pred_check
        %p187 = pneg %p80
      $region18: #{tpu_custom_call.1} parent=11 // pred_check_branch
        %189 = sbr.rel (%p187) target = $region20
      $region19: #{tpu_custom_call.1} parent=11 // pred_region
        _
      $region20: #{tpu_custom_call.1} parent=11 // pred_fallthru
        _
      // Predicated region
      $region21: #{tpu_custom_call.1} parent=11 // pred_check
        %p190 = pneg %p101
      $region22: #{tpu_custom_call.1} parent=11 // pred_check_branch
        %192 = sbr.rel (%p190) target = $region24
      $region23: #{tpu_custom_call.1} parent=11 // pred_region
        _
      $region24: #{tpu_custom_call.1} parent=11 // pred_fallthru
        _
      // Predicated region
      $region25: #{tpu_custom_call.1} parent=11 // pred_check
        %p193 = pneg %p122
      $region26: #{tpu_custom_call.1} parent=11 // pred_check_branch
        %195 = sbr.rel (%p193) target = $region28
      $region27: #{tpu_custom_call.1} parent=11 // pred_region
        _
      $region28: #{tpu_custom_call.1} parent=11 // pred_fallthru
        _
      // Predicated region
      $region29: #{tpu_custom_call.1} parent=11 // pred_check
        %p196 = pneg %p143
      $region30: #{tpu_custom_call.1} parent=11 // pred_check_branch
        %198 = sbr.rel (%p196) target = $region32
      $region31: #{tpu_custom_call.1} parent=11 // pred_region
        _
      $region32: #{tpu_custom_call.1} parent=11 // pred_fallthru
        _
    $region12: #{tpu_custom_call.1} parent=5 // pred_fallthru
      _
    %p199 = scmp.lt.s32.totalorder %s12, 2
    // Predicated region
    $region33: #{tpu_custom_call.1} parent=5 // pred_check
      %p200 = pneg %p199
    $region34: #{tpu_custom_call.1} parent=5 // pred_check_branch
      %202 = sbr.rel (%p200) target = $region36
    $region35: #{tpu_custom_call.1} parent=5 // pred_region
      // Predicated region
      $region37: #{tpu_custom_call.1} parent=35 // pred_check
        %p203 = pneg %p32
      $region38: #{tpu_custom_call.1} parent=35 // pred_check_branch
        %205 = sbr.rel (%p203) target = $region40
      $region39: #{tpu_custom_call.1} parent=35 // pred_region
        %p206 = scmp.lt.s32.totalorder %s12, 1
        %s207 = scalar_select %p206, %s12, 1
        %s208 = smul.addr %s207, 195
        %s209 = smul.addr %s208, 8
        %s210 = scalar_lea.vmem %s0, %s209
      $region40: #{tpu_custom_call.1} parent=35 // pred_fallthru
        _
    $region36: #{tpu_custom_call.1} parent=5 // pred_fallthru
      _
    %p211 = scmp.le.s32.totalorder 1, %s12
    %p212 = scmp.lt.s32.totalorder %s12, 3
    %p213 = pnand %p211, %p212
    %p214 = pneg %p213
    // Predicated region
    $region41: #{tpu_custom_call.1} parent=5 // pred_check
      _
    $region42: #{tpu_custom_call.1} parent=5 // pred_check_branch
      %216 = sbr.rel (%p213) target = $region44
    $region43: #{tpu_custom_call.1} parent=5 // pred_region
      %s217 = ssub.s32 %s12, 1
      %p218 = scmp.lt.s32.totalorder %s17, 1
      %s219 = scalar_select %p218, %s17, 1
      %s220 = smul.addr %s219, 195
      %s221 = smul.addr %s220, 8
      %s222 = scalar_lea.vmem %s0, %s221
      %p223 = pneg %p38
      %p224 = pneg %p35
      %p225 = pneg %p59
      %p226 = pneg %p56
      %p227 = pneg %p80
      %p228 = pneg %p77
      %p229 = pneg %p101
      %p230 = pneg %p98
      %p231 = pneg %p122
      %p232 = pneg %p119
      %p233 = pneg %p143
      %p234 = pneg %p140
      %p235 = pneg %p169
      %p236 = pneg %p166
      %p237 = scmp.lt.s32.totalorder %s17, 1
      %s238 = scalar_select %p237, %s17, 1
      %s239 = smul.addr %s238, 3
      %s240 = smul.addr %s239, 8
      %s241 = scalar_lea.vmem %s6, %s240
      %p242 = scmp.lt.s32.totalorder %s17, 1
      %s243 = scalar_select %p242, %s17, 1
      %s244 = smul.addr %s243, 195
      %s245 = smul.addr %s244, 8
      %s246 = scalar_lea.vmem %s0, %s245
      %p247 = scmp.lt.s32.totalorder %s17, 1
      %s248 = scalar_select %p247, %s17, 1
      %s249 = smul.addr %s248, 3
      %s250 = smul.addr %s249, 8
      %s251 = scalar_lea.vmem %s6, %s250
      %v252 = vld [vmem:[%s1] sm:$0xff]
      %v253 = vld [vmem:[%s1 + $0x8] sm:$0xff]
      %v254 = vld [vmem:[%s1 + $0x10] sm:$0xff]
      %v255 = vld [vmem:[%s1 + $0x18] sm:$0xff]
      %v256 = vld [vmem:[%s246] sm:$0xff]
      %v257 = vld [vmem:[%s246 + $0x8] sm:$0xff]
      %v258 = vld [vmem:[%s246 + $0x10] sm:$0xff]
      %v259 = vld [vmem:[%s246 + $0x18] sm:$0xff]
      %v260 = vld [vmem:[%s246 + $0x20] sm:$0xff]
      %v261 = vld [vmem:[%s246 + $0x28] sm:$0xff]
      %v262 = vld [vmem:[%s246 + $0x30] sm:$0xff]
      %v263 = vld [vmem:[%s246 + $0x38] sm:$0xff]
      %v264 = vld [vmem:[%s246 + $0x40] sm:$0xff]
      %v265 = vld [vmem:[%s246 + $0x48] sm:$0xff]
      %v266 = vld [vmem:[%s246 + $0x50] sm:$0xff]
      %v267 = vld [vmem:[%s246 + $0x58] sm:$0xff]
      %v268 = vld [vmem:[%s246 + $0x60] sm:$0xff]
      %v269 = vld [vmem:[%s246 + $0x68] sm:$0xff]
      %v270 = vld [vmem:[%s246 + $0x70] sm:$0xff]
      %v271 = vld [vmem:[%s246 + $0x78] sm:$0xff]
      %v272 = vld [vmem:[%s246 + $0x80] sm:$0xff]
      %v273 = vld [vmem:[%s246 + $0x88] sm:$0xff]
      %v274 = vld [vmem:[%s246 + $0x90] sm:$0xff]
      %v275 = vld [vmem:[%s246 + $0x98] sm:$0xff]
      %v276 = vld [vmem:[%s246 + $0xa0] sm:$0xff]
      %v277 = vld [vmem:[%s246 + $0xa8] sm:$0xff]
      %v278 = vld [vmem:[%s246 + $0xb0] sm:$0xff]
      %v279 = vld [vmem:[%s246 + $0xb8] sm:$0xff]
      %v280 = vld [vmem:[%s246 + $0xc0] sm:$0xff]
      %v281 = vld [vmem:[%s246 + $0xc8] sm:$0xff]
      %v282 = vld [vmem:[%s246 + $0xd0] sm:$0xff]
      %v283 = vld [vmem:[%s246 + $0xd8] sm:$0xff]
      %v284 = vld [vmem:[%s246 + $0xe0] sm:$0xff]
      %v285 = vld [vmem:[%s246 + $0xe8] sm:$0xff]
      %v286 = vld [vmem:[%s246 + $0xf0] sm:$0xff]
      %v287 = vld [vmem:[%s246 + $0xf8] sm:$0xff]
      %v288 = vld [vmem:[%s246 + $0x100] sm:$0xff]
      %v289 = vld [vmem:[%s246 + $0x108] sm:$0xff]
      %v290 = vld [vmem:[%s246 + $0x110] sm:$0xff]
      %v291 = vld [vmem:[%s246 + $0x118] sm:$0xff]
      %v292 = vld [vmem:[%s246 + $0x120] sm:$0xff]
      %v293 = vld [vmem:[%s246 + $0x128] sm:$0xff]
      %v294 = vld [vmem:[%s246 + $0x130] sm:$0xff]
      %v295 = vld [vmem:[%s246 + $0x138] sm:$0xff]
      %v296 = vld [vmem:[%s246 + $0x140] sm:$0xff]
      %v297 = vld [vmem:[%s246 + $0x148] sm:$0xff]
      %v298 = vld [vmem:[%s246 + $0x150] sm:$0xff]
      %v299 = vld [vmem:[%s246 + $0x158] sm:$0xff]
      %v300 = vld [vmem:[%s246 + $0x160] sm:$0xff]
      %v301 = vld [vmem:[%s246 + $0x168] sm:$0xff]
      %v302 = vld [vmem:[%s246 + $0x170] sm:$0xff]
      %v303 = vld [vmem:[%s246 + $0x178] sm:$0xff]
      %v304 = vld [vmem:[%s246 + $0x180] sm:$0xff]
      %v305 = vld [vmem:[%s246 + $0x188] sm:$0xff]
      %v306 = vld [vmem:[%s246 + $0x190] sm:$0xff]
      %v307 = vld [vmem:[%s246 + $0x198] sm:$0xff]
      %v308 = vld [vmem:[%s246 + $0x1a0] sm:$0xff]
      %v309 = vld [vmem:[%s246 + $0x1a8] sm:$0xff]
      %v310 = vld [vmem:[%s246 + $0x1b0] sm:$0xff]
      %v311 = vld [vmem:[%s246 + $0x1b8] sm:$0xff]
      %v312 = vld [vmem:[%s246 + $0x1c0] sm:$0xff]
      %v313 = vld [vmem:[%s246 + $0x1c8] sm:$0xff]
      %v314 = vld [vmem:[%s246 + $0x1d0] sm:$0xff]
      %v315 = vld [vmem:[%s246 + $0x1d8] sm:$0xff]
      %v316 = vld [vmem:[%s246 + $0x1e0] sm:$0xff]
      %v317 = vld [vmem:[%s246 + $0x1e8] sm:$0xff]
      %v318 = vld [vmem:[%s246 + $0x1f0] sm:$0xff]
      %v319 = vld [vmem:[%s246 + $0x1f8] sm:$0xff]
      %v320 = vld [vmem:[%s246 + $0x200] sm:$0xff]
      %v321 = vld [vmem:[%s246 + $0x208] sm:$0xff]
      %v322 = vld [vmem:[%s246 + $0x210] sm:$0xff]
      %v323 = vld [vmem:[%s246 + $0x218] sm:$0xff]
      %v324 = vld [vmem:[%s246 + $0x220] sm:$0xff]
      %v325 = vld [vmem:[%s246 + $0x228] sm:$0xff]
      %v326 = vld [vmem:[%s246 + $0x230] sm:$0xff]
      %v327 = vld [vmem:[%s246 + $0x238] sm:$0xff]
      %v328 = vld [vmem:[%s246 + $0x240] sm:$0xff]
      %v329 = vld [vmem:[%s246 + $0x248] sm:$0xff]
      %v330 = vld [vmem:[%s246 + $0x250] sm:$0xff]
      %v331 = vld [vmem:[%s246 + $0x258] sm:$0xff]
      %v332 = vld [vmem:[%s246 + $0x260] sm:$0xff]
      %v333 = vld [vmem:[%s246 + $0x268] sm:$0xff]
      %v334 = vld [vmem:[%s246 + $0x270] sm:$0xff]
      %v335 = vld [vmem:[%s246 + $0x278] sm:$0xff]
      %v336 = vld [vmem:[%s246 + $0x280] sm:$0xff]
      %v337 = vld [vmem:[%s246 + $0x288] sm:$0xff]
      %v338 = vld [vmem:[%s246 + $0x290] sm:$0xff]
      %v339 = vld [vmem:[%s246 + $0x298] sm:$0xff]
      %v340 = vld [vmem:[%s246 + $0x2a0] sm:$0xff]
      %v341 = vld [vmem:[%s246 + $0x2a8] sm:$0xff]
      %v342 = vld [vmem:[%s246 + $0x2b0] sm:$0xff]
      %v343 = vld [vmem:[%s246 + $0x2b8] sm:$0xff]
      %v344 = vld [vmem:[%s246 + $0x2c0] sm:$0xff]
      %v345 = vld [vmem:[%s246 + $0x2c8] sm:$0xff]
      %v346 = vld [vmem:[%s246 + $0x2d0] sm:$0xff]
      %v347 = vld [vmem:[%s246 + $0x2d8] sm:$0xff]
      %v348 = vld [vmem:[%s246 + $0x2e0] sm:$0xff]
      %v349 = vld [vmem:[%s246 + $0x2e8] sm:$0xff]
      %v350 = vld [vmem:[%s246 + $0x2f0] sm:$0xff]
      %v351 = vld [vmem:[%s246 + $0x2f8] sm:$0xff]
      %v352 = vld [vmem:[%s246 + $0x300] sm:$0xff]
      %v353 = vld [vmem:[%s246 + $0x308] sm:$0xff]
      %v354 = vld [vmem:[%s246 + $0x310] sm:$0xff]
      %v355 = vld [vmem:[%s246 + $0x318] sm:$0xff]
      %v356 = vld [vmem:[%s246 + $0x320] sm:$0xff]
      %v357 = vld [vmem:[%s246 + $0x328] sm:$0xff]
      %v358 = vld [vmem:[%s246 + $0x330] sm:$0xff]
      %v359 = vld [vmem:[%s246 + $0x338] sm:$0xff]
      %v360 = vld [vmem:[%s246 + $0x340] sm:$0xff]
      %v361 = vld [vmem:[%s246 + $0x348] sm:$0xff]
      %v362 = vld [vmem:[%s246 + $0x350] sm:$0xff]
      %v363 = vld [vmem:[%s246 + $0x358] sm:$0xff]
      %v364 = vld [vmem:[%s246 + $0x360] sm:$0xff]
      %v365 = vld [vmem:[%s246 + $0x368] sm:$0xff]
      %v366 = vld [vmem:[%s246 + $0x370] sm:$0xff]
      %v367 = vld [vmem:[%s246 + $0x378] sm:$0xff]
      %v368 = vld [vmem:[%s246 + $0x380] sm:$0xff]
      %v369 = vld [vmem:[%s246 + $0x388] sm:$0xff]
      %v370 = vld [vmem:[%s246 + $0x390] sm:$0xff]
      %v371 = vld [vmem:[%s246 + $0x398] sm:$0xff]
      %v372 = vld [vmem:[%s246 + $0x3a0] sm:$0xff]
      %v373 = vld [vmem:[%s246 + $0x3a8] sm:$0xff]
      %v374 = vld [vmem:[%s246 + $0x3b0] sm:$0xff]
      %v375 = vld [vmem:[%s246 + $0x3b8] sm:$0xff]
      %v376 = vld [vmem:[%s246 + $0x3c0] sm:$0xff]
      %v377 = vld [vmem:[%s246 + $0x3c8] sm:$0xff]
      %v378 = vld [vmem:[%s246 + $0x3d0] sm:$0xff]
      %v379 = vld [vmem:[%s246 + $0x3d8] sm:$0xff]
      %v380 = vld [vmem:[%s246 + $0x3e0] sm:$0xff]
      %v381 = vld [vmem:[%s246 + $0x3e8] sm:$0xff]
      %v382 = vld [vmem:[%s246 + $0x3f0] sm:$0xff]
      %v383 = vld [vmem:[%s246 + $0x3f8] sm:$0xff]
      %v384 = vld [vmem:[%s246 + $0x400] sm:$0xff]
      %v385 = vld [vmem:[%s246 + $0x408] sm:$0xff]
      %v386 = vld [vmem:[%s246 + $0x410] sm:$0xff]
      %v387 = vld [vmem:[%s246 + $0x418] sm:$0xff]
      %v388 = vld [vmem:[%s246 + $0x420] sm:$0xff]
      %v389 = vld [vmem:[%s246 + $0x428] sm:$0xff]
      %v390 = vld [vmem:[%s246 + $0x430] sm:$0xff]
      %v391 = vld [vmem:[%s246 + $0x438] sm:$0xff]
      %v392 = vld [vmem:[%s246 + $0x440] sm:$0xff]
      %v393 = vld [vmem:[%s246 + $0x448] sm:$0xff]
      %v394 = vld [vmem:[%s246 + $0x450] sm:$0xff]
      %v395 = vld [vmem:[%s246 + $0x458] sm:$0xff]
      %v396 = vld [vmem:[%s246 + $0x460] sm:$0xff]
      %v397 = vld [vmem:[%s246 + $0x468] sm:$0xff]
      %v398 = vld [vmem:[%s246 + $0x470] sm:$0xff]
      %v399 = vld [vmem:[%s246 + $0x478] sm:$0xff]
      %v400 = vld [vmem:[%s246 + $0x480] sm:$0xff]
      %v401 = vld [vmem:[%s246 + $0x488] sm:$0xff]
      %v402 = vld [vmem:[%s246 + $0x490] sm:$0xff]
      %v403 = vld [vmem:[%s246 + $0x498] sm:$0xff]
      %v404 = vld [vmem:[%s246 + $0x4a0] sm:$0xff]
      %v405 = vld [vmem:[%s246 + $0x4a8] sm:$0xff]
      %v406 = vld [vmem:[%s246 + $0x4b0] sm:$0xff]
      %v407 = vld [vmem:[%s246 + $0x4b8] sm:$0xff]
      %v408 = vld [vmem:[%s246 + $0x4c0] sm:$0xff]
      %v409 = vld [vmem:[%s246 + $0x4c8] sm:$0xff]
      %v410 = vld [vmem:[%s246 + $0x4d0] sm:$0xff]
      %v411 = vld [vmem:[%s246 + $0x4d8] sm:$0xff]
      %v412 = vld [vmem:[%s246 + $0x4e0] sm:$0xff]
      %v413 = vld [vmem:[%s246 + $0x4e8] sm:$0xff]
      %v414 = vld [vmem:[%s246 + $0x4f0] sm:$0xff]
      %v415 = vld [vmem:[%s246 + $0x4f8] sm:$0xff]
      %v416 = vld [vmem:[%s246 + $0x500] sm:$0xff]
      %v417 = vld [vmem:[%s246 + $0x508] sm:$0xff]
      %v418 = vld [vmem:[%s246 + $0x510] sm:$0xff]
      %v419 = vld [vmem:[%s246 + $0x518] sm:$0xff]
      %v420 = vld [vmem:[%s246 + $0x520] sm:$0xff]
      %v421 = vld [vmem:[%s246 + $0x528] sm:$0xff]
      %v422 = vld [vmem:[%s246 + $0x530] sm:$0xff]
      %v423 = vld [vmem:[%s246 + $0x538] sm:$0xff]
      %v424 = vld [vmem:[%s246 + $0x540] sm:$0xff]
      %v425 = vld [vmem:[%s246 + $0x548] sm:$0xff]
      %v426 = vld [vmem:[%s246 + $0x550] sm:$0xff]
      %v427 = vld [vmem:[%s246 + $0x558] sm:$0xff]
      %v428 = vld [vmem:[%s246 + $0x560] sm:$0xff]
      %v429 = vld [vmem:[%s246 + $0x568] sm:$0xff]
      %v430 = vld [vmem:[%s246 + $0x570] sm:$0xff]
      %v431 = vld [vmem:[%s246 + $0x578] sm:$0xff]
      %v432 = vld [vmem:[%s246 + $0x580] sm:$0xff]
      %v433 = vld [vmem:[%s246 + $0x588] sm:$0xff]
      %v434 = vld [vmem:[%s246 + $0x590] sm:$0xff]
      %v435 = vld [vmem:[%s246 + $0x598] sm:$0xff]
      %v436 = vld [vmem:[%s246 + $0x5a0] sm:$0xf]
      %v437 = vld [vmem:[%s246 + $0x5a8] sm:$0xf]
      %v438 = vld [vmem:[%s246 + $0x5b0] sm:$0xf]
      %v439 = vld [vmem:[%s246 + $0x5b8] sm:$0xf]
      %v440 = vld [vmem:[%s246 + $0x5c0] sm:$0xf]
      %v441 = vld [vmem:[%s246 + $0x5c8] sm:$0xf]
      %v442 = vld [vmem:[%s246 + $0x5d0] sm:$0xf]
      %v443 = vld [vmem:[%s246 + $0x5d8] sm:$0xf]
      %v444 = vld [vmem:[%s246 + $0x5e0] sm:$0xf]
      %v445 = vld [vmem:[%s246 + $0x5e8] sm:$0xf]
      %v446 = vld [vmem:[%s246 + $0x5f0] sm:$0xf]
      %v447 = vld [vmem:[%s246 + $0x5f8] sm:$0xf]
      %v448 = vld [vmem:[%s246 + $0x600] sm:$0xf]
      %v449 = vld [vmem:[%s246 + $0x608] sm:$0xf]
      %v450 = vld [vmem:[%s246 + $0x610] sm:$0xf]
      %v451 = vld [vmem:[%s3] sm:$0xff]
      %v452 = vld [vmem:[%s3 + $0x8] sm:$0xff]
      %v453 = vld [vmem:[%s3 + $0x10] sm:$0xff]
      %v454 = vld [vmem:[%s3 + $0x18] sm:$0xff]
      %456 = vset.pattern.permute.xlu0 0
      %457 = vperm.xlu0 %456, %v451
      %v458 = vpop.permute.xlu0 %457
      %461 = vset.pattern.permute.xlu0 0
      %462 = vperm.xlu0 %461, %v452
      %v463 = vpop.permute.xlu0 %462
      %466 = vset.pattern.permute.xlu0 0
      %467 = vperm.xlu0 %466, %v453
      %v468 = vpop.permute.xlu0 %467
      %471 = vset.pattern.permute.xlu0 0
      %472 = vperm.xlu0 %471, %v454
      %v473 = vpop.permute.xlu0 %472
      %vm475 = vcmask 818176
      %v477 = vsel %vm475, %v252, 0
      %v480 = vsel %vm475, %v253, 0
      %v483 = vsel %vm475, %v254, 0
      %v486 = vsel %vm475, %v255, 0
      %vm488 = vcmask 1043456
      %v490 = vsel %vm488, %v436, 0
      %v493 = vsel %vm488, %v437, 0
      %v496 = vsel %vm488, %v438, 0
      %v499 = vsel %vm488, %v439, 0
      %v502 = vsel %vm488, %v440, 0
      %v505 = vsel %vm488, %v441, 0
      %v508 = vsel %vm488, %v442, 0
      %v511 = vsel %vm488, %v443, 0
      %v514 = vsel %vm488, %v444, 0
      %v517 = vsel %vm488, %v445, 0
      %v520 = vsel %vm488, %v446, 0
      %v523 = vsel %vm488, %v447, 0
      %v526 = vsel %vm488, %v448, 0
      %v529 = vsel %vm488, %v449, 0
      %v532 = vsel %vm488, %v450, 0
      %534 = vmatprep.subr.mxu0 0.0
      %535 = vmatpush1.msra.mxu0 0.0
      %536 = vmatprep.subr.mxu0 0.0
      %537 = vmatpush1.msra.mxu0 0.0
      %538 = vmatprep.subr.mxu0 0.0
      %539 = vmatpush1.msra.mxu0 0.0
      %540 = vmatprep.subr.mxu0 %v493
      %541 = vmatpush1.msra.mxu0 %v490
      %542 = vmatprep.subr.mxu0 %v422
      %543 = vmatpush1.msra.mxu0 %v421
      %544 = vmatprep.subr.mxu0 %v407
      %545 = vmatpush1.msra.mxu0 %v406
      %546 = vmatprep.subr.mxu0 %v392
      %547 = vmatpush1.msra.mxu0 %v391
      %548 = vmatprep.subr.mxu0 %v377
      %549 = vmatpush1.msra.mxu0 %v376
      %550 = vmatprep.subr.mxu0 %v362
      %551 = vmatpush1.msra.mxu0 %v361
      %552 = vmatprep.subr.mxu0 %v347
      %553 = vmatpush1.msra.mxu0 %v346
      %554 = vmatprep.subr.mxu0 %v332
      %555 = vmatpush1.msra.mxu0 %v331
      %556 = vmatprep.subr.mxu0 %v317
      %557 = vmatpush1.msra.mxu0 %v316
      %558 = vmatprep.subr.mxu0 %v302
      %559 = vmatpush1.msra.mxu0 %v301
      %560 = vmatprep.subr.mxu0 %v287
      %561 = vmatpush1.msra.mxu0 %v286
      %562 = vmatprep.subr.mxu0 %v272
      %563 = vmatpush1.msra.mxu0 %v271
      %564 = vmatprep.subr.mxu0 %v257
      %565 = vmatpush1.msra.mxu0 %v256
      %566 = vmatprep.subr.mxu0 0.0
      %567 = vmatpush2.msra.mxu0 0.0
      %568 = vmatprep.subr.mxu0 0.0
      %569 = vmatpush2.msra.mxu0 0.0
      %570 = vmatprep.subr.mxu0 0.0
      %571 = vmatpush2.msra.mxu0 0.0
      %572 = vmatprep.subr.mxu0 0.0
      %573 = vmatpush2.msra.mxu0 0.0
      %574 = vmatprep.subr.mxu0 0.0
      %575 = vmatpush2.msra.mxu0 0.0
      %576 = vmatprep.subr.mxu0 0.0
      %577 = vmatpush2.msra.mxu0 0.0
      %578 = vmatprep.subr.mxu0 0.0
      %579 = vmatpush2.msra.mxu0 0.0
      %580 = vmatprep.subr.mxu0 0.0
      %581 = vmatpush2.msra.mxu0 0.0
      %582 = vmatprep.subr.mxu0 0.0
      %583 = vmatpush2.msra.mxu0 0.0
      %584 = vmatprep.subr.mxu0 0.0
      %585 = vmatpush2.msra.mxu0 0.0
      %586 = vmatprep.subr.mxu0 0.0
      %587 = vmatpush2.msra.mxu0 0.0
      %588 = vmatprep.subr.mxu0 0.0
      %589 = vmatpush2.msra.mxu0 0.0
      %590 = vmatprep.subr.mxu0 0.0
      %591 = vmatpush2.msra.mxu0 0.0
      %592 = vmatprep.subr.mxu0 0.0
      %593 = vmatpush2.msra.mxu0 0.0
      %594 = vmatprep.subr.mxu0 0.0
      %595 = vmatpush2.msra.mxu0 0.0
      %596 = vmatprep.subr.mxu0 0.0
      %597 = vmatpush2.msra.mxu0 0.0
      %598 = vmatprep.mubr.f32.mxu0 0.0
      %599 = vmatmul.mubr.f32.gmra.mxu0 %v477
      %v600 = vpop.f32.mrf.mxu0
      %v601 = vadd.f32 %v458, %v600
      %v602 = vpop.f32.mrf.mxu0
      %v603 = vadd.f32 %v458, %v602
      %604 = vmatprep.mubr.f32.mxu0 0.0
      %605 = vmatmul.mubr.f32.gmra.mxu0 %v480
      %v606 = vpop.f32.mrf.mxu0
      %v607 = vadd.f32 %v463, %v606
      %v608 = vpop.f32.mrf.mxu0
      %v609 = vadd.f32 %v463, %v608
      %610 = vmatprep.mubr.f32.mxu0 0.0
      %611 = vmatmul.mubr.f32.gmra.mxu0 %v483
      %v612 = vpop.f32.mrf.mxu0
      %v613 = vadd.f32 %v468, %v612
      %v614 = vpop.f32.mrf.mxu0
      %v615 = vadd.f32 %v468, %v614
      %616 = vmatprep.mubr.f32.mxu0 0.0
      %617 = vmatmul.mubr.f32.gmra.mxu0 %v486
      %v618 = vpop.f32.mrf.mxu0
      %v619 = vadd.f32 %v473, %v618
      %v620 = vpop.f32.mrf.mxu0
      %v621 = vadd.f32 %v473, %v620
      %622 = vdwg.mxu0
      %623 = vmatprep.subr.mxu0 0.0
      %624 = vmatpush1.msra.mxu0 0.0
      %625 = vmatprep.subr.mxu0 0.0
      %626 = vmatpush1.msra.mxu0 0.0
      %627 = vmatprep.subr.mxu0 0.0
      %628 = vmatpush1.msra.mxu0 0.0
      %629 = vmatprep.subr.mxu0 %v499
      %630 = vmatpush1.msra.mxu0 %v496
      %631 = vmatprep.subr.mxu0 %v424
      %632 = vmatpush1.msra.mxu0 %v423
      %633 = vmatprep.subr.mxu0 %v409
      %634 = vmatpush1.msra.mxu0 %v408
      %635 = vmatprep.subr.mxu0 %v394
      %636 = vmatpush1.msra.mxu0 %v393
      %637 = vmatprep.subr.mxu0 %v379
      %638 = vmatpush1.msra.mxu0 %v378
      %639 = vmatprep.subr.mxu0 %v364
      %640 = vmatpush1.msra.mxu0 %v363
      %641 = vmatprep.subr.mxu0 %v349
      %642 = vmatpush1.msra.mxu0 %v348
      %643 = vmatprep.subr.mxu0 %v334
      %644 = vmatpush1.msra.mxu0 %v333
      %645 = vmatprep.subr.mxu0 %v319
      %646 = vmatpush1.msra.mxu0 %v318
      %647 = vmatprep.subr.mxu0 %v304
      %648 = vmatpush1.msra.mxu0 %v303
      %649 = vmatprep.subr.mxu0 %v289
      %650 = vmatpush1.msra.mxu0 %v288
      %651 = vmatprep.subr.mxu0 %v274
      %652 = vmatpush1.msra.mxu0 %v273
      %653 = vmatprep.subr.mxu0 %v259
      %654 = vmatpush1.msra.mxu0 %v258
      %655 = vmatprep.subr.mxu0 0.0
      %656 = vmatpush2.msra.mxu0 0.0
      %657 = vmatprep.subr.mxu0 0.0
      %658 = vmatpush2.msra.mxu0 0.0
      %659 = vmatprep.subr.mxu0 0.0
      %660 = vmatpush2.msra.mxu0 0.0
      %661 = vmatprep.subr.mxu0 0.0
      %662 = vmatpush2.msra.mxu0 0.0
      %663 = vmatprep.subr.mxu0 0.0
      %664 = vmatpush2.msra.mxu0 0.0
      %665 = vmatprep.subr.mxu0 0.0
      %666 = vmatpush2.msra.mxu0 0.0
      %667 = vmatprep.subr.mxu0 0.0
      %668 = vmatpush2.msra.mxu0 0.0
      %669 = vmatprep.subr.mxu0 0.0
      %670 = vmatpush2.msra.mxu0 0.0
      %671 = vmatprep.subr.mxu0 0.0
      %672 = vmatpush2.msra.mxu0 0.0
      %673 = vmatprep.subr.mxu0 0.0
      %674 = vmatpush2.msra.mxu0 0.0
      %675 = vmatprep.subr.mxu0 0.0
      %676 = vmatpush2.msra.mxu0 0.0
      %677 = vmatprep.subr.mxu0 0.0
      %678 = vmatpush2.msra.mxu0 0.0
      %679 = vmatprep.subr.mxu0 0.0
      %680 = vmatpush2.msra.mxu0 0.0
      %681 = vmatprep.subr.mxu0 0.0
      %682 = vmatpush2.msra.mxu0 0.0
      %683 = vmatprep.subr.mxu0 0.0
      %684 = vmatpush2.msra.mxu0 0.0
      %685 = vmatprep.subr.mxu0 0.0
      %686 = vmatpush2.msra.mxu0 0.0
      %687 = vmatprep.mubr.f32.mxu0 0.0
      %688 = vmatmul.mubr.f32.gmra.mxu0 %v477
      %v689 = vpop.f32.mrf.mxu0
      %v690 = vadd.f32 %v458, %v689
      %v691 = vpop.f32.mrf.mxu0
      %v692 = vadd.f32 %v458, %v691
      %693 = vmatprep.mubr.f32.mxu0 0.0
      %694 = vmatmul.mubr.f32.gmra.mxu0 %v480
      %v695 = vpop.f32.mrf.mxu0
      %v696 = vadd.f32 %v463, %v695
      %v697 = vpop.f32.mrf.mxu0
      %v698 = vadd.f32 %v463, %v697
      %699 = vmatprep.mubr.f32.mxu0 0.0
      %700 = vmatmul.mubr.f32.gmra.mxu0 %v483
      %v701 = vpop.f32.mrf.mxu0
      %v702 = vadd.f32 %v468, %v701
      %v703 = vpop.f32.mrf.mxu0
      %v704 = vadd.f32 %v468, %v703
      %705 = vmatprep.mubr.f32.mxu0 0.0
      %706 = vmatmul.mubr.f32.gmra.mxu0 %v486
      %v707 = vpop.f32.mrf.mxu0
      %v708 = vadd.f32 %v473, %v707
      %v709 = vpop.f32.mrf.mxu0
      %v710 = vadd.f32 %v473, %v709
      %711 = vdwg.mxu0
      %712 = vmatprep.subr.mxu0 0.0
      %713 = vmatpush1.msra.mxu0 0.0
      %714 = vmatprep.subr.mxu0 0.0
      %715 = vmatpush1.msra.mxu0 0.0
      %716 = vmatprep.subr.mxu0 0.0
      %717 = vmatpush1.msra.mxu0 0.0
      %718 = vmatprep.subr.mxu0 %v505
      %719 = vmatpush1.msra.mxu0 %v502
      %720 = vmatprep.subr.mxu0 %v426
      %721 = vmatpush1.msra.mxu0 %v425
      %722 = vmatprep.subr.mxu0 %v411
      %723 = vmatpush1.msra.mxu0 %v410
      %724 = vmatprep.subr.mxu0 %v396
      %725 = vmatpush1.msra.mxu0 %v395
      %726 = vmatprep.subr.mxu0 %v381
      %727 = vmatpush1.msra.mxu0 %v380
      %728 = vmatprep.subr.mxu0 %v366
      %729 = vmatpush1.msra.mxu0 %v365
      %730 = vmatprep.subr.mxu0 %v351
      %731 = vmatpush1.msra.mxu0 %v350
      %732 = vmatprep.subr.mxu0 %v336
      %733 = vmatpush1.msra.mxu0 %v335
      %734 = vmatprep.subr.mxu0 %v321
      %735 = vmatpush1.msra.mxu0 %v320
      %736 = vmatprep.subr.mxu0 %v306
      %737 = vmatpush1.msra.mxu0 %v305
      %738 = vmatprep.subr.mxu0 %v291
      %739 = vmatpush1.msra.mxu0 %v290
      %740 = vmatprep.subr.mxu0 %v276
      %741 = vmatpush1.msra.mxu0 %v275
      %742 = vmatprep.subr.mxu0 %v261
      %743 = vmatpush1.msra.mxu0 %v260
      %744 = vmatprep.subr.mxu0 0.0
      %745 = vmatpush2.msra.mxu0 0.0
      %746 = vmatprep.subr.mxu0 0.0
      %747 = vmatpush2.msra.mxu0 0.0
      %748 = vmatprep.subr.mxu0 0.0
      %749 = vmatpush2.msra.mxu0 0.0
      %750 = vmatprep.subr.mxu0 0.0
      %751 = vmatpush2.msra.mxu0 0.0
      %752 = vmatprep.subr.mxu0 0.0
      %753 = vmatpush2.msra.mxu0 0.0
      %754 = vmatprep.subr.mxu0 0.0
      %755 = vmatpush2.msra.mxu0 0.0
      %756 = vmatprep.subr.mxu0 0.0
      %757 = vmatpush2.msra.mxu0 0.0
      %758 = vmatprep.subr.mxu0 0.0
      %759 = vmatpush2.msra.mxu0 0.0
      %760 = vmatprep.subr.mxu0 0.0
      %761 = vmatpush2.msra.mxu0 0.0
      %762 = vmatprep.subr.mxu0 0.0
      %763 = vmatpush2.msra.mxu0 0.0
      %764 = vmatprep.subr.mxu0 0.0
      %765 = vmatpush2.msra.mxu0 0.0
      %766 = vmatprep.subr.mxu0 0.0
      %767 = vmatpush2.msra.mxu0 0.0
      %768 = vmatprep.subr.mxu0 0.0
      %769 = vmatpush2.msra.mxu0 0.0
      %770 = vmatprep.subr.mxu0 0.0
      %771 = vmatpush2.msra.mxu0 0.0
      %772 = vmatprep.subr.mxu0 0.0
      %773 = vmatpush2.msra.mxu0 0.0
      %774 = vmatprep.subr.mxu0 0.0
      %775 = vmatpush2.msra.mxu0 0.0
      %776 = vmatprep.mubr.f32.mxu0 0.0
      %777 = vmatmul.mubr.f32.gmra.mxu0 %v477
      %v778 = vpop.f32.mrf.mxu0
      %v779 = vadd.f32 %v458, %v778
      %v780 = vpop.f32.mrf.mxu0
      %v781 = vadd.f32 %v458, %v780
      %782 = vmatprep.mubr.f32.mxu0 0.0
      %783 = vmatmul.mubr.f32.gmra.mxu0 %v480
      %v784 = vpop.f32.mrf.mxu0
      %v785 = vadd.f32 %v463, %v784
      %v786 = vpop.f32.mrf.mxu0
      %v787 = vadd.f32 %v463, %v786
      %788 = vmatprep.mubr.f32.mxu0 0.0
      %789 = vmatmul.mubr.f32.gmra.mxu0 %v483
      %v790 = vpop.f32.mrf.mxu0
      %v791 = vadd.f32 %v468, %v790
      %v792 = vpop.f32.mrf.mxu0
      %v793 = vadd.f32 %v468, %v792
      %794 = vmatprep.mubr.f32.mxu0 0.0
      %795 = vmatmul.mubr.f32.gmra.mxu0 %v486
      %v796 = vpop.f32.mrf.mxu0
      %v797 = vadd.f32 %v473, %v796
      %v798 = vpop.f32.mrf.mxu0
      %v799 = vadd.f32 %v473, %v798
      %800 = vdwg.mxu0
      %801 = vmatprep.subr.mxu0 0.0
      %802 = vmatpush1.msra.mxu0 0.0
      %803 = vmatprep.subr.mxu0 0.0
      %804 = vmatpush1.msra.mxu0 0.0
      %805 = vmatprep.subr.mxu0 0.0
      %806 = vmatpush1.msra.mxu0 0.0
      %807 = vmatprep.subr.mxu0 %v511
      %808 = vmatpush1.msra.mxu0 %v508
      %809 = vmatprep.subr.mxu0 %v428
      %810 = vmatpush1.msra.mxu0 %v427
      %811 = vmatprep.subr.mxu0 %v413
      %812 = vmatpush1.msra.mxu0 %v412
      %813 = vmatprep.subr.mxu0 %v398
      %814 = vmatpush1.msra.mxu0 %v397
      %815 = vmatprep.subr.mxu0 %v383
      %816 = vmatpush1.msra.mxu0 %v382
      %817 = vmatprep.subr.mxu0 %v368
      %818 = vmatpush1.msra.mxu0 %v367
      %819 = vmatprep.subr.mxu0 %v353
      %820 = vmatpush1.msra.mxu0 %v352
      %821 = vmatprep.subr.mxu0 %v338
      %822 = vmatpush1.msra.mxu0 %v337
      %823 = vmatprep.subr.mxu0 %v323
      %824 = vmatpush1.msra.mxu0 %v322
      %825 = vmatprep.subr.mxu0 %v308
      %826 = vmatpush1.msra.mxu0 %v307
      %827 = vmatprep.subr.mxu0 %v293
      %828 = vmatpush1.msra.mxu0 %v292
      %829 = vmatprep.subr.mxu0 %v278
      %830 = vmatpush1.msra.mxu0 %v277
      %831 = vmatprep.subr.mxu0 %v263
      %832 = vmatpush1.msra.mxu0 %v262
      %833 = vmatprep.subr.mxu0 0.0
      %834 = vmatpush2.msra.mxu0 0.0
      %835 = vmatprep.subr.mxu0 0.0
      %836 = vmatpush2.msra.mxu0 0.0
      %837 = vmatprep.subr.mxu0 0.0
      %838 = vmatpush2.msra.mxu0 0.0
      %839 = vmatprep.subr.mxu0 0.0
      %840 = vmatpush2.msra.mxu0 0.0
      %841 = vmatprep.subr.mxu0 0.0
      %842 = vmatpush2.msra.mxu0 0.0
      %843 = vmatprep.subr.mxu0 0.0
      %844 = vmatpush2.msra.mxu0 0.0
      %845 = vmatprep.subr.mxu0 0.0
      %846 = vmatpush2.msra.mxu0 0.0
      %847 = vmatprep.subr.mxu0 0.0
      %848 = vmatpush2.msra.mxu0 0.0
      %849 = vmatprep.subr.mxu0 0.0
      %850 = vmatpush2.msra.mxu0 0.0
      %851 = vmatprep.subr.mxu0 0.0
      %852 = vmatpush2.msra.mxu0 0.0
      %853 = vmatprep.subr.mxu0 0.0
      %854 = vmatpush2.msra.mxu0 0.0
      %855 = vmatprep.subr.mxu0 0.0
      %856 = vmatpush2.msra.mxu0 0.0
      %857 = vmatprep.subr.mxu0 0.0
      %858 = vmatpush2.msra.mxu0 0.0
      %859 = vmatprep.subr.mxu0 0.0
      %860 = vmatpush2.msra.mxu0 0.0
      %861 = vmatprep.subr.mxu0 0.0
      %862 = vmatpush2.msra.mxu0 0.0
      %863 = vmatprep.subr.mxu0 0.0
      %864 = vmatpush2.msra.mxu0 0.0
      %865 = vmatprep.mubr.f32.mxu0 0.0
      %866 = vmatmul.mubr.f32.gmra.mxu0 %v477
      %v867 = vpop.f32.mrf.mxu0
      %v868 = vadd.f32 %v458, %v867
      %v869 = vpop.f32.mrf.mxu0
      %v870 = vadd.f32 %v458, %v869
      %871 = vmatprep.mubr.f32.mxu0 0.0
      %872 = vmatmul.mubr.f32.gmra.mxu0 %v480
      %v873 = vpop.f32.mrf.mxu0
      %v874 = vadd.f32 %v463, %v873
      %v875 = vpop.f32.mrf.mxu0
      %v876 = vadd.f32 %v463, %v875
      %877 = vmatprep.mubr.f32.mxu0 0.0
      %878 = vmatmul.mubr.f32.gmra.mxu0 %v483
      %v879 = vpop.f32.mrf.mxu0
      %v880 = vadd.f32 %v468, %v879
      %v881 = vpop.f32.mrf.mxu0
      %v882 = vadd.f32 %v468, %v881
      %883 = vmatprep.mubr.f32.mxu0 0.0
      %884 = vmatmul.mubr.f32.gmra.mxu0 %v486
      %v885 = vpop.f32.mrf.mxu0
      %v886 = vadd.f32 %v473, %v885
      %v887 = vpop.f32.mrf.mxu0
      %v888 = vadd.f32 %v473, %v887
      %889 = vdwg.mxu0
      %890 = vmatprep.subr.mxu0 0.0
      %891 = vmatpush1.msra.mxu0 0.0
      %892 = vmatprep.subr.mxu0 0.0
      %893 = vmatpush1.msra.mxu0 0.0
      %894 = vmatprep.subr.mxu0 0.0
      %895 = vmatpush1.msra.mxu0 0.0
      %896 = vmatprep.subr.mxu0 %v517
      %897 = vmatpush1.msra.mxu0 %v514
      %898 = vmatprep.subr.mxu0 %v430
      %899 = vmatpush1.msra.mxu0 %v429
      %900 = vmatprep.subr.mxu0 %v415
      %901 = vmatpush1.msra.mxu0 %v414
      %902 = vmatprep.subr.mxu0 %v400
      %903 = vmatpush1.msra.mxu0 %v399
      %904 = vmatprep.subr.mxu0 %v385
      %905 = vmatpush1.msra.mxu0 %v384
      %906 = vmatprep.subr.mxu0 %v370
      %907 = vmatpush1.msra.mxu0 %v369
      %908 = vmatprep.subr.mxu0 %v355
      %909 = vmatpush1.msra.mxu0 %v354
      %910 = vmatprep.subr.mxu0 %v340
      %911 = vmatpush1.msra.mxu0 %v339
      %912 = vmatprep.subr.mxu0 %v325
      %913 = vmatpush1.msra.mxu0 %v324
      %914 = vmatprep.subr.mxu0 %v310
      %915 = vmatpush1.msra.mxu0 %v309
      %916 = vmatprep.subr.mxu0 %v295
      %917 = vmatpush1.msra.mxu0 %v294
      %918 = vmatprep.subr.mxu0 %v280
      %919 = vmatpush1.msra.mxu0 %v279
      %920 = vmatprep.subr.mxu0 %v265
      %921 = vmatpush1.msra.mxu0 %v264
      %922 = vmatprep.subr.mxu0 0.0
      %923 = vmatpush2.msra.mxu0 0.0
      %924 = vmatprep.subr.mxu0 0.0
      %925 = vmatpush2.msra.mxu0 0.0
      %926 = vmatprep.subr.mxu0 0.0
      %927 = vmatpush2.msra.mxu0 0.0
      %928 = vmatprep.subr.mxu0 0.0
      %929 = vmatpush2.msra.mxu0 0.0
      %930 = vmatprep.subr.mxu0 0.0
      %931 = vmatpush2.msra.mxu0 0.0
      %932 = vmatprep.subr.mxu0 0.0
      %933 = vmatpush2.msra.mxu0 0.0
      %934 = vmatprep.subr.mxu0 0.0
      %935 = vmatpush2.msra.mxu0 0.0
      %936 = vmatprep.subr.mxu0 0.0
      %937 = vmatpush2.msra.mxu0 0.0
      %938 = vmatprep.subr.mxu0 0.0
      %939 = vmatpush2.msra.mxu0 0.0
      %940 = vmatprep.subr.mxu0 0.0
      %941 = vmatpush2.msra.mxu0 0.0
      %942 = vmatprep.subr.mxu0 0.0
      %943 = vmatpush2.msra.mxu0 0.0
      %944 = vmatprep.subr.mxu0 0.0
      %945 = vmatpush2.msra.mxu0 0.0
      %946 = vmatprep.subr.mxu0 0.0
      %947 = vmatpush2.msra.mxu0 0.0
      %948 = vmatprep.subr.mxu0 0.0
      %949 = vmatpush2.msra.mxu0 0.0
      %950 = vmatprep.subr.mxu0 0.0
      %951 = vmatpush2.msra.mxu0 0.0
      %952 = vmatprep.subr.mxu0 0.0
      %953 = vmatpush2.msra.mxu0 0.0
      %954 = vmatprep.mubr.f32.mxu0 0.0
      %955 = vmatmul.mubr.f32.gmra.mxu0 %v477
      %v956 = vpop.f32.mrf.mxu0
      %v957 = vadd.f32 %v458, %v956
      %v958 = vpop.f32.mrf.mxu0
      %v959 = vadd.f32 %v458, %v958
      %960 = vmatprep.mubr.f32.mxu0 0.0
      %961 = vmatmul.mubr.f32.gmra.mxu0 %v480
      %v962 = vpop.f32.mrf.mxu0
      %v963 = vadd.f32 %v463, %v962
      %v964 = vpop.f32.mrf.mxu0
      %v965 = vadd.f32 %v463, %v964
      %966 = vmatprep.mubr.f32.mxu0 0.0
      %967 = vmatmul.mubr.f32.gmra.mxu0 %v483
      %v968 = vpop.f32.mrf.mxu0
      %v969 = vadd.f32 %v468, %v968
      %v970 = vpop.f32.mrf.mxu0
      %v971 = vadd.f32 %v468, %v970
      %972 = vmatprep.mubr.f32.mxu0 0.0
      %973 = vmatmul.mubr.f32.gmra.mxu0 %v486
      %v974 = vpop.f32.mrf.mxu0
      %v975 = vadd.f32 %v473, %v974
      %v976 = vpop.f32.mrf.mxu0
      %v977 = vadd.f32 %v473, %v976
      %978 = vdwg.mxu0
      %979 = vmatprep.subr.mxu0 0.0
      %980 = vmatpush1.msra.mxu0 0.0
      %981 = vmatprep.subr.mxu0 0.0
      %982 = vmatpush1.msra.mxu0 0.0
      %983 = vmatprep.subr.mxu0 0.0
      %984 = vmatpush1.msra.mxu0 0.0
      %985 = vmatprep.subr.mxu0 %v523
      %986 = vmatpush1.msra.mxu0 %v520
      %987 = vmatprep.subr.mxu0 %v432
      %988 = vmatpush1.msra.mxu0 %v431
      %989 = vmatprep.subr.mxu0 %v417
      %990 = vmatpush1.msra.mxu0 %v416
      %991 = vmatprep.subr.mxu0 %v402
      %992 = vmatpush1.msra.mxu0 %v401
      %993 = vmatprep.subr.mxu0 %v387
      %994 = vmatpush1.msra.mxu0 %v386
      %995 = vmatprep.subr.mxu0 %v372
      %996 = vmatpush1.msra.mxu0 %v371
      %997 = vmatprep.subr.mxu0 %v357
      %998 = vmatpush1.msra.mxu0 %v356
      %999 = vmatprep.subr.mxu0 %v342
      %1000 = vmatpush1.msra.mxu0 %v341
      %1001 = vmatprep.subr.mxu0 %v327
      %1002 = vmatpush1.msra.mxu0 %v326
      %1003 = vmatprep.subr.mxu0 %v312
      %1004 = vmatpush1.msra.mxu0 %v311
      %1005 = vmatprep.subr.mxu0 %v297
      %1006 = vmatpush1.msra.mxu0 %v296
      %1007 = vmatprep.subr.mxu0 %v282
      %1008 = vmatpush1.msra.mxu0 %v281
      %1009 = vmatprep.subr.mxu0 %v267
      %1010 = vmatpush1.msra.mxu0 %v266
      %1011 = vmatprep.subr.mxu0 0.0
      %1012 = vmatpush2.msra.mxu0 0.0
      %1013 = vmatprep.subr.mxu0 0.0
      %1014 = vmatpush2.msra.mxu0 0.0
      %1015 = vmatprep.subr.mxu0 0.0
      %1016 = vmatpush2.msra.mxu0 0.0
      %1017 = vmatprep.subr.mxu0 0.0
      %1018 = vmatpush2.msra.mxu0 0.0
      %1019 = vmatprep.subr.mxu0 0.0
      %1020 = vmatpush2.msra.mxu0 0.0
      %1021 = vmatprep.subr.mxu0 0.0
      %1022 = vmatpush2.msra.mxu0 0.0
      %1023 = vmatprep.subr.mxu0 0.0
      %1024 = vmatpush2.msra.mxu0 0.0
      %1025 = vmatprep.subr.mxu0 0.0
      %1026 = vmatpush2.msra.mxu0 0.0
      %1027 = vmatprep.subr.mxu0 0.0
      %1028 = vmatpush2.msra.mxu0 0.0
      %1029 = vmatprep.subr.mxu0 0.0
      %1030 = vmatpush2.msra.mxu0 0.0
      %1031 = vmatprep.subr.mxu0 0.0
      %1032 = vmatpush2.msra.mxu0 0.0
      %1033 = vmatprep.subr.mxu0 0.0
      %1034 = vmatpush2.msra.mxu0 0.0
      %1035 = vmatprep.subr.mxu0 0.0
      %1036 = vmatpush2.msra.mxu0 0.0
      %1037 = vmatprep.subr.mxu0 0.0
      %1038 = vmatpush2.msra.mxu0 0.0
      %1039 = vmatprep.subr.mxu0 0.0
      %1040 = vmatpush2.msra.mxu0 0.0
      %1041 = vmatprep.subr.mxu0 0.0
      %1042 = vmatpush2.msra.mxu0 0.0
      %1043 = vmatprep.mubr.f32.mxu0 0.0
      %1044 = vmatmul.mubr.f32.gmra.mxu0 %v477
      %v1045 = vpop.f32.mrf.mxu0
      %v1046 = vadd.f32 %v458, %v1045
      %v1047 = vpop.f32.mrf.mxu0
      %v1048 = vadd.f32 %v458, %v1047
      %1049 = vmatprep.mubr.f32.mxu0 0.0
      %1050 = vmatmul.mubr.f32.gmra.mxu0 %v480
      %v1051 = vpop.f32.mrf.mxu0
      %v1052 = vadd.f32 %v463, %v1051
      %v1053 = vpop.f32.mrf.mxu0
      %v1054 = vadd.f32 %v463, %v1053
      %1055 = vmatprep.mubr.f32.mxu0 0.0
      %1056 = vmatmul.mubr.f32.gmra.mxu0 %v483
      %v1057 = vpop.f32.mrf.mxu0
      %v1058 = vadd.f32 %v468, %v1057
      %v1059 = vpop.f32.mrf.mxu0
      %v1060 = vadd.f32 %v468, %v1059
      %1061 = vmatprep.mubr.f32.mxu0 0.0
      %1062 = vmatmul.mubr.f32.gmra.mxu0 %v486
      %v1063 = vpop.f32.mrf.mxu0
      %v1064 = vadd.f32 %v473, %v1063
      %v1065 = vpop.f32.mrf.mxu0
      %v1066 = vadd.f32 %v473, %v1065
      %1067 = vdwg.mxu0
      %1068 = vmatprep.subr.mxu0 0.0
      %1069 = vmatpush1.msra.mxu0 0.0
      %1070 = vmatprep.subr.mxu0 0.0
      %1071 = vmatpush1.msra.mxu0 0.0
      %1072 = vmatprep.subr.mxu0 0.0
      %1073 = vmatpush1.msra.mxu0 0.0
      %1074 = vmatprep.subr.mxu0 %v529
      %1075 = vmatpush1.msra.mxu0 %v526
      %1076 = vmatprep.subr.mxu0 %v434
      %1077 = vmatpush1.msra.mxu0 %v433
      %1078 = vmatprep.subr.mxu0 %v419
      %1079 = vmatpush1.msra.mxu0 %v418
      %1080 = vmatprep.subr.mxu0 %v404
      %1081 = vmatpush1.msra.mxu0 %v403
      %1082 = vmatprep.subr.mxu0 %v389
      %1083 = vmatpush1.msra.mxu0 %v388
      %1084 = vmatprep.subr.mxu0 %v374
      %1085 = vmatpush1.msra.mxu0 %v373
      %1086 = vmatprep.subr.mxu0 %v359
      %1087 = vmatpush1.msra.mxu0 %v358
      %1088 = vmatprep.subr.mxu0 %v344
      %1089 = vmatpush1.msra.mxu0 %v343
      %1090 = vmatprep.subr.mxu0 %v329
      %1091 = vmatpush1.msra.mxu0 %v328
      %1092 = vmatprep.subr.mxu0 %v314
      %1093 = vmatpush1.msra.mxu0 %v313
      %1094 = vmatprep.subr.mxu0 %v299
      %1095 = vmatpush1.msra.mxu0 %v298
      %1096 = vmatprep.subr.mxu0 %v284
      %1097 = vmatpush1.msra.mxu0 %v283
      %1098 = vmatprep.subr.mxu0 %v269
      %1099 = vmatpush1.msra.mxu0 %v268
      %1100 = vmatprep.subr.mxu0 0.0
      %1101 = vmatpush2.msra.mxu0 0.0
      %1102 = vmatprep.subr.mxu0 0.0
      %1103 = vmatpush2.msra.mxu0 0.0
      %1104 = vmatprep.subr.mxu0 0.0
      %1105 = vmatpush2.msra.mxu0 0.0
      %1106 = vmatprep.subr.mxu0 0.0
      %1107 = vmatpush2.msra.mxu0 0.0
      %1108 = vmatprep.subr.mxu0 0.0
      %1109 = vmatpush2.msra.mxu0 0.0
      %1110 = vmatprep.subr.mxu0 0.0
      %1111 = vmatpush2.msra.mxu0 0.0
      %1112 = vmatprep.subr.mxu0 0.0
      %1113 = vmatpush2.msra.mxu0 0.0
      %1114 = vmatprep.subr.mxu0 0.0
      %1115 = vmatpush2.msra.mxu0 0.0
      %1116 = vmatprep.subr.mxu0 0.0
      %1117 = vmatpush2.msra.mxu0 0.0
      %1118 = vmatprep.subr.mxu0 0.0
      %1119 = vmatpush2.msra.mxu0 0.0
      %1120 = vmatprep.subr.mxu0 0.0
      %1121 = vmatpush2.msra.mxu0 0.0
      %1122 = vmatprep.subr.mxu0 0.0
      %1123 = vmatpush2.msra.mxu0 0.0
      %1124 = vmatprep.subr.mxu0 0.0
      %1125 = vmatpush2.msra.mxu0 0.0
      %1126 = vmatprep.subr.mxu0 0.0
      %1127 = vmatpush2.msra.mxu0 0.0
      %1128 = vmatprep.subr.mxu0 0.0
      %1129 = vmatpush2.msra.mxu0 0.0
      %1130 = vmatprep.subr.mxu0 0.0
      %1131 = vmatpush2.msra.mxu0 0.0
      %1132 = vmatprep.mubr.f32.mxu0 0.0
      %1133 = vmatmul.mubr.f32.gmra.mxu0 %v477
      %v1134 = vpop.f32.mrf.mxu0
      %v1135 = vadd.f32 %v458, %v1134
      %v1136 = vpop.f32.mrf.mxu0
      %v1137 = vadd.f32 %v458, %v1136
      %1138 = vmatprep.mubr.f32.mxu0 0.0
      %1139 = vmatmul.mubr.f32.gmra.mxu0 %v480
      %v1140 = vpop.f32.mrf.mxu0
      %v1141 = vadd.f32 %v463, %v1140
      %v1142 = vpop.f32.mrf.mxu0
      %v1143 = vadd.f32 %v463, %v1142
      %1144 = vmatprep.mubr.f32.mxu0 0.0
      %1145 = vmatmul.mubr.f32.gmra.mxu0 %v483
      %v1146 = vpop.f32.mrf.mxu0
      %v1147 = vadd.f32 %v468, %v1146
      %v1148 = vpop.f32.mrf.mxu0
      %v1149 = vadd.f32 %v468, %v1148
      %1150 = vmatprep.mubr.f32.mxu0 0.0
      %1151 = vmatmul.mubr.f32.gmra.mxu0 %v486
      %v1152 = vpop.f32.mrf.mxu0
      %v1153 = vadd.f32 %v473, %v1152
      %v1154 = vpop.f32.mrf.mxu0
      %v1155 = vadd.f32 %v473, %v1154
      %1156 = vdwg.mxu0
      %1157 = vmatprep.subr.mxu0 0.0
      %1158 = vmatpush1.msra.mxu0 0.0
      %1159 = vmatprep.subr.mxu0 0.0
      %1160 = vmatpush1.msra.mxu0 0.0
      %1161 = vmatprep.subr.mxu0 0.0
      %1162 = vmatpush1.msra.mxu0 0.0
      %1163 = vmatprep.subr.mxu0 0.0
      %1164 = vmatpush1.msra.mxu0 %v532
      %1165 = vmatprep.subr.mxu0 0.0
      %1166 = vmatpush1.msra.mxu0 %v435
      %1167 = vmatprep.subr.mxu0 0.0
      %1168 = vmatpush1.msra.mxu0 %v420
      %1169 = vmatprep.subr.mxu0 0.0
      %1170 = vmatpush1.msra.mxu0 %v405
      %1171 = vmatprep.subr.mxu0 0.0
      %1172 = vmatpush1.msra.mxu0 %v390
      %1173 = vmatprep.subr.mxu0 0.0
      %1174 = vmatpush1.msra.mxu0 %v375
      %1175 = vmatprep.subr.mxu0 0.0
      %1176 = vmatpush1.msra.mxu0 %v360
      %1177 = vmatprep.subr.mxu0 0.0
      %1178 = vmatpush1.msra.mxu0 %v345
      %1179 = vmatprep.subr.mxu0 0.0
      %1180 = vmatpush1.msra.mxu0 %v330
      %1181 = vmatprep.subr.mxu0 0.0
      %1182 = vmatpush1.msra.mxu0 %v315
      %1183 = vmatprep.subr.mxu0 0.0
      %1184 = vmatpush1.msra.mxu0 %v300
      %1185 = vmatprep.subr.mxu0 0.0
      %1186 = vmatpush1.msra.mxu0 %v285
      %1187 = vmatprep.subr.mxu0 0.0
      %1188 = vmatpush1.msra.mxu0 %v270
      %1189 = vmatprep.subr.mxu0 0.0
      %1190 = vmatpush2.msra.mxu0 0.0
      %1191 = vmatprep.subr.mxu0 0.0
      %1192 = vmatpush2.msra.mxu0 0.0
      %1193 = vmatprep.subr.mxu0 0.0
      %1194 = vmatpush2.msra.mxu0 0.0
      %1195 = vmatprep.subr.mxu0 0.0
      %1196 = vmatpush2.msra.mxu0 0.0
      %1197 = vmatprep.subr.mxu0 0.0
      %1198 = vmatpush2.msra.mxu0 0.0
      %1199 = vmatprep.subr.mxu0 0.0
      %1200 = vmatpush2.msra.mxu0 0.0
      %1201 = vmatprep.subr.mxu0 0.0
      %1202 = vmatpush2.msra.mxu0 0.0
      %1203 = vmatprep.subr.mxu0 0.0
      %1204 = vmatpush2.msra.mxu0 0.0
      %1205 = vmatprep.subr.mxu0 0.0
      %1206 = vmatpush2.msra.mxu0 0.0
      %1207 = vmatprep.subr.mxu0 0.0
      %1208 = vmatpush2.msra.mxu0 0.0
      %1209 = vmatprep.subr.mxu0 0.0
      %1210 = vmatpush2.msra.mxu0 0.0
      %1211 = vmatprep.subr.mxu0 0.0
      %1212 = vmatpush2.msra.mxu0 0.0
      %1213 = vmatprep.subr.mxu0 0.0
      %1214 = vmatpush2.msra.mxu0 0.0
      %1215 = vmatprep.subr.mxu0 0.0
      %1216 = vmatpush2.msra.mxu0 0.0
      %1217 = vmatprep.subr.mxu0 0.0
      %1218 = vmatpush2.msra.mxu0 0.0
      %1219 = vmatprep.subr.mxu0 0.0
      %1220 = vmatpush2.msra.mxu0 0.0
      %1221 = vmatprep.mubr.f32.mxu0 0.0
      %1222 = vmatmul.mubr.f32.gmra.mxu0 %v477
      %v1223 = vpop.f32.mrf.mxu0
      %v1224 = vadd.f32 %v458, %v1223
      %v1225 = vpop.f32.mrf.mxu0
      %1226 = vmatprep.mubr.f32.mxu0 0.0
      %1227 = vmatmul.mubr.f32.gmra.mxu0 %v480
      %v1228 = vpop.f32.mrf.mxu0
      %v1229 = vadd.f32 %v463, %v1228
      %v1230 = vpop.f32.mrf.mxu0
      %1231 = vmatprep.mubr.f32.mxu0 0.0
      %1232 = vmatmul.mubr.f32.gmra.mxu0 %v483
      %v1233 = vpop.f32.mrf.mxu0
      %v1234 = vadd.f32 %v468, %v1233
      %v1235 = vpop.f32.mrf.mxu0
      %1236 = vmatprep.mubr.f32.mxu0 0.0
      %1237 = vmatmul.mubr.f32.gmra.mxu0 %v486
      %v1238 = vpop.f32.mrf.mxu0
      %v1239 = vadd.f32 %v473, %v1238
      %v1240 = vpop.f32.mrf.mxu0
      %1241 = vdwg.mxu0
      %1242 = vst [vmem:[#allocation2] sm:$0xff] %v601
      %1243 = vst [vmem:[#allocation2 + $0x8] sm:$0xff] %v603
      %1244 = vst [vmem:[#allocation2 + $0x10] sm:$0xff] %v690
      %1245 = vst [vmem:[#allocation2 + $0x18] sm:$0xff] %v692
      %1246 = vst [vmem:[#allocation2 + $0x20] sm:$0xff] %v779
      %1247 = vst [vmem:[#allocation2 + $0x28] sm:$0xff] %v781
      %1248 = vst [vmem:[#allocation2 + $0x30] sm:$0xff] %v868
      %1249 = vst [vmem:[#allocation2 + $0x38] sm:$0xff] %v870
      %1250 = vst [vmem:[#allocation2 + $0x40] sm:$0xff] %v957
      %1251 = vst [vmem:[#allocation2 + $0x48] sm:$0xff] %v959
      %1252 = vst [vmem:[#allocation2 + $0x50] sm:$0xff] %v1046
      %1253 = vst [vmem:[#allocation2 + $0x58] sm:$0xff] %v1048
      %1254 = vst [vmem:[#allocation2 + $0x60] sm:$0xff] %v1135
      %1255 = vst [vmem:[#allocation2 + $0x68] sm:$0xff] %v1137
      %1256 = vst [vmem:[#allocation2 + $0x70] sm:$0xff] %v1224
      %1257 = vst [vmem:[#allocation2 + $0x78] sm:$0xff] %v607
      %1258 = vst [vmem:[#allocation2 + $0x80] sm:$0xff] %v609
      %1259 = vst [vmem:[#allocation2 + $0x88] sm:$0xff] %v696
      %1260 = vst [vmem:[#allocation2 + $0x90] sm:$0xff] %v698
      %1261 = vst [vmem:[#allocation2 + $0x98] sm:$0xff] %v785
      %1262 = vst [vmem:[#allocation2 + $0xa0] sm:$0xff] %v787
      %1263 = vst [vmem:[#allocation2 + $0xa8] sm:$0xff] %v874
      %1264 = vst [vmem:[#allocation2 + $0xb0] sm:$0xff] %v876
      %1265 = vst [vmem:[#allocation2 + $0xb8] sm:$0xff] %v963
      %1266 = vst [vmem:[#allocation2 + $0xc0] sm:$0xff] %v965
      %1267 = vst [vmem:[#allocation2 + $0xc8] sm:$0xff] %v1052
      %1268 = vst [vmem:[#allocation2 + $0xd0] sm:$0xff] %v1054
      %1269 = vst [vmem:[#allocation2 + $0xd8] sm:$0xff] %v1141
      %1270 = vst [vmem:[#allocation2 + $0xe0] sm:$0xff] %v1143
      %1271 = vst [vmem:[#allocation2 + $0xe8] sm:$0xff] %v1229
      %1272 = vst [vmem:[#allocation2 + $0xf0] sm:$0xff] %v613
      %1273 = vst [vmem:[#allocation2 + $0xf8] sm:$0xff] %v615
      %1274 = vst [vmem:[#allocation2 + $0x100] sm:$0xff] %v702
      %1275 = vst [vmem:[#allocation2 + $0x108] sm:$0xff] %v704
      %1276 = vst [vmem:[#allocation2 + $0x110] sm:$0xff] %v791
      %1277 = vst [vmem:[#allocation2 + $0x118] sm:$0xff] %v793
      %1278 = vst [vmem:[#allocation2 + $0x120] sm:$0xff] %v880
      %1279 = vst [vmem:[#allocation2 + $0x128] sm:$0xff] %v882
      %1280 = vst [vmem:[#allocation2 + $0x130] sm:$0xff] %v969
      %1281 = vst [vmem:[#allocation2 + $0x138] sm:$0xff] %v971
      %1282 = vst [vmem:[#allocation2 + $0x140] sm:$0xff] %v1058
      %1283 = vst [vmem:[#allocation2 + $0x148] sm:$0xff] %v1060
      %1284 = vst [vmem:[#allocation2 + $0x150] sm:$0xff] %v1147
      %1285 = vst [vmem:[#allocation2 + $0x158] sm:$0xff] %v1149
      %1286 = vst [vmem:[#allocation2 + $0x160] sm:$0xff] %v1234
      %1287 = vst [vmem:[#allocation2 + $0x168] sm:$0xff] %v619
      %1288 = vst [vmem:[#allocation2 + $0x170] sm:$0xff] %v621
      %1289 = vst [vmem:[#allocation2 + $0x178] sm:$0xff] %v708
      %1290 = vst [vmem:[#allocation2 + $0x180] sm:$0xff] %v710
      %1291 = vst [vmem:[#allocation2 + $0x188] sm:$0xff] %v797
      %1292 = vst [vmem:[#allocation2 + $0x190] sm:$0xff] %v799
      %1293 = vst [vmem:[#allocation2 + $0x198] sm:$0xff] %v886
      %1294 = vst [vmem:[#allocation2 + $0x1a0] sm:$0xff] %v888
      %1295 = vst [vmem:[#allocation2 + $0x1a8] sm:$0xff] %v975
      %1296 = vst [vmem:[#allocation2 + $0x1b0] sm:$0xff] %v977
      %1297 = vst [vmem:[#allocation2 + $0x1b8] sm:$0xff] %v1064
      %1298 = vst [vmem:[#allocation2 + $0x1c0] sm:$0xff] %v1066
      %1299 = vst [vmem:[#allocation2 + $0x1c8] sm:$0xff] %v1153
      %1300 = vst [vmem:[#allocation2 + $0x1d0] sm:$0xff] %v1155
      %1301 = vst [vmem:[#allocation2 + $0x1d8] sm:$0xff] %v1239
      %v1302 = vlaneseq
      %v1303 = vand.u32 %v1302, 127
      %v1304 = vadd.s32 %v1303, 128
      %v1305 = vadd.s32 %v1303, 256
      %vm1306 = vcmp.lt.s32.totalorder %v1303, 0
      %v1307 = vsub.s32 0, %v1303
      %v1308 = vsel %vm1306, %v1307, %v1303
      %v1309 = vmul.u32.u64.compose %v1308, 2863311531
      %v1310 = vextract.low.u32 %v1309
      %v1311 = vextract.high.u32 %v1309
      %v1312 = vshrl.u32 %v1311, 4
      %v1313 = vmul.u32 %v1312, 24
      %v1314 = vsub.s32 %v1308, %v1313
      %v1315 = vsub.s32 0, %v1314
      %v1316 = vsel %vm1306, %v1315, %v1314
      %vm1317 = vcmp.lt.s32.totalorder %v1304, 0
      %v1318 = vsub.s32 0, %v1304
      %v1319 = vsel %vm1317, %v1318, %v1304
      %v1320 = vmul.u32.u64.compose %v1319, 2863311531
      %v1321 = vextract.low.u32 %v1320
      %v1322 = vextract.high.u32 %v1320
      %v1323 = vshrl.u32 %v1322, 4
      %v1324 = vmul.u32 %v1323, 24
      %v1325 = vsub.s32 %v1319, %v1324
      %v1326 = vsub.s32 0, %v1325
      %v1327 = vsel %vm1317, %v1326, %v1325
      %vm1328 = vcmp.lt.s32.totalorder %v1305, 0
      %v1329 = vsub.s32 0, %v1305
      %v1330 = vsel %vm1328, %v1329, %v1305
      %v1331 = vmul.u32.u64.compose %v1330, 2863311531
      %v1332 = vextract.low.u32 %v1331
      %v1333 = vextract.high.u32 %v1331
      %v1334 = vshrl.u32 %v1333, 4
      %v1335 = vmul.u32 %v1334, 24
      %v1336 = vsub.s32 %v1330, %v1335
      %v1337 = vsub.s32 0, %v1336
      %v1338 = vsel %vm1328, %v1337, %v1336
      %vm1339 = vcmp.ne.s32.totalorder %v1316, 0
      %vm1340 = vcmp.ne.s32.totalorder %v1327, 0
      %vm1341 = vcmp.ne.s32.totalorder %v1338, 0
      %vm1342 = vcmp.lt.s32.totalorder %v1316, 0
      %vm1343 = vcmp.lt.s32.totalorder %v1327, 0
      %vm1344 = vcmp.lt.s32.totalorder %v1338, 0
      %vm1345 = vmand %vm1342, %vm1339
      %vm1346 = vmand %vm1343, %vm1340
      %vm1347 = vmand %vm1344, %vm1341
      %v1348 = vadd.s32 %v1316, 24
      %v1349 = vadd.s32 %v1327, 24
      %v1350 = vadd.s32 %v1338, 24
      %v1351 = vsel %vm1345, %v1348, %v1316
      %v1352 = vsel %vm1346, %v1349, %v1327
      %v1353 = vsel %vm1347, %v1350, %v1338
      %vm1354 = vcmp.lt.s32.totalorder %v1351, 16
      %vm1355 = vcmp.lt.s32.totalorder %v1352, 16
      %vm1356 = vcmp.lt.s32.totalorder %v1353, 16
      %v1357 = vsel %vm1354, 1, 0
      %v1358 = vsel %vm1355, 1, 0
      %v1359 = vsel %vm1356, 1, 0
      %v1360 = vcvt.s32.f32 %v1357
      %v1361 = vcvt.s32.f32 %v1358
      %v1362 = vcvt.s32.f32 %v1359
      %1363 = vst [vmem:[#allocation3] sm:$0xff] 0.0
      %1364 = vst [vmem:[#allocation3 + $0x8] sm:$0xff] 0.0
      %1365 = vst [vmem:[#allocation3 + $0x10] sm:$0xff] 0.0
      %1366 = vst [vmem:[#allocation3 + $0x18] sm:$0xff] 0.0
      %1367 = vst [vmem:[#allocation3 + $0x20] sm:$0xff] 0.0
      %v1368 = vld [vmem:[%s2] sm:$0xff]
      %v1369 = vld [vmem:[%s2 + $0x8] sm:$0xff]
      %v1370 = vld [vmem:[%s2 + $0x10] sm:$0xff]
      %v1371 = vld [vmem:[%s2 + $0x18] sm:$0xff]
      %v1372 = vld [vmem:[%s2 + $0x20] sm:$0xff]
      %v1373 = vld [vmem:[%s2 + $0x28] sm:$0xff]
      %v1374 = vld [vmem:[%s2 + $0x30] sm:$0xff]
      %v1375 = vld [vmem:[%s2 + $0x38] sm:$0xff]
      %v1376 = vld [vmem:[#allocation2] sm:$0xff]
      %v1377 = vld [vmem:[#allocation2 + $0x8] sm:$0xff]
      %v1378 = vld [vmem:[#allocation2 + $0x10] sm:$0xff]
      %v1379 = vld [vmem:[#allocation2 + $0x78] sm:$0xff]
      %v1380 = vld [vmem:[#allocation2 + $0x80] sm:$0xff]
      %v1381 = vld [vmem:[#allocation2 + $0x88] sm:$0xff]
      %v1382 = vld [vmem:[#allocation2 + $0xf0] sm:$0xff]
      %v1383 = vld [vmem:[#allocation2 + $0xf8] sm:$0xff]
      %v1384 = vld [vmem:[#allocation2 + $0x100] sm:$0xff]
      %v1385 = vld [vmem:[#allocation2 + $0x168] sm:$0xff]
      %v1386 = vld [vmem:[#allocation2 + $0x170] sm:$0xff]
      %v1387 = vld [vmem:[#allocation2 + $0x178] sm:$0xff]
      %v1388 = vxor.u32 %v1376, 2147483648
      %v1389 = vxor.u32 %v1377, 2147483648
      %v1390 = vxor.u32 %v1378, 2147483648
      %v1391 = vmul.f32 %v1388, 1.442695
      %v1392 = vpow.pop %v1391
      %v1393 = vmul.f32 %v1389, 1.442695
      %v1394 = vpow.pop %v1393
      %v1395 = vmul.f32 %v1390, 1.442695
      %v1396 = vpow.pop %v1395
      %v1397 = vadd.f32 %v1392, 1.0
      %v1398 = vadd.f32 %v1394, 1.0
      %v1399 = vadd.f32 %v1396, 1.0
      %v1400 = vrcp.pop %v1397
      %v1401 = vmul.f32 1.0, %v1400
      %v1402 = vrcp.pop %v1398
      %v1403 = vmul.f32 1.0, %v1402
      %v1404 = vrcp.pop %v1399
      %v1405 = vmul.f32 1.0, %v1404
      %v1406 = vxor.u32 %v1379, 2147483648
      %v1407 = vxor.u32 %v1380, 2147483648
      %v1408 = vxor.u32 %v1381, 2147483648
      %v1409 = vmul.f32 %v1406, 1.442695
      %v1410 = vpow.pop %v1409
      %v1411 = vmul.f32 %v1407, 1.442695
      %v1412 = vpow.pop %v1411
      %v1413 = vmul.f32 %v1408, 1.442695
      %v1414 = vpow.pop %v1413
      %v1415 = vadd.f32 %v1410, 1.0
      %v1416 = vadd.f32 %v1412, 1.0
      %v1417 = vadd.f32 %v1414, 1.0
      %v1418 = vrcp.pop %v1415
      %v1419 = vmul.f32 1.0, %v1418
      %v1420 = vrcp.pop %v1416
      %v1421 = vmul.f32 1.0, %v1420
      %v1422 = vrcp.pop %v1417
      %v1423 = vmul.f32 1.0, %v1422
      %v1424 = vxor.u32 %v1382, 2147483648
      %v1425 = vxor.u32 %v1383, 2147483648
      %v1426 = vxor.u32 %v1384, 2147483648
      %v1427 = vmul.f32 %v1424, 1.442695
      %v1428 = vpow.pop %v1427
      %v1429 = vmul.f32 %v1425, 1.442695
      %v1430 = vpow.pop %v1429
      %v1431 = vmul.f32 %v1426, 1.442695
      %v1432 = vpow.pop %v1431
      %v1433 = vadd.f32 %v1428, 1.0
      %v1434 = vadd.f32 %v1430, 1.0
      %v1435 = vadd.f32 %v1432, 1.0
      %v1436 = vrcp.pop %v1433
      %v1437 = vmul.f32 1.0, %v1436
      %v1438 = vrcp.pop %v1434
      %v1439 = vmul.f32 1.0, %v1438
      %v1440 = vrcp.pop %v1435
      %v1441 = vmul.f32 1.0, %v1440
      %v1442 = vtanh.pop %v1385
      %v1443 = vtanh.pop %v1386
      %v1444 = vtanh.pop %v1387
      %v1445 = vmul.f32 %v1419, 0.0
      %v1446 = vmul.f32 %v1421, 0.0
      %v1447 = vmul.f32 %v1423, 0.0
      %v1448 = vmul.f32 %v1401, %v1442
      %v1449 = vmul.f32 %v1403, %v1443
      %v1450 = vmul.f32 %v1405, %v1444
      %v1451 = vadd.f32 %v1445, %v1448
      %v1452 = vadd.f32 %v1446, %v1449
      %v1453 = vadd.f32 %v1447, %v1450
      %v1454 = vtanh.pop %v1451
      %v1455 = vtanh.pop %v1452
      %v1456 = vtanh.pop %v1453
      %v1457 = vmul.f32 %v1437, %v1454
      %v1458 = vmul.f32 %v1439, %v1455
      %v1459 = vmul.f32 %v1441, %v1456
      %1460 = vst [vmem:[#allocation4] sm:$0xff] %v1457
      %1461 = vst [vmem:[#allocation4 + $0x8] sm:$0xff] %v1458
      %1462 = vst [vmem:[#allocation4 + $0x10] sm:$0xff] %v1459
      %v1463 = vmul.f32 %v1457, %v1360
      %v1464 = vmul.f32 %v1458, %v1361
      %v1465 = vmul.f32 %v1459, %v1362
      %1466 = vst [vmem:[#allocation3 + $0x8] sm:$0xff] %v1463
      %1467 = vst [vmem:[#allocation3 + $0x10] sm:$0xff] %v1464
      %1468 = vst [vmem:[#allocation3 + $0x18] sm:$0xff] %v1465
      %v1469 = vld [vmem:[#allocation2 + $0x18] sm:$0xff]
      %v1470 = vld [vmem:[#allocation2 + $0x20] sm:$0xff]
      %v1471 = vld [vmem:[#allocation2 + $0x28] sm:$0xff]
      %v1472 = vld [vmem:[#allocation2 + $0x90] sm:$0xff]
      %v1473 = vld [vmem:[#allocation2 + $0x98] sm:$0xff]
      %v1474 = vld [vmem:[#allocation2 + $0xa0] sm:$0xff]
      %v1475 = vld [vmem:[#allocation2 + $0x108] sm:$0xff]
      %v1476 = vld [vmem:[#allocation2 + $0x110] sm:$0xff]
      %v1477 = vld [vmem:[#allocation2 + $0x118] sm:$0xff]
      %v1478 = vld [vmem:[#allocation2 + $0x180] sm:$0xff]
      %v1479 = vld [vmem:[#allocation2 + $0x188] sm:$0xff]
      %v1480 = vld [vmem:[#allocation2 + $0x190] sm:$0xff]
      %v1481 = vld [vmem:[#allocation3] sm:$0xff]
      %v1482 = vld [vmem:[#allocation3 + $0x8] sm:$0xff]
      %v1483 = vld [vmem:[#allocation3 + $0x10] sm:$0xff]
      %v1484 = vld [vmem:[#allocation3 + $0x18] sm:$0xff]
      %v1485 = vld [vmem:[#allocation3 + $0x20] sm:$0xff]
      %1490 = vrot.lane.b32.xlu0 %v1481, 127
      %v1491 = vpop.permute.xlu0 %1490
      %1492 = vrot.lane.b32.xlu0 %v1482, 127
      %v1493 = vpop.permute.xlu0 %1492
      %1494 = vrot.lane.b32.xlu0 %v1483, 127
      %v1495 = vpop.permute.xlu0 %1494
      %1496 = vrot.lane.b32.xlu0 %v1484, 127
      %v1497 = vpop.permute.xlu0 %1496
      %vm1498 = vcmask 1039360
      %v1499 = vsel %vm1498, %v1491, %v1493
      %v1500 = vsel %vm1498, %v1493, %v1495
      %v1501 = vsel %vm1498, %v1495, %v1497
      %1502 = vrot.lane.b32.xlu0 %v1481, 126
      %v1503 = vpop.permute.xlu0 %1502
      %1504 = vrot.lane.b32.xlu0 %v1482, 126
      %v1505 = vpop.permute.xlu0 %1504
      %1506 = vrot.lane.b32.xlu0 %v1483, 126
      %v1507 = vpop.permute.xlu0 %1506
      %1508 = vrot.lane.b32.xlu0 %v1484, 126
      %v1509 = vpop.permute.xlu0 %1508
      %vm1510 = vcmask 1031168
      %v1511 = vsel %vm1510, %v1503, %v1505
      %v1512 = vsel %vm1510, %v1505, %v1507
      %v1513 = vsel %vm1510, %v1507, %v1509
      %1514 = vrot.lane.b32.xlu0 %v1481, 125
      %v1515 = vpop.permute.xlu0 %1514
      %1516 = vrot.lane.b32.xlu0 %v1482, 125
      %v1517 = vpop.permute.xlu0 %1516
      %1518 = vrot.lane.b32.xlu0 %v1483, 125
      %v1519 = vpop.permute.xlu0 %1518
      %1520 = vrot.lane.b32.xlu0 %v1484, 125
      %v1521 = vpop.permute.xlu0 %1520
      %vm1522 = vcmask 1022976
      %v1523 = vsel %vm1522, %v1515, %v1517
      %v1524 = vsel %vm1522, %v1517, %v1519
      %v1525 = vsel %vm1522, %v1519, %v1521
      %1526 = vrot.lane.b32.xlu0 %v1481, 124
      %v1527 = vpop.permute.xlu0 %1526
      %1528 = vrot.lane.b32.xlu0 %v1482, 124
      %v1529 = vpop.permute.xlu0 %1528
      %1530 = vrot.lane.b32.xlu0 %v1483, 124
      %v1531 = vpop.permute.xlu0 %1530
      %1532 = vrot.lane.b32.xlu0 %v1484, 124
      %v1533 = vpop.permute.xlu0 %1532
      %vm1534 = vcmask 1014784
      %v1535 = vsel %vm1534, %v1527, %v1529
      %v1536 = vsel %vm1534, %v1529, %v1531
      %v1537 = vsel %vm1534, %v1531, %v1533
      %1538 = vrot.lane.b32.xlu0 %v1481, 104
      %v1539 = vpop.permute.xlu0 %1538
      %1540 = vrot.lane.b32.xlu0 %v1482, 104
      %v1541 = vpop.permute.xlu0 %1540
      %1542 = vrot.lane.b32.xlu0 %v1483, 104
      %v1543 = vpop.permute.xlu0 %1542
      %1544 = vrot.lane.b32.xlu0 %v1484, 104
      %v1545 = vpop.permute.xlu0 %1544
      %vm1546 = vcmask 850944
      %v1547 = vsel %vm1546, %v1539, %v1541
      %v1548 = vsel %vm1546, %v1541, %v1543
      %v1549 = vsel %vm1546, %v1543, %v1545
      %1550 = vrot.lane.b32.xlu0 %v1481, 103
      %v1551 = vpop.permute.xlu0 %1550
      %1552 = vrot.lane.b32.xlu0 %v1482, 103
      %v1553 = vpop.permute.xlu0 %1552
      %1554 = vrot.lane.b32.xlu0 %v1483, 103
      %v1555 = vpop.permute.xlu0 %1554
      %1556 = vrot.lane.b32.xlu0 %v1484, 103
      %v1557 = vpop.permute.xlu0 %1556
      %vm1558 = vcmask 842752
      %v1559 = vsel %vm1558, %v1551, %v1553
      %v1560 = vsel %vm1558, %v1553, %v1555
      %v1561 = vsel %vm1558, %v1555, %v1557
      %1562 = vrot.lane.b32.xlu0 %v1481, 102
      %v1563 = vpop.permute.xlu0 %1562
      %1564 = vrot.lane.b32.xlu0 %v1482, 102
      %v1565 = vpop.permute.xlu0 %1564
      %1566 = vrot.lane.b32.xlu0 %v1483, 102
      %v1567 = vpop.permute.xlu0 %1566
      %1568 = vrot.lane.b32.xlu0 %v1484, 102
      %v1569 = vpop.permute.xlu0 %1568
      %vm1570 = vcmask 834560
      %v1571 = vsel %vm1570, %v1563, %v1565
      %v1572 = vsel %vm1570, %v1565, %v1567
      %v1573 = vsel %vm1570, %v1567, %v1569
      %1574 = vrot.lane.b32.xlu0 %v1481, 101
      %v1575 = vpop.permute.xlu0 %1574
      %1576 = vrot.lane.b32.xlu0 %v1482, 101
      %v1577 = vpop.permute.xlu0 %1576
      %1578 = vrot.lane.b32.xlu0 %v1483, 101
      %v1579 = vpop.permute.xlu0 %1578
      %1580 = vrot.lane.b32.xlu0 %v1484, 101
      %v1581 = vpop.permute.xlu0 %1580
      %vm1582 = vcmask 826368
      %v1583 = vsel %vm1582, %v1575, %v1577
      %v1584 = vsel %vm1582, %v1577, %v1579
      %v1585 = vsel %vm1582, %v1579, %v1581
      %1586 = vrot.lane.b32.xlu0 %v1481, 100
      %v1587 = vpop.permute.xlu0 %1586
      %1588 = vrot.lane.b32.xlu0 %v1482, 100
      %v1589 = vpop.permute.xlu0 %1588
      %1590 = vrot.lane.b32.xlu0 %v1483, 100
      %v1591 = vpop.permute.xlu0 %1590
      %1592 = vrot.lane.b32.xlu0 %v1484, 100
      %v1593 = vpop.permute.xlu0 %1592
      %v1594 = vsel %vm475, %v1587, %v1589
      %v1595 = vsel %vm475, %v1589, %v1591
      %v1596 = vsel %vm475, %v1591, %v1593
      %1597 = vrot.lane.b32.xlu0 %v1481, 80
      %v1598 = vpop.permute.xlu0 %1597
      %1599 = vrot.lane.b32.xlu0 %v1482, 80
      %v1600 = vpop.permute.xlu0 %1599
      %1601 = vrot.lane.b32.xlu0 %v1483, 80
      %v1602 = vpop.permute.xlu0 %1601
      %1603 = vrot.lane.b32.xlu0 %v1484, 80
      %v1604 = vpop.permute.xlu0 %1603
      %vm1605 = vcmask 654336
      %v1606 = vsel %vm1605, %v1598, %v1600
      %v1607 = vsel %vm1605, %v1600, %v1602
      %v1608 = vsel %vm1605, %v1602, %v1604
      %1609 = vrot.lane.b32.xlu0 %v1481, 79
      %v1610 = vpop.permute.xlu0 %1609
      %1611 = vrot.lane.b32.xlu0 %v1482, 79
      %v1612 = vpop.permute.xlu0 %1611
      %1613 = vrot.lane.b32.xlu0 %v1483, 79
      %v1614 = vpop.permute.xlu0 %1613
      %1615 = vrot.lane.b32.xlu0 %v1484, 79
      %v1616 = vpop.permute.xlu0 %1615
      %vm1617 = vcmask 646144
      %v1618 = vsel %vm1617, %v1610, %v1612
      %v1619 = vsel %vm1617, %v1612, %v1614
      %v1620 = vsel %vm1617, %v1614, %v1616
      %1621 = vrot.lane.b32.xlu0 %v1482, 78
      %v1622 = vpop.permute.xlu0 %1621
      %1623 = vrot.lane.b32.xlu0 %v1483, 78
      %v1624 = vpop.permute.xlu0 %1623
      %1625 = vrot.lane.b32.xlu0 %v1484, 78
      %v1626 = vpop.permute.xlu0 %1625
      %vm1627 = vcmask 637952
      %v1628 = vsel %vm1627, %v1622, %v1624
      %v1629 = vsel %vm1627, %v1624, %v1626
      %1631 = vrot.lane.b32.xlu0 %v1482, 77
      %v1632 = vpop.permute.xlu0 %1631
      %1633 = vrot.lane.b32.xlu0 %v1483, 77
      %v1634 = vpop.permute.xlu0 %1633
      %1635 = vrot.lane.b32.xlu0 %v1484, 77
      %v1636 = vpop.permute.xlu0 %1635
      %1637 = vrot.lane.b32.xlu0 %v1485, 77
      %v1638 = vpop.permute.xlu0 %1637
      %vm1639 = vcmask 629760
      %v1640 = vsel %vm1639, %v1632, %v1634
      %v1641 = vsel %vm1639, %v1634, %v1636
      %v1642 = vsel %vm1639, %v1636, %v1638
      %1643 = vrot.lane.b32.xlu0 %v1482, 76
      %v1644 = vpop.permute.xlu0 %1643
      %1645 = vrot.lane.b32.xlu0 %v1483, 76
      %v1646 = vpop.permute.xlu0 %1645
      %1647 = vrot.lane.b32.xlu0 %v1484, 76
      %v1648 = vpop.permute.xlu0 %1647
      %1649 = vrot.lane.b32.xlu0 %v1485, 76
      %v1650 = vpop.permute.xlu0 %1649
      %vm1651 = vcmask 621568
      %v1652 = vsel %vm1651, %v1644, %v1646
      %v1653 = vsel %vm1651, %v1646, %v1648
      %v1654 = vsel %vm1651, %v1648, %v1650
      %1655 = vrot.lane.b32.xlu0 %v1482, 56
      %v1656 = vpop.permute.xlu0 %1655
      %1657 = vrot.lane.b32.xlu0 %v1483, 56
      %v1658 = vpop.permute.xlu0 %1657
      %1659 = vrot.lane.b32.xlu0 %v1484, 56
      %v1660 = vpop.permute.xlu0 %1659
      %1661 = vrot.lane.b32.xlu0 %v1485, 56
      %v1662 = vpop.permute.xlu0 %1661
      %vm1663 = vcmask 457728
      %v1664 = vsel %vm1663, %v1656, %v1658
      %v1665 = vsel %vm1663, %v1658, %v1660
      %v1666 = vsel %vm1663, %v1660, %v1662
      %1667 = vrot.lane.b32.xlu0 %v1485, 127
      %v1668 = vpop.permute.xlu0 %1667
      %v1669 = vsel %vm1498, %v1497, %v1668
      %1670 = vrot.lane.b32.xlu0 %v1485, 126
      %v1671 = vpop.permute.xlu0 %1670
      %v1672 = vsel %vm1510, %v1509, %v1671
      %1673 = vrot.lane.b32.xlu0 %v1485, 125
      %v1674 = vpop.permute.xlu0 %1673
      %v1675 = vsel %vm1522, %v1521, %v1674
      %1676 = vrot.lane.b32.xlu0 %v1482, 105
      %v1677 = vpop.permute.xlu0 %1676
      %1678 = vrot.lane.b32.xlu0 %v1483, 105
      %v1679 = vpop.permute.xlu0 %1678
      %1680 = vrot.lane.b32.xlu0 %v1484, 105
      %v1681 = vpop.permute.xlu0 %1680
      %1682 = vrot.lane.b32.xlu0 %v1485, 105
      %v1683 = vpop.permute.xlu0 %1682
      %vm1684 = vcmask 859136
      %v1685 = vsel %vm1684, %v1677, %v1679
      %v1686 = vsel %vm1684, %v1679, %v1681
      %v1687 = vsel %vm1684, %v1681, %v1683
      %1688 = vrot.lane.b32.xlu0 %v1485, 104
      %v1689 = vpop.permute.xlu0 %1688
      %v1690 = vsel %vm1546, %v1545, %v1689
      %1691 = vrot.lane.b32.xlu0 %v1485, 103
      %v1692 = vpop.permute.xlu0 %1691
      %v1693 = vsel %vm1558, %v1557, %v1692
      %1694 = vrot.lane.b32.xlu0 %v1485, 102
      %v1695 = vpop.permute.xlu0 %1694
      %v1696 = vsel %vm1570, %v1569, %v1695
      %1697 = vrot.lane.b32.xlu0 %v1485, 101
      %v1698 = vpop.permute.xlu0 %1697
      %v1699 = vsel %vm1582, %v1581, %v1698
      %1700 = vrot.lane.b32.xlu0 %v1482, 55
      %v1701 = vpop.permute.xlu0 %1700
      %1702 = vrot.lane.b32.xlu0 %v1483, 55
      %v1703 = vpop.permute.xlu0 %1702
      %1704 = vrot.lane.b32.xlu0 %v1484, 55
      %v1705 = vpop.permute.xlu0 %1704
      %1706 = vrot.lane.b32.xlu0 %v1485, 55
      %v1707 = vpop.permute.xlu0 %1706
      %1708 = vrot.lane.b32.xlu0 %v1500, 55
      %v1709 = vpop.permute.xlu0 %1708
      %1710 = vrot.lane.b32.xlu0 %v1501, 55
      %v1711 = vpop.permute.xlu0 %1710
      %1712 = vrot.lane.b32.xlu0 %v1669, 55
      %v1713 = vpop.permute.xlu0 %1712
      %1714 = vrot.lane.b32.xlu0 %v1668, 55
      %v1715 = vpop.permute.xlu0 %1714
      %1716 = vrot.lane.b32.xlu0 %v1512, 55
      %v1717 = vpop.permute.xlu0 %1716
      %1718 = vrot.lane.b32.xlu0 %v1513, 55
      %v1719 = vpop.permute.xlu0 %1718
      %1720 = vrot.lane.b32.xlu0 %v1672, 55
      %v1721 = vpop.permute.xlu0 %1720
      %1722 = vrot.lane.b32.xlu0 %v1671, 55
      %v1723 = vpop.permute.xlu0 %1722
      %1724 = vrot.lane.b32.xlu0 %v1524, 55
      %v1725 = vpop.permute.xlu0 %1724
      %1726 = vrot.lane.b32.xlu0 %v1525, 55
      %v1727 = vpop.permute.xlu0 %1726
      %1728 = vrot.lane.b32.xlu0 %v1675, 55
      %v1729 = vpop.permute.xlu0 %1728
      %1730 = vrot.lane.b32.xlu0 %v1674, 55
      %v1731 = vpop.permute.xlu0 %1730
      %1732 = vrot.lane.b32.xlu0 %v1685, 55
      %v1733 = vpop.permute.xlu0 %1732
      %1734 = vrot.lane.b32.xlu0 %v1686, 55
      %v1735 = vpop.permute.xlu0 %1734
      %1736 = vrot.lane.b32.xlu0 %v1687, 55
      %v1737 = vpop.permute.xlu0 %1736
      %1738 = vrot.lane.b32.xlu0 %v1683, 55
      %v1739 = vpop.permute.xlu0 %1738
      %1740 = vrot.lane.b32.xlu0 %v1548, 55
      %v1741 = vpop.permute.xlu0 %1740
      %1742 = vrot.lane.b32.xlu0 %v1549, 55
      %v1743 = vpop.permute.xlu0 %1742
      %1744 = vrot.lane.b32.xlu0 %v1690, 55
      %v1745 = vpop.permute.xlu0 %1744
      %1746 = vrot.lane.b32.xlu0 %v1689, 55
      %v1747 = vpop.permute.xlu0 %1746
      %1748 = vrot.lane.b32.xlu0 %v1560, 55
      %v1749 = vpop.permute.xlu0 %1748
      %1750 = vrot.lane.b32.xlu0 %v1561, 55
      %v1751 = vpop.permute.xlu0 %1750
      %1752 = vrot.lane.b32.xlu0 %v1693, 55
      %v1753 = vpop.permute.xlu0 %1752
      %1754 = vrot.lane.b32.xlu0 %v1692, 55
      %v1755 = vpop.permute.xlu0 %1754
      %1756 = vrot.lane.b32.xlu0 %v1572, 55
      %v1757 = vpop.permute.xlu0 %1756
      %1758 = vrot.lane.b32.xlu0 %v1573, 55
      %v1759 = vpop.permute.xlu0 %1758
      %1760 = vrot.lane.b32.xlu0 %v1696, 55
      %v1761 = vpop.permute.xlu0 %1760
      %1762 = vrot.lane.b32.xlu0 %v1695, 55
      %v1763 = vpop.permute.xlu0 %1762
      %1764 = vrot.lane.b32.xlu0 %v1584, 55
      %v1765 = vpop.permute.xlu0 %1764
      %1766 = vrot.lane.b32.xlu0 %v1585, 55
      %v1767 = vpop.permute.xlu0 %1766
      %1768 = vrot.lane.b32.xlu0 %v1699, 55
      %v1769 = vpop.permute.xlu0 %1768
      %1770 = vrot.lane.b32.xlu0 %v1698, 55
      %v1771 = vpop.permute.xlu0 %1770
      %vm1772 = vcmask 449536
      %v1773 = vsel %vm1772, %v1701, %v1703
      %v1774 = vsel %vm1772, %v1703, %v1705
      %v1775 = vsel %vm1772, %v1705, %v1707
      %v1776 = vsel %vm1772, %v1709, %v1711
      %v1777 = vsel %vm1772, %v1711, %v1713
      %v1778 = vsel %vm1772, %v1713, %v1715
      %v1779 = vsel %vm1772, %v1717, %v1719
      %v1780 = vsel %vm1772, %v1719, %v1721
      %v1781 = vsel %vm1772, %v1721, %v1723
      %v1782 = vsel %vm1772, %v1725, %v1727
      %v1783 = vsel %vm1772, %v1727, %v1729
      %v1784 = vsel %vm1772, %v1729, %v1731
      %v1785 = vsel %vm1772, %v1733, %v1735
      %v1786 = vsel %vm1772, %v1735, %v1737
      %v1787 = vsel %vm1772, %v1737, %v1739
      %v1788 = vsel %vm1772, %v1741, %v1743
      %v1789 = vsel %vm1772, %v1743, %v1745
      %v1790 = vsel %vm1772, %v1745, %v1747
      %v1791 = vsel %vm1772, %v1749, %v1751
      %v1792 = vsel %vm1772, %v1751, %v1753
      %v1793 = vsel %vm1772, %v1753, %v1755
      %v1794 = vsel %vm1772, %v1757, %v1759
      %v1795 = vsel %vm1772, %v1759, %v1761
      %v1796 = vsel %vm1772, %v1761, %v1763
      %v1797 = vsel %vm1772, %v1765, %v1767
      %v1798 = vsel %vm1772, %v1767, %v1769
      %v1799 = vsel %vm1772, %v1769, %v1771
      %1800 = vrot.lane.b32.xlu0 %v1481, 50
      %v1801 = vpop.permute.xlu0 %1800
      %1802 = vrot.lane.b32.xlu0 %v1482, 50
      %v1803 = vpop.permute.xlu0 %1802
      %1804 = vrot.lane.b32.xlu0 %v1483, 50
      %v1805 = vpop.permute.xlu0 %1804
      %1806 = vrot.lane.b32.xlu0 %v1484, 50
      %v1807 = vpop.permute.xlu0 %1806
      %1808 = vrot.lane.b32.xlu0 %v1499, 50
      %v1809 = vpop.permute.xlu0 %1808
      %1810 = vrot.lane.b32.xlu0 %v1500, 50
      %v1811 = vpop.permute.xlu0 %1810
      %1812 = vrot.lane.b32.xlu0 %v1501, 50
      %v1813 = vpop.permute.xlu0 %1812
      %1814 = vrot.lane.b32.xlu0 %v1497, 50
      %v1815 = vpop.permute.xlu0 %1814
      %1816 = vrot.lane.b32.xlu0 %v1511, 50
      %v1817 = vpop.permute.xlu0 %1816
      %1818 = vrot.lane.b32.xlu0 %v1512, 50
      %v1819 = vpop.permute.xlu0 %1818
      %1820 = vrot.lane.b32.xlu0 %v1513, 50
      %v1821 = vpop.permute.xlu0 %1820
      %1822 = vrot.lane.b32.xlu0 %v1509, 50
      %v1823 = vpop.permute.xlu0 %1822
      %1824 = vrot.lane.b32.xlu0 %v1523, 50
      %v1825 = vpop.permute.xlu0 %1824
      %1826 = vrot.lane.b32.xlu0 %v1524, 50
      %v1827 = vpop.permute.xlu0 %1826
      %1828 = vrot.lane.b32.xlu0 %v1525, 50
      %v1829 = vpop.permute.xlu0 %1828
      %1830 = vrot.lane.b32.xlu0 %v1521, 50
      %v1831 = vpop.permute.xlu0 %1830
      %1832 = vrot.lane.b32.xlu0 %v1535, 50
      %v1833 = vpop.permute.xlu0 %1832
      %1834 = vrot.lane.b32.xlu0 %v1536, 50
      %v1835 = vpop.permute.xlu0 %1834
      %1836 = vrot.lane.b32.xlu0 %v1537, 50
      %v1837 = vpop.permute.xlu0 %1836
      %1838 = vrot.lane.b32.xlu0 %v1533, 50
      %v1839 = vpop.permute.xlu0 %1838
      %1840 = vrot.lane.b32.xlu0 %v1547, 50
      %v1841 = vpop.permute.xlu0 %1840
      %1842 = vrot.lane.b32.xlu0 %v1548, 50
      %v1843 = vpop.permute.xlu0 %1842
      %1844 = vrot.lane.b32.xlu0 %v1549, 50
      %v1845 = vpop.permute.xlu0 %1844
      %1846 = vrot.lane.b32.xlu0 %v1545, 50
      %v1847 = vpop.permute.xlu0 %1846
      %1848 = vrot.lane.b32.xlu0 %v1559, 50
      %v1849 = vpop.permute.xlu0 %1848
      %1850 = vrot.lane.b32.xlu0 %v1560, 50
      %v1851 = vpop.permute.xlu0 %1850
      %1852 = vrot.lane.b32.xlu0 %v1561, 50
      %v1853 = vpop.permute.xlu0 %1852
      %1854 = vrot.lane.b32.xlu0 %v1557, 50
      %v1855 = vpop.permute.xlu0 %1854
      %1856 = vrot.lane.b32.xlu0 %v1571, 50
      %v1857 = vpop.permute.xlu0 %1856
      %1858 = vrot.lane.b32.xlu0 %v1572, 50
      %v1859 = vpop.permute.xlu0 %1858
      %1860 = vrot.lane.b32.xlu0 %v1573, 50
      %v1861 = vpop.permute.xlu0 %1860
      %1862 = vrot.lane.b32.xlu0 %v1569, 50
      %v1863 = vpop.permute.xlu0 %1862
      %1864 = vrot.lane.b32.xlu0 %v1583, 50
      %v1865 = vpop.permute.xlu0 %1864
      %1866 = vrot.lane.b32.xlu0 %v1584, 50
      %v1867 = vpop.permute.xlu0 %1866
      %1868 = vrot.lane.b32.xlu0 %v1585, 50
      %v1869 = vpop.permute.xlu0 %1868
      %1870 = vrot.lane.b32.xlu0 %v1581, 50
      %v1871 = vpop.permute.xlu0 %1870
      %1872 = vrot.lane.b32.xlu0 %v1594, 50
      %v1873 = vpop.permute.xlu0 %1872
      %1874 = vrot.lane.b32.xlu0 %v1595, 50
      %v1875 = vpop.permute.xlu0 %1874
      %1876 = vrot.lane.b32.xlu0 %v1596, 50
      %v1877 = vpop.permute.xlu0 %1876
      %1878 = vrot.lane.b32.xlu0 %v1593, 50
      %v1879 = vpop.permute.xlu0 %1878
      %1880 = vrot.lane.b32.xlu0 %v1606, 50
      %v1881 = vpop.permute.xlu0 %1880
      %1882 = vrot.lane.b32.xlu0 %v1607, 50
      %v1883 = vpop.permute.xlu0 %1882
      %1884 = vrot.lane.b32.xlu0 %v1608, 50
      %v1885 = vpop.permute.xlu0 %1884
      %1886 = vrot.lane.b32.xlu0 %v1604, 50
      %v1887 = vpop.permute.xlu0 %1886
      %1888 = vrot.lane.b32.xlu0 %v1618, 50
      %v1889 = vpop.permute.xlu0 %1888
      %1890 = vrot.lane.b32.xlu0 %v1619, 50
      %v1891 = vpop.permute.xlu0 %1890
      %1892 = vrot.lane.b32.xlu0 %v1620, 50
      %v1893 = vpop.permute.xlu0 %1892
      %1894 = vrot.lane.b32.xlu0 %v1616, 50
      %v1895 = vpop.permute.xlu0 %1894
      %1896 = vrot.lane.b32.xlu0 %v1622, 50
      %v1897 = vpop.permute.xlu0 %1896
      %1898 = vrot.lane.b32.xlu0 %v1628, 50
      %v1899 = vpop.permute.xlu0 %1898
      %1900 = vrot.lane.b32.xlu0 %v1629, 50
      %v1901 = vpop.permute.xlu0 %1900
      %1902 = vrot.lane.b32.xlu0 %v1626, 50
      %v1903 = vpop.permute.xlu0 %1902
      %1904 = vrot.lane.b32.xlu0 %v1632, 50
      %v1905 = vpop.permute.xlu0 %1904
      %1906 = vrot.lane.b32.xlu0 %v1640, 50
      %v1907 = vpop.permute.xlu0 %1906
      %1908 = vrot.lane.b32.xlu0 %v1641, 50
      %v1909 = vpop.permute.xlu0 %1908
      %1910 = vrot.lane.b32.xlu0 %v1642, 50
      %v1911 = vpop.permute.xlu0 %1910
      %1912 = vrot.lane.b32.xlu0 %v1644, 50
      %v1913 = vpop.permute.xlu0 %1912
      %1914 = vrot.lane.b32.xlu0 %v1652, 50
      %v1915 = vpop.permute.xlu0 %1914
      %1916 = vrot.lane.b32.xlu0 %v1653, 50
      %v1917 = vpop.permute.xlu0 %1916
      %1918 = vrot.lane.b32.xlu0 %v1654, 50
      %v1919 = vpop.permute.xlu0 %1918
      %1920 = vrot.lane.b32.xlu0 %v1656, 50
      %v1921 = vpop.permute.xlu0 %1920
      %1922 = vrot.lane.b32.xlu0 %v1664, 50
      %v1923 = vpop.permute.xlu0 %1922
      %1924 = vrot.lane.b32.xlu0 %v1665, 50
      %v1925 = vpop.permute.xlu0 %1924
      %1926 = vrot.lane.b32.xlu0 %v1666, 50
      %v1927 = vpop.permute.xlu0 %1926
      %1928 = vrot.lane.b32.xlu0 %v1701, 50
      %v1929 = vpop.permute.xlu0 %1928
      %1930 = vrot.lane.b32.xlu0 %v1773, 50
      %v1931 = vpop.permute.xlu0 %1930
      %1932 = vrot.lane.b32.xlu0 %v1774, 50
      %v1933 = vpop.permute.xlu0 %1932
      %1934 = vrot.lane.b32.xlu0 %v1775, 50
      %v1935 = vpop.permute.xlu0 %1934
      %1936 = vrot.lane.b32.xlu0 %v1709, 50
      %v1937 = vpop.permute.xlu0 %1936
      %1938 = vrot.lane.b32.xlu0 %v1776, 50
      %v1939 = vpop.permute.xlu0 %1938
      %1940 = vrot.lane.b32.xlu0 %v1777, 50
      %v1941 = vpop.permute.xlu0 %1940
      %1942 = vrot.lane.b32.xlu0 %v1778, 50
      %v1943 = vpop.permute.xlu0 %1942
      %1944 = vrot.lane.b32.xlu0 %v1717, 50
      %v1945 = vpop.permute.xlu0 %1944
      %1946 = vrot.lane.b32.xlu0 %v1779, 50
      %v1947 = vpop.permute.xlu0 %1946
      %1948 = vrot.lane.b32.xlu0 %v1780, 50
      %v1949 = vpop.permute.xlu0 %1948
      %1950 = vrot.lane.b32.xlu0 %v1781, 50
      %v1951 = vpop.permute.xlu0 %1950
      %1952 = vrot.lane.b32.xlu0 %v1725, 50
      %v1953 = vpop.permute.xlu0 %1952
      %1954 = vrot.lane.b32.xlu0 %v1782, 50
      %v1955 = vpop.permute.xlu0 %1954
      %1956 = vrot.lane.b32.xlu0 %v1783, 50
      %v1957 = vpop.permute.xlu0 %1956
      %1958 = vrot.lane.b32.xlu0 %v1784, 50
      %v1959 = vpop.permute.xlu0 %1958
      %1960 = vrot.lane.b32.xlu0 %v1733, 50
      %v1961 = vpop.permute.xlu0 %1960
      %1962 = vrot.lane.b32.xlu0 %v1785, 50
      %v1963 = vpop.permute.xlu0 %1962
      %1964 = vrot.lane.b32.xlu0 %v1786, 50
      %v1965 = vpop.permute.xlu0 %1964
      %1966 = vrot.lane.b32.xlu0 %v1787, 50
      %v1967 = vpop.permute.xlu0 %1966
      %1968 = vrot.lane.b32.xlu0 %v1741, 50
      %v1969 = vpop.permute.xlu0 %1968
      %1970 = vrot.lane.b32.xlu0 %v1788, 50
      %v1971 = vpop.permute.xlu0 %1970
      %1972 = vrot.lane.b32.xlu0 %v1789, 50
      %v1973 = vpop.permute.xlu0 %1972
      %1974 = vrot.lane.b32.xlu0 %v1790, 50
      %v1975 = vpop.permute.xlu0 %1974
      %1976 = vrot.lane.b32.xlu0 %v1749, 50
      %v1977 = vpop.permute.xlu0 %1976
      %1978 = vrot.lane.b32.xlu0 %v1791, 50
      %v1979 = vpop.permute.xlu0 %1978
      %1980 = vrot.lane.b32.xlu0 %v1792, 50
      %v1981 = vpop.permute.xlu0 %1980
      %1982 = vrot.lane.b32.xlu0 %v1793, 50
      %v1983 = vpop.permute.xlu0 %1982
      %1984 = vrot.lane.b32.xlu0 %v1757, 50
      %v1985 = vpop.permute.xlu0 %1984
      %1986 = vrot.lane.b32.xlu0 %v1794, 50
      %v1987 = vpop.permute.xlu0 %1986
      %1988 = vrot.lane.b32.xlu0 %v1795, 50
      %v1989 = vpop.permute.xlu0 %1988
      %1990 = vrot.lane.b32.xlu0 %v1796, 50
      %v1991 = vpop.permute.xlu0 %1990
      %1992 = vrot.lane.b32.xlu0 %v1765, 50
      %v1993 = vpop.permute.xlu0 %1992
      %1994 = vrot.lane.b32.xlu0 %v1797, 50
      %v1995 = vpop.permute.xlu0 %1994
      %1996 = vrot.lane.b32.xlu0 %v1798, 50
      %v1997 = vpop.permute.xlu0 %1996
      %1998 = vrot.lane.b32.xlu0 %v1799, 50
      %v1999 = vpop.permute.xlu0 %1998
      %vm2000 = vcmask 408576
      %v2001 = vsel %vm2000, %v1801, %v1803
      %v2002 = vsel %vm2000, %v1803, %v1805
      %v2003 = vsel %vm2000, %v1805, %v1807
      %v2004 = vsel %vm2000, %v1809, %v1811
      %v2005 = vsel %vm2000, %v1811, %v1813
      %v2006 = vsel %vm2000, %v1813, %v1815
      %v2007 = vsel %vm2000, %v1817, %v1819
      %v2008 = vsel %vm2000, %v1819, %v1821
      %v2009 = vsel %vm2000, %v1821, %v1823
      %v2010 = vsel %vm2000, %v1825, %v1827
      %v2011 = vsel %vm2000, %v1827, %v1829
      %v2012 = vsel %vm2000, %v1829, %v1831
      %v2013 = vsel %vm2000, %v1833, %v1835
      %v2014 = vsel %vm2000, %v1835, %v1837
      %v2015 = vsel %vm2000, %v1837, %v1839
      %v2016 = vsel %vm2000, %v1841, %v1843
      %v2017 = vsel %vm2000, %v1843, %v1845
      %v2018 = vsel %vm2000, %v1845, %v1847
      %v2019 = vsel %vm2000, %v1849, %v1851
      %v2020 = vsel %vm2000, %v1851, %v1853
      %v2021 = vsel %vm2000, %v1853, %v1855
      %v2022 = vsel %vm2000, %v1857, %v1859
      %v2023 = vsel %vm2000, %v1859, %v1861
      %v2024 = vsel %vm2000, %v1861, %v1863
      %v2025 = vsel %vm2000, %v1865, %v1867
      %v2026 = vsel %vm2000, %v1867, %v1869
      %v2027 = vsel %vm2000, %v1869, %v1871
      %v2028 = vsel %vm2000, %v1873, %v1875
      %v2029 = vsel %vm2000, %v1875, %v1877
      %v2030 = vsel %vm2000, %v1877, %v1879
      %v2031 = vsel %vm2000, %v1881, %v1883
      %v2032 = vsel %vm2000, %v1883, %v1885
      %v2033 = vsel %vm2000, %v1885, %v1887
      %v2034 = vsel %vm2000, %v1889, %v1891
      %v2035 = vsel %vm2000, %v1891, %v1893
      %v2036 = vsel %vm2000, %v1893, %v1895
      %v2037 = vsel %vm2000, %v1897, %v1899
      %v2038 = vsel %vm2000, %v1899, %v1901
      %v2039 = vsel %vm2000, %v1901, %v1903
      %v2040 = vsel %vm2000, %v1905, %v1907
      %v2041 = vsel %vm2000, %v1907, %v1909
      %v2042 = vsel %vm2000, %v1909, %v1911
      %v2043 = vsel %vm2000, %v1913, %v1915
      %v2044 = vsel %vm2000, %v1915, %v1917
      %v2045 = vsel %vm2000, %v1917, %v1919
      %v2046 = vsel %vm2000, %v1921, %v1923
      %v2047 = vsel %vm2000, %v1923, %v1925
      %v2048 = vsel %vm2000, %v1925, %v1927
      %v2049 = vsel %vm2000, %v1929, %v1931
      %v2050 = vsel %vm2000, %v1931, %v1933
      %v2051 = vsel %vm2000, %v1933, %v1935
      %v2052 = vsel %vm2000, %v1937, %v1939
      %v2053 = vsel %vm2000, %v1939, %v1941
      %v2054 = vsel %vm2000, %v1941, %v1943
      %v2055 = vsel %vm2000, %v1945, %v1947
      %v2056 = vsel %vm2000, %v1947, %v1949
      %v2057 = vsel %vm2000, %v1949, %v1951
      %v2058 = vsel %vm2000, %v1953, %v1955
      %v2059 = vsel %vm2000, %v1955, %v1957
      %v2060 = vsel %vm2000, %v1957, %v1959
      %v2061 = vsel %vm2000, %v1961, %v1963
      %v2062 = vsel %vm2000, %v1963, %v1965
      %v2063 = vsel %vm2000, %v1965, %v1967
      %v2064 = vsel %vm2000, %v1969, %v1971
      %v2065 = vsel %vm2000, %v1971, %v1973
      %v2066 = vsel %vm2000, %v1973, %v1975
      %v2067 = vsel %vm2000, %v1977, %v1979
      %v2068 = vsel %vm2000, %v1979, %v1981
      %v2069 = vsel %vm2000, %v1981, %v1983
      %v2070 = vsel %vm2000, %v1985, %v1987
      %v2071 = vsel %vm2000, %v1987, %v1989
      %v2072 = vsel %vm2000, %v1989, %v1991
      %v2073 = vsel %vm2000, %v1993, %v1995
      %v2074 = vsel %vm2000, %v1995, %v1997
      %v2075 = vsel %vm2000, %v1997, %v1999
      %vm2151 = vcmask 588800
      %v2153 = vsel %vm2151, %v1369, 0
      %v2156 = vsel %vm2151, %v1371, 0
      %v2159 = vsel %vm2151, %v1373, 0
      %v2162 = vsel %vm2151, %v1375, 0
      %2164 = vmatprep.subr.mxu0 %v2047
      %2165 = vmatpush1.msra.mxu0 %v2046
      %2166 = vmatprep.subr.mxu0 %v2044
      %2167 = vmatpush1.msra.mxu0 %v2043
      %2168 = vmatprep.subr.mxu0 %v2041
      %2169 = vmatpush1.msra.mxu0 %v2040
      %2170 = vmatprep.subr.mxu0 %v2038
      %2171 = vmatpush1.msra.mxu0 %v2037
      %2172 = vmatprep.subr.mxu0 %v2035
      %2173 = vmatpush1.msra.mxu0 %v2034
      %2174 = vmatprep.subr.mxu0 %v2032
      %2175 = vmatpush1.msra.mxu0 %v2031
      %2176 = vmatprep.subr.mxu0 %v2029
      %2177 = vmatpush1.msra.mxu0 %v2028
      %2178 = vmatprep.subr.mxu0 %v2026
      %2179 = vmatpush1.msra.mxu0 %v2025
      %2180 = vmatprep.subr.mxu0 %v2023
      %2181 = vmatpush1.msra.mxu0 %v2022
      %2182 = vmatprep.subr.mxu0 %v2020
      %2183 = vmatpush1.msra.mxu0 %v2019
      %2184 = vmatprep.subr.mxu0 %v2017
      %2185 = vmatpush1.msra.mxu0 %v2016
      %2186 = vmatprep.subr.mxu0 %v2014
      %2187 = vmatpush1.msra.mxu0 %v2013
      %2188 = vmatprep.subr.mxu0 %v2011
      %2189 = vmatpush1.msra.mxu0 %v2010
      %2190 = vmatprep.subr.mxu0 %v2008
      %2191 = vmatpush1.msra.mxu0 %v2007
      %2192 = vmatprep.subr.mxu0 %v2005
      %2193 = vmatpush1.msra.mxu0 %v2004
      %2194 = vmatprep.subr.mxu0 %v2002
      %2195 = vmatpush1.msra.mxu0 %v2001
      %2196 = vmatprep.subr.mxu0 0.0
      %2197 = vmatpush2.msra.mxu0 0.0
      %2198 = vmatprep.subr.mxu0 0.0
      %2199 = vmatpush2.msra.mxu0 0.0
      %2200 = vmatprep.subr.mxu0 0.0
      %2201 = vmatpush2.msra.mxu0 0.0
      %2202 = vmatprep.subr.mxu0 0.0
      %2203 = vmatpush2.msra.mxu0 0.0
      %2204 = vmatprep.subr.mxu0 0.0
      %2205 = vmatpush2.msra.mxu0 0.0
      %2206 = vmatprep.subr.mxu0 0.0
      %2207 = vmatpush2.msra.mxu0 0.0
      %2208 = vmatprep.subr.mxu0 0.0
      %2209 = vmatpush2.msra.mxu0 0.0
      %2210 = vmatprep.subr.mxu0 %v2074
      %2211 = vmatpush2.msra.mxu0 %v2073
      %2212 = vmatprep.subr.mxu0 %v2071
      %2213 = vmatpush2.msra.mxu0 %v2070
      %2214 = vmatprep.subr.mxu0 %v2068
      %2215 = vmatpush2.msra.mxu0 %v2067
      %2216 = vmatprep.subr.mxu0 %v2065
      %2217 = vmatpush2.msra.mxu0 %v2064
      %2218 = vmatprep.subr.mxu0 %v2062
      %2219 = vmatpush2.msra.mxu0 %v2061
      %2220 = vmatprep.subr.mxu0 %v2059
      %2221 = vmatpush2.msra.mxu0 %v2058
      %2222 = vmatprep.subr.mxu0 %v2056
      %2223 = vmatpush2.msra.mxu0 %v2055
      %2224 = vmatprep.subr.mxu0 %v2053
      %2225 = vmatpush2.msra.mxu0 %v2052
      %2226 = vmatprep.subr.mxu0 %v2050
      %2227 = vmatpush2.msra.mxu0 %v2049
      %2228 = vmatprep.mubr.f32.mxu0 %v2153
      %2229 = vmatmul.mubr.f32.gmra.mxu0 %v1368
      %v2230 = vpop.f32.mrf.mxu0
      %v2231 = vadd.f32 0.0, %v2230
      %v2232 = vpop.f32.mrf.mxu0
      %v2233 = vadd.f32 0.0, %v2232
      %2234 = vmatprep.mubr.f32.mxu0 %v2156
      %2235 = vmatmul.mubr.f32.gmra.mxu0 %v1370
      %v2236 = vpop.f32.mrf.mxu0
      %v2237 = vadd.f32 0.0, %v2236
      %v2238 = vpop.f32.mrf.mxu0
      %v2239 = vadd.f32 0.0, %v2238
      %2240 = vmatprep.mubr.f32.mxu0 %v2159
      %2241 = vmatmul.mubr.f32.gmra.mxu0 %v1372
      %v2242 = vpop.f32.mrf.mxu0
      %v2243 = vadd.f32 0.0, %v2242
      %v2244 = vpop.f32.mrf.mxu0
      %v2245 = vadd.f32 0.0, %v2244
      %2246 = vmatprep.mubr.f32.mxu0 %v2162
      %2247 = vmatmul.mubr.f32.gmra.mxu0 %v1374
      %v2248 = vpop.f32.mrf.mxu0
      %v2249 = vadd.f32 0.0, %v2248
      %v2250 = vpop.f32.mrf.mxu0
      %v2251 = vadd.f32 0.0, %v2250
      %2252 = vdwg.mxu0
      %2253 = vmatprep.subr.mxu0 0.0
      %2254 = vmatpush1.msra.mxu0 %v2048
      %2255 = vmatprep.subr.mxu0 0.0
      %2256 = vmatpush1.msra.mxu0 %v2045
      %2257 = vmatprep.subr.mxu0 0.0
      %2258 = vmatpush1.msra.mxu0 %v2042
      %2259 = vmatprep.subr.mxu0 0.0
      %2260 = vmatpush1.msra.mxu0 %v2039
      %2261 = vmatprep.subr.mxu0 0.0
      %2262 = vmatpush1.msra.mxu0 %v2036
      %2263 = vmatprep.subr.mxu0 0.0
      %2264 = vmatpush1.msra.mxu0 %v2033
      %2265 = vmatprep.subr.mxu0 0.0
      %2266 = vmatpush1.msra.mxu0 %v2030
      %2267 = vmatprep.subr.mxu0 0.0
      %2268 = vmatpush1.msra.mxu0 %v2027
      %2269 = vmatprep.subr.mxu0 0.0
      %2270 = vmatpush1.msra.mxu0 %v2024
      %2271 = vmatprep.subr.mxu0 0.0
      %2272 = vmatpush1.msra.mxu0 %v2021
      %2273 = vmatprep.subr.mxu0 0.0
      %2274 = vmatpush1.msra.mxu0 %v2018
      %2275 = vmatprep.subr.mxu0 0.0
      %2276 = vmatpush1.msra.mxu0 %v2015
      %2277 = vmatprep.subr.mxu0 0.0
      %2278 = vmatpush1.msra.mxu0 %v2012
      %2279 = vmatprep.subr.mxu0 0.0
      %2280 = vmatpush1.msra.mxu0 %v2009
      %2281 = vmatprep.subr.mxu0 0.0
      %2282 = vmatpush1.msra.mxu0 %v2006
      %2283 = vmatprep.subr.mxu0 0.0
      %2284 = vmatpush1.msra.mxu0 %v2003
      %2285 = vmatprep.subr.mxu0 0.0
      %2286 = vmatpush2.msra.mxu0 0.0
      %2287 = vmatprep.subr.mxu0 0.0
      %2288 = vmatpush2.msra.mxu0 0.0
      %2289 = vmatprep.subr.mxu0 0.0
      %2290 = vmatpush2.msra.mxu0 0.0
      %2291 = vmatprep.subr.mxu0 0.0
      %2292 = vmatpush2.msra.mxu0 0.0
      %2293 = vmatprep.subr.mxu0 0.0
      %2294 = vmatpush2.msra.mxu0 0.0
      %2295 = vmatprep.subr.mxu0 0.0
      %2296 = vmatpush2.msra.mxu0 0.0
      %2297 = vmatprep.subr.mxu0 0.0
      %2298 = vmatpush2.msra.mxu0 0.0
      %2299 = vmatprep.subr.mxu0 0.0
      %2300 = vmatpush2.msra.mxu0 %v2075
      %2301 = vmatprep.subr.mxu0 0.0
      %2302 = vmatpush2.msra.mxu0 %v2072
      %2303 = vmatprep.subr.mxu0 0.0
      %2304 = vmatpush2.msra.mxu0 %v2069
      %2305 = vmatprep.subr.mxu0 0.0
      %2306 = vmatpush2.msra.mxu0 %v2066
      %2307 = vmatprep.subr.mxu0 0.0
      %2308 = vmatpush2.msra.mxu0 %v2063
      %2309 = vmatprep.subr.mxu0 0.0
      %2310 = vmatpush2.msra.mxu0 %v2060
      %2311 = vmatprep.subr.mxu0 0.0
      %2312 = vmatpush2.msra.mxu0 %v2057
      %2313 = vmatprep.subr.mxu0 0.0
      %2314 = vmatpush2.msra.mxu0 %v2054
      %2315 = vmatprep.subr.mxu0 0.0
      %2316 = vmatpush2.msra.mxu0 %v2051
      %2317 = vmatprep.mubr.f32.mxu0 %v2153
      %2318 = vmatmul.mubr.f32.gmra.mxu0 %v1368
      %v2319 = vpop.f32.mrf.mxu0
      %v2320 = vadd.f32 0.0, %v2319
      %v2321 = vpop.f32.mrf.mxu0
      %2322 = vmatprep.mubr.f32.mxu0 %v2156
      %2323 = vmatmul.mubr.f32.gmra.mxu0 %v1370
      %v2324 = vpop.f32.mrf.mxu0
      %v2325 = vadd.f32 0.0, %v2324
      %v2326 = vpop.f32.mrf.mxu0
      %2327 = vmatprep.mubr.f32.mxu0 %v2159
      %2328 = vmatmul.mubr.f32.gmra.mxu0 %v1372
      %v2329 = vpop.f32.mrf.mxu0
      %v2330 = vadd.f32 0.0, %v2329
      %v2331 = vpop.f32.mrf.mxu0
      %2332 = vmatprep.mubr.f32.mxu0 %v2162
      %2333 = vmatmul.mubr.f32.gmra.mxu0 %v1374
      %v2334 = vpop.f32.mrf.mxu0
      %v2335 = vadd.f32 0.0, %v2334
      %v2336 = vpop.f32.mrf.mxu0
      %2337 = vdwg.mxu0
      %v2338 = vadd.f32 %v1469, %v2231
      %v2339 = vadd.f32 %v1470, %v2233
      %v2340 = vadd.f32 %v1471, %v2320
      %v2341 = vadd.f32 %v1472, %v2237
      %v2342 = vadd.f32 %v1473, %v2239
      %v2343 = vadd.f32 %v1474, %v2325
      %v2344 = vadd.f32 %v1475, %v2243
      %v2345 = vadd.f32 %v1476, %v2245
      %v2346 = vadd.f32 %v1477, %v2330
      %v2347 = vadd.f32 %v1478, %v2249
      %v2348 = vadd.f32 %v1479, %v2251
      %v2349 = vadd.f32 %v1480, %v2335
      %v2350 = vxor.u32 %v2338, 2147483648
      %v2351 = vxor.u32 %v2339, 2147483648
      %v2352 = vxor.u32 %v2340, 2147483648
      %v2353 = vmul.f32 %v2350, 1.442695
      %v2354 = vpow.pop %v2353
      %v2355 = vmul.f32 %v2351, 1.442695
      %v2356 = vpow.pop %v2355
      %v2357 = vmul.f32 %v2352, 1.442695
      %v2358 = vpow.pop %v2357
      %v2359 = vadd.f32 %v2354, 1.0
      %v2360 = vadd.f32 %v2356, 1.0
      %v2361 = vadd.f32 %v2358, 1.0
      %v2362 = vrcp.pop %v2359
      %v2363 = vmul.f32 1.0, %v2362
      %v2364 = vrcp.pop %v2360
      %v2365 = vmul.f32 1.0, %v2364
      %v2366 = vrcp.pop %v2361
      %v2367 = vmul.f32 1.0, %v2366
      %v2368 = vxor.u32 %v2341, 2147483648
      %v2369 = vxor.u32 %v2342, 2147483648
      %v2370 = vxor.u32 %v2343, 2147483648
      %v2371 = vmul.f32 %v2368, 1.442695
      %v2372 = vpow.pop %v2371
      %v2373 = vmul.f32 %v2369, 1.442695
      %v2374 = vpow.pop %v2373
      %v2375 = vmul.f32 %v2370, 1.442695
      %v2376 = vpow.pop %v2375
      %v2377 = vadd.f32 %v2372, 1.0
      %v2378 = vadd.f32 %v2374, 1.0
      %v2379 = vadd.f32 %v2376, 1.0
      %v2380 = vrcp.pop %v2377
      %v2381 = vmul.f32 1.0, %v2380
      %v2382 = vrcp.pop %v2378
      %v2383 = vmul.f32 1.0, %v2382
      %v2384 = vrcp.pop %v2379
      %v2385 = vmul.f32 1.0, %v2384
      %v2386 = vxor.u32 %v2344, 2147483648
      %v2387 = vxor.u32 %v2345, 2147483648
      %v2388 = vxor.u32 %v2346, 2147483648
      %v2389 = vmul.f32 %v2386, 1.442695
      %v2390 = vpow.pop %v2389
      %v2391 = vmul.f32 %v2387, 1.442695
      %v2392 = vpow.pop %v2391
      %v2393 = vmul.f32 %v2388, 1.442695
      %v2394 = vpow.pop %v2393
      %v2395 = vadd.f32 %v2390, 1.0
      %v2396 = vadd.f32 %v2392, 1.0
      %v2397 = vadd.f32 %v2394, 1.0
      %v2398 = vrcp.pop %v2395
      %v2399 = vmul.f32 1.0, %v2398
      %v2400 = vrcp.pop %v2396
      %v2401 = vmul.f32 1.0, %v2400
      %v2402 = vrcp.pop %v2397
      %v2403 = vmul.f32 1.0, %v2402
      %v2404 = vtanh.pop %v2347
      %v2405 = vtanh.pop %v2348
      %v2406 = vtanh.pop %v2349
      %v2407 = vmul.f32 %v1451, %v2381
      %v2408 = vmul.f32 %v1452, %v2383
      %v2409 = vmul.f32 %v1453, %v2385
      %v2410 = vmul.f32 %v2363, %v2404
      %v2411 = vmul.f32 %v2365, %v2405
      %v2412 = vmul.f32 %v2367, %v2406
      %v2413 = vadd.f32 %v2407, %v2410
      %v2414 = vadd.f32 %v2408, %v2411
      %v2415 = vadd.f32 %v2409, %v2412
      %v2416 = vtanh.pop %v2413
      %v2417 = vtanh.pop %v2414
      %v2418 = vtanh.pop %v2415
      %v2419 = vmul.f32 %v2399, %v2416
      %v2420 = vmul.f32 %v2401, %v2417
      %v2421 = vmul.f32 %v2403, %v2418
      %2422 = vst [vmem:[#allocation4 + $0x18] sm:$0xff] %v2419
      %2423 = vst [vmem:[#allocation4 + $0x20] sm:$0xff] %v2420
      %2424 = vst [vmem:[#allocation4 + $0x28] sm:$0xff] %v2421
      %v2425 = vmul.f32 %v2419, %v1360
      %v2426 = vmul.f32 %v2420, %v1361
      %v2427 = vmul.f32 %v2421, %v1362
      %2428 = vst [vmem:[#allocation3 + $0x8] sm:$0xff] %v2425
      %2429 = vst [vmem:[#allocation3 + $0x10] sm:$0xff] %v2426
      %2430 = vst [vmem:[#allocation3 + $0x18] sm:$0xff] %v2427
      %v2431 = vld [vmem:[#allocation2 + $0x30] sm:$0xff]
      %v2432 = vld [vmem:[#allocation2 + $0x38] sm:$0xff]
      %v2433 = vld [vmem:[#allocation2 + $0x40] sm:$0xff]
      %v2434 = vld [vmem:[#allocation2 + $0xa8] sm:$0xff]
      %v2435 = vld [vmem:[#allocation2 + $0xb0] sm:$0xff]
      %v2436 = vld [vmem:[#allocation2 + $0xb8] sm:$0xff]
      %v2437 = vld [vmem:[#allocation2 + $0x120] sm:$0xff]
      %v2438 = vld [vmem:[#allocation2 + $0x128] sm:$0xff]
      %v2439 = vld [vmem:[#allocation2 + $0x130] sm:$0xff]
      %v2440 = vld [vmem:[#allocation2 + $0x198] sm:$0xff]
      %v2441 = vld [vmem:[#allocation2 + $0x1a0] sm:$0xff]
      %v2442 = vld [vmem:[#allocation2 + $0x1a8] sm:$0xff]
      %v2443 = vld [vmem:[#allocation3] sm:$0xff]
      %v2444 = vld [vmem:[#allocation3 + $0x8] sm:$0xff]
      %v2445 = vld [vmem:[#allocation3 + $0x10] sm:$0xff]
      %v2446 = vld [vmem:[#allocation3 + $0x18] sm:$0xff]
      %v2447 = vld [vmem:[#allocation3 + $0x20] sm:$0xff]
      %2452 = vrot.lane.b32.xlu0 %v2443, 127
      %v2453 = vpop.permute.xlu0 %2452
      %2454 = vrot.lane.b32.xlu0 %v2444, 127
      %v2455 = vpop.permute.xlu0 %2454
      %2456 = vrot.lane.b32.xlu0 %v2445, 127
      %v2457 = vpop.permute.xlu0 %2456
      %2458 = vrot.lane.b32.xlu0 %v2446, 127
      %v2459 = vpop.permute.xlu0 %2458
      %v2460 = vsel %vm1498, %v2453, %v2455
      %v2461 = vsel %vm1498, %v2455, %v2457
      %v2462 = vsel %vm1498, %v2457, %v2459
      %2463 = vrot.lane.b32.xlu0 %v2443, 126
      %v2464 = vpop.permute.xlu0 %2463
      %2465 = vrot.lane.b32.xlu0 %v2444, 126
      %v2466 = vpop.permute.xlu0 %2465
      %2467 = vrot.lane.b32.xlu0 %v2445, 126
      %v2468 = vpop.permute.xlu0 %2467
      %2469 = vrot.lane.b32.xlu0 %v2446, 126
      %v2470 = vpop.permute.xlu0 %2469
      %v2471 = vsel %vm1510, %v2464, %v2466
      %v2472 = vsel %vm1510, %v2466, %v2468
      %v2473 = vsel %vm1510, %v2468, %v2470
      %2474 = vrot.lane.b32.xlu0 %v2443, 125
      %v2475 = vpop.permute.xlu0 %2474
      %2476 = vrot.lane.b32.xlu0 %v2444, 125
      %v2477 = vpop.permute.xlu0 %2476
      %2478 = vrot.lane.b32.xlu0 %v2445, 125
      %v2479 = vpop.permute.xlu0 %2478
      %2480 = vrot.lane.b32.xlu0 %v2446, 125
      %v2481 = vpop.permute.xlu0 %2480
      %v2482 = vsel %vm1522, %v2475, %v2477
      %v2483 = vsel %vm1522, %v2477, %v2479
      %v2484 = vsel %vm1522, %v2479, %v2481
      %2485 = vrot.lane.b32.xlu0 %v2443, 124
      %v2486 = vpop.permute.xlu0 %2485
      %2487 = vrot.lane.b32.xlu0 %v2444, 124
      %v2488 = vpop.permute.xlu0 %2487
      %2489 = vrot.lane.b32.xlu0 %v2445, 124
      %v2490 = vpop.permute.xlu0 %2489
      %2491 = vrot.lane.b32.xlu0 %v2446, 124
      %v2492 = vpop.permute.xlu0 %2491
      %v2493 = vsel %vm1534, %v2486, %v2488
      %v2494 = vsel %vm1534, %v2488, %v2490
      %v2495 = vsel %vm1534, %v2490, %v2492
      %2496 = vrot.lane.b32.xlu0 %v2443, 104
      %v2497 = vpop.permute.xlu0 %2496
      %2498 = vrot.lane.b32.xlu0 %v2444, 104
      %v2499 = vpop.permute.xlu0 %2498
      %2500 = vrot.lane.b32.xlu0 %v2445, 104
      %v2501 = vpop.permute.xlu0 %2500
      %2502 = vrot.lane.b32.xlu0 %v2446, 104
      %v2503 = vpop.permute.xlu0 %2502
      %v2504 = vsel %vm1546, %v2497, %v2499
      %v2505 = vsel %vm1546, %v2499, %v2501
      %v2506 = vsel %vm1546, %v2501, %v2503
      %2507 = vrot.lane.b32.xlu0 %v2443, 103
      %v2508 = vpop.permute.xlu0 %2507
      %2509 = vrot.lane.b32.xlu0 %v2444, 103
      %v2510 = vpop.permute.xlu0 %2509
      %2511 = vrot.lane.b32.xlu0 %v2445, 103
      %v2512 = vpop.permute.xlu0 %2511
      %2513 = vrot.lane.b32.xlu0 %v2446, 103
      %v2514 = vpop.permute.xlu0 %2513
      %v2515 = vsel %vm1558, %v2508, %v2510
      %v2516 = vsel %vm1558, %v2510, %v2512
      %v2517 = vsel %vm1558, %v2512, %v2514
      %2518 = vrot.lane.b32.xlu0 %v2443, 102
      %v2519 = vpop.permute.xlu0 %2518
      %2520 = vrot.lane.b32.xlu0 %v2444, 102
      %v2521 = vpop.permute.xlu0 %2520
      %2522 = vrot.lane.b32.xlu0 %v2445, 102
      %v2523 = vpop.permute.xlu0 %2522
      %2524 = vrot.lane.b32.xlu0 %v2446, 102
      %v2525 = vpop.permute.xlu0 %2524
      %v2526 = vsel %vm1570, %v2519, %v2521
      %v2527 = vsel %vm1570, %v2521, %v2523
      %v2528 = vsel %vm1570, %v2523, %v2525
      %2529 = vrot.lane.b32.xlu0 %v2443, 101
      %v2530 = vpop.permute.xlu0 %2529
      %2531 = vrot.lane.b32.xlu0 %v2444, 101
      %v2532 = vpop.permute.xlu0 %2531
      %2533 = vrot.lane.b32.xlu0 %v2445, 101
      %v2534 = vpop.permute.xlu0 %2533
      %2535 = vrot.lane.b32.xlu0 %v2446, 101
      %v2536 = vpop.permute.xlu0 %2535
      %v2537 = vsel %vm1582, %v2530, %v2532
      %v2538 = vsel %vm1582, %v2532, %v2534
      %v2539 = vsel %vm1582, %v2534, %v2536
      %2540 = vrot.lane.b32.xlu0 %v2443, 100
      %v2541 = vpop.permute.xlu0 %2540
      %2542 = vrot.lane.b32.xlu0 %v2444, 100
      %v2543 = vpop.permute.xlu0 %2542
      %2544 = vrot.lane.b32.xlu0 %v2445, 100
      %v2545 = vpop.permute.xlu0 %2544
      %2546 = vrot.lane.b32.xlu0 %v2446, 100
      %v2547 = vpop.permute.xlu0 %2546
      %v2548 = vsel %vm475, %v2541, %v2543
      %v2549 = vsel %vm475, %v2543, %v2545
      %v2550 = vsel %vm475, %v2545, %v2547
      %2551 = vrot.lane.b32.xlu0 %v2443, 80
      %v2552 = vpop.permute.xlu0 %2551
      %2553 = vrot.lane.b32.xlu0 %v2444, 80
      %v2554 = vpop.permute.xlu0 %2553
      %2555 = vrot.lane.b32.xlu0 %v2445, 80
      %v2556 = vpop.permute.xlu0 %2555
      %2557 = vrot.lane.b32.xlu0 %v2446, 80
      %v2558 = vpop.permute.xlu0 %2557
      %v2559 = vsel %vm1605, %v2552, %v2554
      %v2560 = vsel %vm1605, %v2554, %v2556
      %v2561 = vsel %vm1605, %v2556, %v2558
      %2562 = vrot.lane.b32.xlu0 %v2443, 79
      %v2563 = vpop.permute.xlu0 %2562
      %2564 = vrot.lane.b32.xlu0 %v2444, 79
      %v2565 = vpop.permute.xlu0 %2564
      %2566 = vrot.lane.b32.xlu0 %v2445, 79
      %v2567 = vpop.permute.xlu0 %2566
      %2568 = vrot.lane.b32.xlu0 %v2446, 79
      %v2569 = vpop.permute.xlu0 %2568
      %v2570 = vsel %vm1617, %v2563, %v2565
      %v2571 = vsel %vm1617, %v2565, %v2567
      %v2572 = vsel %vm1617, %v2567, %v2569
      %2573 = vrot.lane.b32.xlu0 %v2444, 78
      %v2574 = vpop.permute.xlu0 %2573
      %2575 = vrot.lane.b32.xlu0 %v2445, 78
      %v2576 = vpop.permute.xlu0 %2575
      %2577 = vrot.lane.b32.xlu0 %v2446, 78
      %v2578 = vpop.permute.xlu0 %2577
      %v2579 = vsel %vm1627, %v2574, %v2576
      %v2580 = vsel %vm1627, %v2576, %v2578
      %2582 = vrot.lane.b32.xlu0 %v2444, 77
      %v2583 = vpop.permute.xlu0 %2582
      %2584 = vrot.lane.b32.xlu0 %v2445, 77
      %v2585 = vpop.permute.xlu0 %2584
      %2586 = vrot.lane.b32.xlu0 %v2446, 77
      %v2587 = vpop.permute.xlu0 %2586
      %2588 = vrot.lane.b32.xlu0 %v2447, 77
      %v2589 = vpop.permute.xlu0 %2588
      %v2590 = vsel %vm1639, %v2583, %v2585
      %v2591 = vsel %vm1639, %v2585, %v2587
      %v2592 = vsel %vm1639, %v2587, %v2589
      %2593 = vrot.lane.b32.xlu0 %v2444, 76
      %v2594 = vpop.permute.xlu0 %2593
      %2595 = vrot.lane.b32.xlu0 %v2445, 76
      %v2596 = vpop.permute.xlu0 %2595
      %2597 = vrot.lane.b32.xlu0 %v2446, 76
      %v2598 = vpop.permute.xlu0 %2597
      %2599 = vrot.lane.b32.xlu0 %v2447, 76
      %v2600 = vpop.permute.xlu0 %2599
      %v2601 = vsel %vm1651, %v2594, %v2596
      %v2602 = vsel %vm1651, %v2596, %v2598
      %v2603 = vsel %vm1651, %v2598, %v2600
      %2604 = vrot.lane.b32.xlu0 %v2444, 56
      %v2605 = vpop.permute.xlu0 %2604
      %2606 = vrot.lane.b32.xlu0 %v2445, 56
      %v2607 = vpop.permute.xlu0 %2606
      %2608 = vrot.lane.b32.xlu0 %v2446, 56
      %v2609 = vpop.permute.xlu0 %2608
      %2610 = vrot.lane.b32.xlu0 %v2447, 56
      %v2611 = vpop.permute.xlu0 %2610
      %v2612 = vsel %vm1663, %v2605, %v2607
      %v2613 = vsel %vm1663, %v2607, %v2609
      %v2614 = vsel %vm1663, %v2609, %v2611
      %2615 = vrot.lane.b32.xlu0 %v2447, 127
      %v2616 = vpop.permute.xlu0 %2615
      %v2617 = vsel %vm1498, %v2459, %v2616
      %2618 = vrot.lane.b32.xlu0 %v2447, 126
      %v2619 = vpop.permute.xlu0 %2618
      %v2620 = vsel %vm1510, %v2470, %v2619
      %2621 = vrot.lane.b32.xlu0 %v2447, 125
      %v2622 = vpop.permute.xlu0 %2621
      %v2623 = vsel %vm1522, %v2481, %v2622
      %2624 = vrot.lane.b32.xlu0 %v2444, 105
      %v2625 = vpop.permute.xlu0 %2624
      %2626 = vrot.lane.b32.xlu0 %v2445, 105
      %v2627 = vpop.permute.xlu0 %2626
      %2628 = vrot.lane.b32.xlu0 %v2446, 105
      %v2629 = vpop.permute.xlu0 %2628
      %2630 = vrot.lane.b32.xlu0 %v2447, 105
      %v2631 = vpop.permute.xlu0 %2630
      %v2632 = vsel %vm1684, %v2625, %v2627
      %v2633 = vsel %vm1684, %v2627, %v2629
      %v2634 = vsel %vm1684, %v2629, %v2631
      %2635 = vrot.lane.b32.xlu0 %v2447, 104
      %v2636 = vpop.permute.xlu0 %2635
      %v2637 = vsel %vm1546, %v2503, %v2636
      %2638 = vrot.lane.b32.xlu0 %v2447, 103
      %v2639 = vpop.permute.xlu0 %2638
      %v2640 = vsel %vm1558, %v2514, %v2639
      %2641 = vrot.lane.b32.xlu0 %v2447, 102
      %v2642 = vpop.permute.xlu0 %2641
      %v2643 = vsel %vm1570, %v2525, %v2642
      %2644 = vrot.lane.b32.xlu0 %v2447, 101
      %v2645 = vpop.permute.xlu0 %2644
      %v2646 = vsel %vm1582, %v2536, %v2645
      %2647 = vrot.lane.b32.xlu0 %v2444, 55
      %v2648 = vpop.permute.xlu0 %2647
      %2649 = vrot.lane.b32.xlu0 %v2445, 55
      %v2650 = vpop.permute.xlu0 %2649
      %2651 = vrot.lane.b32.xlu0 %v2446, 55
      %v2652 = vpop.permute.xlu0 %2651
      %2653 = vrot.lane.b32.xlu0 %v2447, 55
      %v2654 = vpop.permute.xlu0 %2653
      %2655 = vrot.lane.b32.xlu0 %v2461, 55
      %v2656 = vpop.permute.xlu0 %2655
      %2657 = vrot.lane.b32.xlu0 %v2462, 55
      %v2658 = vpop.permute.xlu0 %2657
      %2659 = vrot.lane.b32.xlu0 %v2617, 55
      %v2660 = vpop.permute.xlu0 %2659
      %2661 = vrot.lane.b32.xlu0 %v2616, 55
      %v2662 = vpop.permute.xlu0 %2661
      %2663 = vrot.lane.b32.xlu0 %v2472, 55
      %v2664 = vpop.permute.xlu0 %2663
      %2665 = vrot.lane.b32.xlu0 %v2473, 55
      %v2666 = vpop.permute.xlu0 %2665
      %2667 = vrot.lane.b32.xlu0 %v2620, 55
      %v2668 = vpop.permute.xlu0 %2667
      %2669 = vrot.lane.b32.xlu0 %v2619, 55
      %v2670 = vpop.permute.xlu0 %2669
      %2671 = vrot.lane.b32.xlu0 %v2483, 55
      %v2672 = vpop.permute.xlu0 %2671
      %2673 = vrot.lane.b32.xlu0 %v2484, 55
      %v2674 = vpop.permute.xlu0 %2673
      %2675 = vrot.lane.b32.xlu0 %v2623, 55
      %v2676 = vpop.permute.xlu0 %2675
      %2677 = vrot.lane.b32.xlu0 %v2622, 55
      %v2678 = vpop.permute.xlu0 %2677
      %2679 = vrot.lane.b32.xlu0 %v2632, 55
      %v2680 = vpop.permute.xlu0 %2679
      %2681 = vrot.lane.b32.xlu0 %v2633, 55
      %v2682 = vpop.permute.xlu0 %2681
      %2683 = vrot.lane.b32.xlu0 %v2634, 55
      %v2684 = vpop.permute.xlu0 %2683
      %2685 = vrot.lane.b32.xlu0 %v2631, 55
      %v2686 = vpop.permute.xlu0 %2685
      %2687 = vrot.lane.b32.xlu0 %v2505, 55
      %v2688 = vpop.permute.xlu0 %2687
      %2689 = vrot.lane.b32.xlu0 %v2506, 55
      %v2690 = vpop.permute.xlu0 %2689
      %2691 = vrot.lane.b32.xlu0 %v2637, 55
      %v2692 = vpop.permute.xlu0 %2691
      %2693 = vrot.lane.b32.xlu0 %v2636, 55
      %v2694 = vpop.permute.xlu0 %2693
      %2695 = vrot.lane.b32.xlu0 %v2516, 55
      %v2696 = vpop.permute.xlu0 %2695
      %2697 = vrot.lane.b32.xlu0 %v2517, 55
      %v2698 = vpop.permute.xlu0 %2697
      %2699 = vrot.lane.b32.xlu0 %v2640, 55
      %v2700 = vpop.permute.xlu0 %2699
      %2701 = vrot.lane.b32.xlu0 %v2639, 55
      %v2702 = vpop.permute.xlu0 %2701
      %2703 = vrot.lane.b32.xlu0 %v2527, 55
      %v2704 = vpop.permute.xlu0 %2703
      %2705 = vrot.lane.b32.xlu0 %v2528, 55
      %v2706 = vpop.permute.xlu0 %2705
      %2707 = vrot.lane.b32.xlu0 %v2643, 55
      %v2708 = vpop.permute.xlu0 %2707
      %2709 = vrot.lane.b32.xlu0 %v2642, 55
      %v2710 = vpop.permute.xlu0 %2709
      %2711 = vrot.lane.b32.xlu0 %v2538, 55
      %v2712 = vpop.permute.xlu0 %2711
      %2713 = vrot.lane.b32.xlu0 %v2539, 55
      %v2714 = vpop.permute.xlu0 %2713
      %2715 = vrot.lane.b32.xlu0 %v2646, 55
      %v2716 = vpop.permute.xlu0 %2715
      %2717 = vrot.lane.b32.xlu0 %v2645, 55
      %v2718 = vpop.permute.xlu0 %2717
      %v2719 = vsel %vm1772, %v2648, %v2650
      %v2720 = vsel %vm1772, %v2650, %v2652
      %v2721 = vsel %vm1772, %v2652, %v2654
      %v2722 = vsel %vm1772, %v2656, %v2658
      %v2723 = vsel %vm1772, %v2658, %v2660
      %v2724 = vsel %vm1772, %v2660, %v2662
      %v2725 = vsel %vm1772, %v2664, %v2666
      %v2726 = vsel %vm1772, %v2666, %v2668
      %v2727 = vsel %vm1772, %v2668, %v2670
      %v2728 = vsel %vm1772, %v2672, %v2674
      %v2729 = vsel %vm1772, %v2674, %v2676
      %v2730 = vsel %vm1772, %v2676, %v2678
      %v2731 = vsel %vm1772, %v2680, %v2682
      %v2732 = vsel %vm1772, %v2682, %v2684
      %v2733 = vsel %vm1772, %v2684, %v2686
      %v2734 = vsel %vm1772, %v2688, %v2690
      %v2735 = vsel %vm1772, %v2690, %v2692
      %v2736 = vsel %vm1772, %v2692, %v2694
      %v2737 = vsel %vm1772, %v2696, %v2698
      %v2738 = vsel %vm1772, %v2698, %v2700
      %v2739 = vsel %vm1772, %v2700, %v2702
      %v2740 = vsel %vm1772, %v2704, %v2706
      %v2741 = vsel %vm1772, %v2706, %v2708
      %v2742 = vsel %vm1772, %v2708, %v2710
      %v2743 = vsel %vm1772, %v2712, %v2714
      %v2744 = vsel %vm1772, %v2714, %v2716
      %v2745 = vsel %vm1772, %v2716, %v2718
      %2746 = vrot.lane.b32.xlu0 %v2443, 50
      %v2747 = vpop.permute.xlu0 %2746
      %2748 = vrot.lane.b32.xlu0 %v2444, 50
      %v2749 = vpop.permute.xlu0 %2748
      %2750 = vrot.lane.b32.xlu0 %v2445, 50
      %v2751 = vpop.permute.xlu0 %2750
      %2752 = vrot.lane.b32.xlu0 %v2446, 50
      %v2753 = vpop.permute.xlu0 %2752
      %2754 = vrot.lane.b32.xlu0 %v2460, 50
      %v2755 = vpop.permute.xlu0 %2754
      %2756 = vrot.lane.b32.xlu0 %v2461, 50
      %v2757 = vpop.permute.xlu0 %2756
      %2758 = vrot.lane.b32.xlu0 %v2462, 50
      %v2759 = vpop.permute.xlu0 %2758
      %2760 = vrot.lane.b32.xlu0 %v2459, 50
      %v2761 = vpop.permute.xlu0 %2760
      %2762 = vrot.lane.b32.xlu0 %v2471, 50
      %v2763 = vpop.permute.xlu0 %2762
      %2764 = vrot.lane.b32.xlu0 %v2472, 50
      %v2765 = vpop.permute.xlu0 %2764
      %2766 = vrot.lane.b32.xlu0 %v2473, 50
      %v2767 = vpop.permute.xlu0 %2766
      %2768 = vrot.lane.b32.xlu0 %v2470, 50
      %v2769 = vpop.permute.xlu0 %2768
      %2770 = vrot.lane.b32.xlu0 %v2482, 50
      %v2771 = vpop.permute.xlu0 %2770
      %2772 = vrot.lane.b32.xlu0 %v2483, 50
      %v2773 = vpop.permute.xlu0 %2772
      %2774 = vrot.lane.b32.xlu0 %v2484, 50
      %v2775 = vpop.permute.xlu0 %2774
      %2776 = vrot.lane.b32.xlu0 %v2481, 50
      %v2777 = vpop.permute.xlu0 %2776
      %2778 = vrot.lane.b32.xlu0 %v2493, 50
      %v2779 = vpop.permute.xlu0 %2778
      %2780 = vrot.lane.b32.xlu0 %v2494, 50
      %v2781 = vpop.permute.xlu0 %2780
      %2782 = vrot.lane.b32.xlu0 %v2495, 50
      %v2783 = vpop.permute.xlu0 %2782
      %2784 = vrot.lane.b32.xlu0 %v2492, 50
      %v2785 = vpop.permute.xlu0 %2784
      %2786 = vrot.lane.b32.xlu0 %v2504, 50
      %v2787 = vpop.permute.xlu0 %2786
      %2788 = vrot.lane.b32.xlu0 %v2505, 50
      %v2789 = vpop.permute.xlu0 %2788
      %2790 = vrot.lane.b32.xlu0 %v2506, 50
      %v2791 = vpop.permute.xlu0 %2790
      %2792 = vrot.lane.b32.xlu0 %v2503, 50
      %v2793 = vpop.permute.xlu0 %2792
      %2794 = vrot.lane.b32.xlu0 %v2515, 50
      %v2795 = vpop.permute.xlu0 %2794
      %2796 = vrot.lane.b32.xlu0 %v2516, 50
      %v2797 = vpop.permute.xlu0 %2796
      %2798 = vrot.lane.b32.xlu0 %v2517, 50
      %v2799 = vpop.permute.xlu0 %2798
      %2800 = vrot.lane.b32.xlu0 %v2514, 50
      %v2801 = vpop.permute.xlu0 %2800
      %2802 = vrot.lane.b32.xlu0 %v2526, 50
      %v2803 = vpop.permute.xlu0 %2802
      %2804 = vrot.lane.b32.xlu0 %v2527, 50
      %v2805 = vpop.permute.xlu0 %2804
      %2806 = vrot.lane.b32.xlu0 %v2528, 50
      %v2807 = vpop.permute.xlu0 %2806
      %2808 = vrot.lane.b32.xlu0 %v2525, 50
      %v2809 = vpop.permute.xlu0 %2808
      %2810 = vrot.lane.b32.xlu0 %v2537, 50
      %v2811 = vpop.permute.xlu0 %2810
      %2812 = vrot.lane.b32.xlu0 %v2538, 50
      %v2813 = vpop.permute.xlu0 %2812
      %2814 = vrot.lane.b32.xlu0 %v2539, 50
      %v2815 = vpop.permute.xlu0 %2814
      %2816 = vrot.lane.b32.xlu0 %v2536, 50
      %v2817 = vpop.permute.xlu0 %2816
      %2818 = vrot.lane.b32.xlu0 %v2548, 50
      %v2819 = vpop.permute.xlu0 %2818
      %2820 = vrot.lane.b32.xlu0 %v2549, 50
      %v2821 = vpop.permute.xlu0 %2820
      %2822 = vrot.lane.b32.xlu0 %v2550, 50
      %v2823 = vpop.permute.xlu0 %2822
      %2824 = vrot.lane.b32.xlu0 %v2547, 50
      %v2825 = vpop.permute.xlu0 %2824
      %2826 = vrot.lane.b32.xlu0 %v2559, 50
      %v2827 = vpop.permute.xlu0 %2826
      %2828 = vrot.lane.b32.xlu0 %v2560, 50
      %v2829 = vpop.permute.xlu0 %2828
      %2830 = vrot.lane.b32.xlu0 %v2561, 50
      %v2831 = vpop.permute.xlu0 %2830
      %2832 = vrot.lane.b32.xlu0 %v2558, 50
      %v2833 = vpop.permute.xlu0 %2832
      %2834 = vrot.lane.b32.xlu0 %v2570, 50
      %v2835 = vpop.permute.xlu0 %2834
      %2836 = vrot.lane.b32.xlu0 %v2571, 50
      %v2837 = vpop.permute.xlu0 %2836
      %2838 = vrot.lane.b32.xlu0 %v2572, 50
      %v2839 = vpop.permute.xlu0 %2838
      %2840 = vrot.lane.b32.xlu0 %v2569, 50
      %v2841 = vpop.permute.xlu0 %2840
      %2842 = vrot.lane.b32.xlu0 %v2574, 50
      %v2843 = vpop.permute.xlu0 %2842
      %2844 = vrot.lane.b32.xlu0 %v2579, 50
      %v2845 = vpop.permute.xlu0 %2844
      %2846 = vrot.lane.b32.xlu0 %v2580, 50
      %v2847 = vpop.permute.xlu0 %2846
      %2848 = vrot.lane.b32.xlu0 %v2578, 50
      %v2849 = vpop.permute.xlu0 %2848
      %2850 = vrot.lane.b32.xlu0 %v2583, 50
      %v2851 = vpop.permute.xlu0 %2850
      %2852 = vrot.lane.b32.xlu0 %v2590, 50
      %v2853 = vpop.permute.xlu0 %2852
      %2854 = vrot.lane.b32.xlu0 %v2591, 50
      %v2855 = vpop.permute.xlu0 %2854
      %2856 = vrot.lane.b32.xlu0 %v2592, 50
      %v2857 = vpop.permute.xlu0 %2856
      %2858 = vrot.lane.b32.xlu0 %v2594, 50
      %v2859 = vpop.permute.xlu0 %2858
      %2860 = vrot.lane.b32.xlu0 %v2601, 50
      %v2861 = vpop.permute.xlu0 %2860
      %2862 = vrot.lane.b32.xlu0 %v2602, 50
      %v2863 = vpop.permute.xlu0 %2862
      %2864 = vrot.lane.b32.xlu0 %v2603, 50
      %v2865 = vpop.permute.xlu0 %2864
      %2866 = vrot.lane.b32.xlu0 %v2605, 50
      %v2867 = vpop.permute.xlu0 %2866
      %2868 = vrot.lane.b32.xlu0 %v2612, 50
      %v2869 = vpop.permute.xlu0 %2868
      %2870 = vrot.lane.b32.xlu0 %v2613, 50
      %v2871 = vpop.permute.xlu0 %2870
      %2872 = vrot.lane.b32.xlu0 %v2614, 50
      %v2873 = vpop.permute.xlu0 %2872
      %2874 = vrot.lane.b32.xlu0 %v2648, 50
      %v2875 = vpop.permute.xlu0 %2874
      %2876 = vrot.lane.b32.xlu0 %v2719, 50
      %v2877 = vpop.permute.xlu0 %2876
      %2878 = vrot.lane.b32.xlu0 %v2720, 50
      %v2879 = vpop.permute.xlu0 %2878
      %2880 = vrot.lane.b32.xlu0 %v2721, 50
      %v2881 = vpop.permute.xlu0 %2880
      %2882 = vrot.lane.b32.xlu0 %v2656, 50
      %v2883 = vpop.permute.xlu0 %2882
      %2884 = vrot.lane.b32.xlu0 %v2722, 50
      %v2885 = vpop.permute.xlu0 %2884
      %2886 = vrot.lane.b32.xlu0 %v2723, 50
      %v2887 = vpop.permute.xlu0 %2886
      %2888 = vrot.lane.b32.xlu0 %v2724, 50
      %v2889 = vpop.permute.xlu0 %2888
      %2890 = vrot.lane.b32.xlu0 %v2664, 50
      %v2891 = vpop.permute.xlu0 %2890
      %2892 = vrot.lane.b32.xlu0 %v2725, 50
      %v2893 = vpop.permute.xlu0 %2892
      %2894 = vrot.lane.b32.xlu0 %v2726, 50
      %v2895 = vpop.permute.xlu0 %2894
      %2896 = vrot.lane.b32.xlu0 %v2727, 50
      %v2897 = vpop.permute.xlu0 %2896
      %2898 = vrot.lane.b32.xlu0 %v2672, 50
      %v2899 = vpop.permute.xlu0 %2898
      %2900 = vrot.lane.b32.xlu0 %v2728, 50
      %v2901 = vpop.permute.xlu0 %2900
      %2902 = vrot.lane.b32.xlu0 %v2729, 50
      %v2903 = vpop.permute.xlu0 %2902
      %2904 = vrot.lane.b32.xlu0 %v2730, 50
      %v2905 = vpop.permute.xlu0 %2904
      %2906 = vrot.lane.b32.xlu0 %v2680, 50
      %v2907 = vpop.permute.xlu0 %2906
      %2908 = vrot.lane.b32.xlu0 %v2731, 50
      %v2909 = vpop.permute.xlu0 %2908
      %2910 = vrot.lane.b32.xlu0 %v2732, 50
      %v2911 = vpop.permute.xlu0 %2910
      %2912 = vrot.lane.b32.xlu0 %v2733, 50
      %v2913 = vpop.permute.xlu0 %2912
      %2914 = vrot.lane.b32.xlu0 %v2688, 50
      %v2915 = vpop.permute.xlu0 %2914
      %2916 = vrot.lane.b32.xlu0 %v2734, 50
      %v2917 = vpop.permute.xlu0 %2916
      %2918 = vrot.lane.b32.xlu0 %v2735, 50
      %v2919 = vpop.permute.xlu0 %2918
      %2920 = vrot.lane.b32.xlu0 %v2736, 50
      %v2921 = vpop.permute.xlu0 %2920
      %2922 = vrot.lane.b32.xlu0 %v2696, 50
      %v2923 = vpop.permute.xlu0 %2922
      %2924 = vrot.lane.b32.xlu0 %v2737, 50
      %v2925 = vpop.permute.xlu0 %2924
      %2926 = vrot.lane.b32.xlu0 %v2738, 50
      %v2927 = vpop.permute.xlu0 %2926
      %2928 = vrot.lane.b32.xlu0 %v2739, 50
      %v2929 = vpop.permute.xlu0 %2928
      %2930 = vrot.lane.b32.xlu0 %v2704, 50
      %v2931 = vpop.permute.xlu0 %2930
      %2932 = vrot.lane.b32.xlu0 %v2740, 50
      %v2933 = vpop.permute.xlu0 %2932
      %2934 = vrot.lane.b32.xlu0 %v2741, 50
      %v2935 = vpop.permute.xlu0 %2934
      %2936 = vrot.lane.b32.xlu0 %v2742, 50
      %v2937 = vpop.permute.xlu0 %2936
      %2938 = vrot.lane.b32.xlu0 %v2712, 50
      %v2939 = vpop.permute.xlu0 %2938
      %2940 = vrot.lane.b32.xlu0 %v2743, 50
      %v2941 = vpop.permute.xlu0 %2940
      %2942 = vrot.lane.b32.xlu0 %v2744, 50
      %v2943 = vpop.permute.xlu0 %2942
      %2944 = vrot.lane.b32.xlu0 %v2745, 50
      %v2945 = vpop.permute.xlu0 %2944
      %v2946 = vsel %vm2000, %v2747, %v2749
      %v2947 = vsel %vm2000, %v2749, %v2751
      %v2948 = vsel %vm2000, %v2751, %v2753
      %v2949 = vsel %vm2000, %v2755, %v2757
      %v2950 = vsel %vm2000, %v2757, %v2759
      %v2951 = vsel %vm2000, %v2759, %v2761
      %v2952 = vsel %vm2000, %v2763, %v2765
      %v2953 = vsel %vm2000, %v2765, %v2767
      %v2954 = vsel %vm2000, %v2767, %v2769
      %v2955 = vsel %vm2000, %v2771, %v2773
      %v2956 = vsel %vm2000, %v2773, %v2775
      %v2957 = vsel %vm2000, %v2775, %v2777
      %v2958 = vsel %vm2000, %v2779, %v2781
      %v2959 = vsel %vm2000, %v2781, %v2783
      %v2960 = vsel %vm2000, %v2783, %v2785
      %v2961 = vsel %vm2000, %v2787, %v2789
      %v2962 = vsel %vm2000, %v2789, %v2791
      %v2963 = vsel %vm2000, %v2791, %v2793
      %v2964 = vsel %vm2000, %v2795, %v2797
      %v2965 = vsel %vm2000, %v2797, %v2799
      %v2966 = vsel %vm2000, %v2799, %v2801
      %v2967 = vsel %vm2000, %v2803, %v2805
      %v2968 = vsel %vm2000, %v2805, %v2807
      %v2969 = vsel %vm2000, %v2807, %v2809
      %v2970 = vsel %vm2000, %v2811, %v2813
      %v2971 = vsel %vm2000, %v2813, %v2815
      %v2972 = vsel %vm2000, %v2815, %v2817
      %v2973 = vsel %vm2000, %v2819, %v2821
      %v2974 = vsel %vm2000, %v2821, %v2823
      %v2975 = vsel %vm2000, %v2823, %v2825
      %v2976 = vsel %vm2000, %v2827, %v2829
      %v2977 = vsel %vm2000, %v2829, %v2831
      %v2978 = vsel %vm2000, %v2831, %v2833
      %v2979 = vsel %vm2000, %v2835, %v2837
      %v2980 = vsel %vm2000, %v2837, %v2839
      %v2981 = vsel %vm2000, %v2839, %v2841
      %v2982 = vsel %vm2000, %v2843, %v2845
      %v2983 = vsel %vm2000, %v2845, %v2847
      %v2984 = vsel %vm2000, %v2847, %v2849
      %v2985 = vsel %vm2000, %v2851, %v2853
      %v2986 = vsel %vm2000, %v2853, %v2855
      %v2987 = vsel %vm2000, %v2855, %v2857
      %v2988 = vsel %vm2000, %v2859, %v2861
      %v2989 = vsel %vm2000, %v2861, %v2863
      %v2990 = vsel %vm2000, %v2863, %v2865
      %v2991 = vsel %vm2000, %v2867, %v2869
      %v2992 = vsel %vm2000, %v2869, %v2871
      %v2993 = vsel %vm2000, %v2871, %v2873
      %v2994 = vsel %vm2000, %v2875, %v2877
      %v2995 = vsel %vm2000, %v2877, %v2879
      %v2996 = vsel %vm2000, %v2879, %v2881
      %v2997 = vsel %vm2000, %v2883, %v2885
      %v2998 = vsel %vm2000, %v2885, %v2887
      %v2999 = vsel %vm2000, %v2887, %v2889
      %v3000 = vsel %vm2000, %v2891, %v2893
      %v3001 = vsel %vm2000, %v2893, %v2895
      %v3002 = vsel %vm2000, %v2895, %v2897
      %v3003 = vsel %vm2000, %v2899, %v2901
      %v3004 = vsel %vm2000, %v2901, %v2903
      %v3005 = vsel %vm2000, %v2903, %v2905
      %v3006 = vsel %vm2000, %v2907, %v2909
      %v3007 = vsel %vm2000, %v2909, %v2911
      %v3008 = vsel %vm2000, %v2911, %v2913
      %v3009 = vsel %vm2000, %v2915, %v2917
      %v3010 = vsel %vm2000, %v2917, %v2919
      %v3011 = vsel %vm2000, %v2919, %v2921
      %v3012 = vsel %vm2000, %v2923, %v2925
      %v3013 = vsel %vm2000, %v2925, %v2927
      %v3014 = vsel %vm2000, %v2927, %v2929
      %v3015 = vsel %vm2000, %v2931, %v2933
      %v3016 = vsel %vm2000, %v2933, %v2935
      %v3017 = vsel %vm2000, %v2935, %v2937
      %v3018 = vsel %vm2000, %v2939, %v2941
      %v3019 = vsel %vm2000, %v2941, %v2943
      %v3020 = vsel %vm2000, %v2943, %v2945
      %3096 = vmatprep.subr.mxu0 %v2992
      %3097 = vmatpush1.msra.mxu0 %v2991
      %3098 = vmatprep.subr.mxu0 %v2989
      %3099 = vmatpush1.msra.mxu0 %v2988
      %3100 = vmatprep.subr.mxu0 %v2986
      %3101 = vmatpush1.msra.mxu0 %v2985
      %3102 = vmatprep.subr.mxu0 %v2983
      %3103 = vmatpush1.msra.mxu0 %v2982
      %3104 = vmatprep.subr.mxu0 %v2980
      %3105 = vmatpush1.msra.mxu0 %v2979
      %3106 = vmatprep.subr.mxu0 %v2977
      %3107 = vmatpush1.msra.mxu0 %v2976
      %3108 = vmatprep.subr.mxu0 %v2974
      %3109 = vmatpush1.msra.mxu0 %v2973
      %3110 = vmatprep.subr.mxu0 %v2971
      %3111 = vmatpush1.msra.mxu0 %v2970
      %3112 = vmatprep.subr.mxu0 %v2968
      %3113 = vmatpush1.msra.mxu0 %v2967
      %3114 = vmatprep.subr.mxu0 %v2965
      %3115 = vmatpush1.msra.mxu0 %v2964
      %3116 = vmatprep.subr.mxu0 %v2962
      %3117 = vmatpush1.msra.mxu0 %v2961
      %3118 = vmatprep.subr.mxu0 %v2959
      %3119 = vmatpush1.msra.mxu0 %v2958
      %3120 = vmatprep.subr.mxu0 %v2956
      %3121 = vmatpush1.msra.mxu0 %v2955
      %3122 = vmatprep.subr.mxu0 %v2953
      %3123 = vmatpush1.msra.mxu0 %v2952
      %3124 = vmatprep.subr.mxu0 %v2950
      %3125 = vmatpush1.msra.mxu0 %v2949
      %3126 = vmatprep.subr.mxu0 %v2947
      %3127 = vmatpush1.msra.mxu0 %v2946
      %3128 = vmatprep.subr.mxu0 0.0
      %3129 = vmatpush2.msra.mxu0 0.0
      %3130 = vmatprep.subr.mxu0 0.0
      %3131 = vmatpush2.msra.mxu0 0.0
      %3132 = vmatprep.subr.mxu0 0.0
      %3133 = vmatpush2.msra.mxu0 0.0
      %3134 = vmatprep.subr.mxu0 0.0
      %3135 = vmatpush2.msra.mxu0 0.0
      %3136 = vmatprep.subr.mxu0 0.0
      %3137 = vmatpush2.msra.mxu0 0.0
      %3138 = vmatprep.subr.mxu0 0.0
      %3139 = vmatpush2.msra.mxu0 0.0
      %3140 = vmatprep.subr.mxu0 0.0
      %3141 = vmatpush2.msra.mxu0 0.0
      %3142 = vmatprep.subr.mxu0 %v3019
      %3143 = vmatpush2.msra.mxu0 %v3018
      %3144 = vmatprep.subr.mxu0 %v3016
      %3145 = vmatpush2.msra.mxu0 %v3015
      %3146 = vmatprep.subr.mxu0 %v3013
      %3147 = vmatpush2.msra.mxu0 %v3012
      %3148 = vmatprep.subr.mxu0 %v3010
      %3149 = vmatpush2.msra.mxu0 %v3009
      %3150 = vmatprep.subr.mxu0 %v3007
      %3151 = vmatpush2.msra.mxu0 %v3006
      %3152 = vmatprep.subr.mxu0 %v3004
      %3153 = vmatpush2.msra.mxu0 %v3003
      %3154 = vmatprep.subr.mxu0 %v3001
      %3155 = vmatpush2.msra.mxu0 %v3000
      %3156 = vmatprep.subr.mxu0 %v2998
      %3157 = vmatpush2.msra.mxu0 %v2997
      %3158 = vmatprep.subr.mxu0 %v2995
      %3159 = vmatpush2.msra.mxu0 %v2994
      %3160 = vmatprep.mubr.f32.mxu0 %v2153
      %3161 = vmatmul.mubr.f32.gmra.mxu0 %v1368
      %v3162 = vpop.f32.mrf.mxu0
      %v3163 = vadd.f32 0.0, %v3162
      %v3164 = vpop.f32.mrf.mxu0
      %v3165 = vadd.f32 0.0, %v3164
      %3166 = vmatprep.mubr.f32.mxu0 %v2156
      %3167 = vmatmul.mubr.f32.gmra.mxu0 %v1370
      %v3168 = vpop.f32.mrf.mxu0
      %v3169 = vadd.f32 0.0, %v3168
      %v3170 = vpop.f32.mrf.mxu0
      %v3171 = vadd.f32 0.0, %v3170
      %3172 = vmatprep.mubr.f32.mxu0 %v2159
      %3173 = vmatmul.mubr.f32.gmra.mxu0 %v1372
      %v3174 = vpop.f32.mrf.mxu0
      %v3175 = vadd.f32 0.0, %v3174
      %v3176 = vpop.f32.mrf.mxu0
      %v3177 = vadd.f32 0.0, %v3176
      %3178 = vmatprep.mubr.f32.mxu0 %v2162
      %3179 = vmatmul.mubr.f32.gmra.mxu0 %v1374
      %v3180 = vpop.f32.mrf.mxu0
      %v3181 = vadd.f32 0.0, %v3180
      %v3182 = vpop.f32.mrf.mxu0
      %v3183 = vadd.f32 0.0, %v3182
      %3184 = vdwg.mxu0
      %3185 = vmatprep.subr.mxu0 0.0
      %3186 = vmatpush1.msra.mxu0 %v2993
      %3187 = vmatprep.subr.mxu0 0.0
      %3188 = vmatpush1.msra.mxu0 %v2990
      %3189 = vmatprep.subr.mxu0 0.0
      %3190 = vmatpush1.msra.mxu0 %v2987
      %3191 = vmatprep.subr.mxu0 0.0
      %3192 = vmatpush1.msra.mxu0 %v2984
      %3193 = vmatprep.subr.mxu0 0.0
      %3194 = vmatpush1.msra.mxu0 %v2981
      %3195 = vmatprep.subr.mxu0 0.0
      %3196 = vmatpush1.msra.mxu0 %v2978
      %3197 = vmatprep.subr.mxu0 0.0
      %3198 = vmatpush1.msra.mxu0 %v2975
      %3199 = vmatprep.subr.mxu0 0.0
      %3200 = vmatpush1.msra.mxu0 %v2972
      %3201 = vmatprep.subr.mxu0 0.0
      %3202 = vmatpush1.msra.mxu0 %v2969
      %3203 = vmatprep.subr.mxu0 0.0
      %3204 = vmatpush1.msra.mxu0 %v2966
      %3205 = vmatprep.subr.mxu0 0.0
      %3206 = vmatpush1.msra.mxu0 %v2963
      %3207 = vmatprep.subr.mxu0 0.0
      %3208 = vmatpush1.msra.mxu0 %v2960
      %3209 = vmatprep.subr.mxu0 0.0
      %3210 = vmatpush1.msra.mxu0 %v2957
      %3211 = vmatprep.subr.mxu0 0.0
      %3212 = vmatpush1.msra.mxu0 %v2954
      %3213 = vmatprep.subr.mxu0 0.0
      %3214 = vmatpush1.msra.mxu0 %v2951
      %3215 = vmatprep.subr.mxu0 0.0
      %3216 = vmatpush1.msra.mxu0 %v2948
      %3217 = vmatprep.subr.mxu0 0.0
      %3218 = vmatpush2.msra.mxu0 0.0
      %3219 = vmatprep.subr.mxu0 0.0
      %3220 = vmatpush2.msra.mxu0 0.0
      %3221 = vmatprep.subr.mxu0 0.0
      %3222 = vmatpush2.msra.mxu0 0.0
      %3223 = vmatprep.subr.mxu0 0.0
      %3224 = vmatpush2.msra.mxu0 0.0
      %3225 = vmatprep.subr.mxu0 0.0
      %3226 = vmatpush2.msra.mxu0 0.0
      %3227 = vmatprep.subr.mxu0 0.0
      %3228 = vmatpush2.msra.mxu0 0.0
      %3229 = vmatprep.subr.mxu0 0.0
      %3230 = vmatpush2.msra.mxu0 0.0
      %3231 = vmatprep.subr.mxu0 0.0
      %3232 = vmatpush2.msra.mxu0 %v3020
      %3233 = vmatprep.subr.mxu0 0.0
      %3234 = vmatpush2.msra.mxu0 %v3017
      %3235 = vmatprep.subr.mxu0 0.0
      %3236 = vmatpush2.msra.mxu0 %v3014
      %3237 = vmatprep.subr.mxu0 0.0
      %3238 = vmatpush2.msra.mxu0 %v3011
      %3239 = vmatprep.subr.mxu0 0.0
      %3240 = vmatpush2.msra.mxu0 %v3008
      %3241 = vmatprep.subr.mxu0 0.0
      %3242 = vmatpush2.msra.mxu0 %v3005
      %3243 = vmatprep.subr.mxu0 0.0
      %3244 = vmatpush2.msra.mxu0 %v3002
      %3245 = vmatprep.subr.mxu0 0.0
      %3246 = vmatpush2.msra.mxu0 %v2999
      %3247 = vmatprep.subr.mxu0 0.0
      %3248 = vmatpush2.msra.mxu0 %v2996
      %3249 = vmatprep.mubr.f32.mxu0 %v2153
      %3250 = vmatmul.mubr.f32.gmra.mxu0 %v1368
      %v3251 = vpop.f32.mrf.mxu0
      %v3252 = vadd.f32 0.0, %v3251
      %v3253 = vpop.f32.mrf.mxu0
      %3254 = vmatprep.mubr.f32.mxu0 %v2156
      %3255 = vmatmul.mubr.f32.gmra.mxu0 %v1370
      %v3256 = vpop.f32.mrf.mxu0
      %v3257 = vadd.f32 0.0, %v3256
      %v3258 = vpop.f32.mrf.mxu0
      %3259 = vmatprep.mubr.f32.mxu0 %v2159
      %3260 = vmatmul.mubr.f32.gmra.mxu0 %v1372
      %v3261 = vpop.f32.mrf.mxu0
      %v3262 = vadd.f32 0.0, %v3261
      %v3263 = vpop.f32.mrf.mxu0
      %3264 = vmatprep.mubr.f32.mxu0 %v2162
      %3265 = vmatmul.mubr.f32.gmra.mxu0 %v1374
      %v3266 = vpop.f32.mrf.mxu0
      %v3267 = vadd.f32 0.0, %v3266
      %v3268 = vpop.f32.mrf.mxu0
      %3269 = vdwg.mxu0
      %v3270 = vadd.f32 %v2431, %v3163
      %v3271 = vadd.f32 %v2432, %v3165
      %v3272 = vadd.f32 %v2433, %v3252
      %v3273 = vadd.f32 %v2434, %v3169
      %v3274 = vadd.f32 %v2435, %v3171
      %v3275 = vadd.f32 %v2436, %v3257
      %v3276 = vadd.f32 %v2437, %v3175
      %v3277 = vadd.f32 %v2438, %v3177
      %v3278 = vadd.f32 %v2439, %v3262
      %v3279 = vadd.f32 %v2440, %v3181
      %v3280 = vadd.f32 %v2441, %v3183
      %v3281 = vadd.f32 %v2442, %v3267
      %v3282 = vxor.u32 %v3270, 2147483648
      %v3283 = vxor.u32 %v3271, 2147483648
      %v3284 = vxor.u32 %v3272, 2147483648
      %v3285 = vmul.f32 %v3282, 1.442695
      %v3286 = vpow.pop %v3285
      %v3287 = vmul.f32 %v3283, 1.442695
      %v3288 = vpow.pop %v3287
      %v3289 = vmul.f32 %v3284, 1.442695
      %v3290 = vpow.pop %v3289
      %v3291 = vadd.f32 %v3286, 1.0
      %v3292 = vadd.f32 %v3288, 1.0
      %v3293 = vadd.f32 %v3290, 1.0
      %v3294 = vrcp.pop %v3291
      %v3295 = vmul.f32 1.0, %v3294
      %v3296 = vrcp.pop %v3292
      %v3297 = vmul.f32 1.0, %v3296
      %v3298 = vrcp.pop %v3293
      %v3299 = vmul.f32 1.0, %v3298
      %v3300 = vxor.u32 %v3273, 2147483648
      %v3301 = vxor.u32 %v3274, 2147483648
      %v3302 = vxor.u32 %v3275, 2147483648
      %v3303 = vmul.f32 %v3300, 1.442695
      %v3304 = vpow.pop %v3303
      %v3305 = vmul.f32 %v3301, 1.442695
      %v3306 = vpow.pop %v3305
      %v3307 = vmul.f32 %v3302, 1.442695
      %v3308 = vpow.pop %v3307
      %v3309 = vadd.f32 %v3304, 1.0
      %v3310 = vadd.f32 %v3306, 1.0
      %v3311 = vadd.f32 %v3308, 1.0
      %v3312 = vrcp.pop %v3309
      %v3313 = vmul.f32 1.0, %v3312
      %v3314 = vrcp.pop %v3310
      %v3315 = vmul.f32 1.0, %v3314
      %v3316 = vrcp.pop %v3311
      %v3317 = vmul.f32 1.0, %v3316
      %v3318 = vxor.u32 %v3276, 2147483648
      %v3319 = vxor.u32 %v3277, 2147483648
      %v3320 = vxor.u32 %v3278, 2147483648
      %v3321 = vmul.f32 %v3318, 1.442695
      %v3322 = vpow.pop %v3321
      %v3323 = vmul.f32 %v3319, 1.442695
      %v3324 = vpow.pop %v3323
      %v3325 = vmul.f32 %v3320, 1.442695
      %v3326 = vpow.pop %v3325
      %v3327 = vadd.f32 %v3322, 1.0
      %v3328 = vadd.f32 %v3324, 1.0
      %v3329 = vadd.f32 %v3326, 1.0
      %v3330 = vrcp.pop %v3327
      %v3331 = vmul.f32 1.0, %v3330
      %v3332 = vrcp.pop %v3328
      %v3333 = vmul.f32 1.0, %v3332
      %v3334 = vrcp.pop %v3329
      %v3335 = vmul.f32 1.0, %v3334
      %v3336 = vtanh.pop %v3279
      %v3337 = vtanh.pop %v3280
      %v3338 = vtanh.pop %v3281
      %v3339 = vmul.f32 %v2413, %v3313
      %v3340 = vmul.f32 %v2414, %v3315
      %v3341 = vmul.f32 %v2415, %v3317
      %v3342 = vmul.f32 %v3295, %v3336
      %v3343 = vmul.f32 %v3297, %v3337
      %v3344 = vmul.f32 %v3299, %v3338
      %v3345 = vadd.f32 %v3339, %v3342
      %v3346 = vadd.f32 %v3340, %v3343
      %v3347 = vadd.f32 %v3341, %v3344
      %v3348 = vtanh.pop %v3345
      %v3349 = vtanh.pop %v3346
      %v3350 = vtanh.pop %v3347
      %v3351 = vmul.f32 %v3331, %v3348
      %v3352 = vmul.f32 %v3333, %v3349
      %v3353 = vmul.f32 %v3335, %v3350
      %3354 = vst [vmem:[#allocation4 + $0x30] sm:$0xff] %v3351
      %3355 = vst [vmem:[#allocation4 + $0x38] sm:$0xff] %v3352
      %3356 = vst [vmem:[#allocation4 + $0x40] sm:$0xff] %v3353
      %v3357 = vmul.f32 %v3351, %v1360
      %v3358 = vmul.f32 %v3352, %v1361
      %v3359 = vmul.f32 %v3353, %v1362
      %3360 = vst [vmem:[#allocation3 + $0x8] sm:$0xff] %v3357
      %3361 = vst [vmem:[#allocation3 + $0x10] sm:$0xff] %v3358
      %3362 = vst [vmem:[#allocation3 + $0x18] sm:$0xff] %v3359
      %v3363 = vld [vmem:[#allocation2 + $0x48] sm:$0xff]
      %v3364 = vld [vmem:[#allocation2 + $0x50] sm:$0xff]
      %v3365 = vld [vmem:[#allocation2 + $0x58] sm:$0xff]
      %v3366 = vld [vmem:[#allocation2 + $0xc0] sm:$0xff]
      %v3367 = vld [vmem:[#allocation2 + $0xc8] sm:$0xff]
      %v3368 = vld [vmem:[#allocation2 + $0xd0] sm:$0xff]
      %v3369 = vld [vmem:[#allocation2 + $0x138] sm:$0xff]
      %v3370 = vld [vmem:[#allocation2 + $0x140] sm:$0xff]
      %v3371 = vld [vmem:[#allocation2 + $0x148] sm:$0xff]
      %v3372 = vld [vmem:[#allocation2 + $0x1b0] sm:$0xff]
      %v3373 = vld [vmem:[#allocation2 + $0x1b8] sm:$0xff]
      %v3374 = vld [vmem:[#allocation2 + $0x1c0] sm:$0xff]
      %v3375 = vld [vmem:[#allocation3] sm:$0xff]
      %v3376 = vld [vmem:[#allocation3 + $0x8] sm:$0xff]
      %v3377 = vld [vmem:[#allocation3 + $0x10] sm:$0xff]
      %v3378 = vld [vmem:[#allocation3 + $0x18] sm:$0xff]
      %v3379 = vld [vmem:[#allocation3 + $0x20] sm:$0xff]
      %3384 = vrot.lane.b32.xlu0 %v3375, 127
      %v3385 = vpop.permute.xlu0 %3384
      %3386 = vrot.lane.b32.xlu0 %v3376, 127
      %v3387 = vpop.permute.xlu0 %3386
      %3388 = vrot.lane.b32.xlu0 %v3377, 127
      %v3389 = vpop.permute.xlu0 %3388
      %3390 = vrot.lane.b32.xlu0 %v3378, 127
      %v3391 = vpop.permute.xlu0 %3390
      %v3392 = vsel %vm1498, %v3385, %v3387
      %v3393 = vsel %vm1498, %v3387, %v3389
      %v3394 = vsel %vm1498, %v3389, %v3391
      %3395 = vrot.lane.b32.xlu0 %v3375, 126
      %v3396 = vpop.permute.xlu0 %3395
      %3397 = vrot.lane.b32.xlu0 %v3376, 126
      %v3398 = vpop.permute.xlu0 %3397
      %3399 = vrot.lane.b32.xlu0 %v3377, 126
      %v3400 = vpop.permute.xlu0 %3399
      %3401 = vrot.lane.b32.xlu0 %v3378, 126
      %v3402 = vpop.permute.xlu0 %3401
      %v3403 = vsel %vm1510, %v3396, %v3398
      %v3404 = vsel %vm1510, %v3398, %v3400
      %v3405 = vsel %vm1510, %v3400, %v3402
      %3406 = vrot.lane.b32.xlu0 %v3375, 125
      %v3407 = vpop.permute.xlu0 %3406
      %3408 = vrot.lane.b32.xlu0 %v3376, 125
      %v3409 = vpop.permute.xlu0 %3408
      %3410 = vrot.lane.b32.xlu0 %v3377, 125
      %v3411 = vpop.permute.xlu0 %3410
      %3412 = vrot.lane.b32.xlu0 %v3378, 125
      %v3413 = vpop.permute.xlu0 %3412
      %v3414 = vsel %vm1522, %v3407, %v3409
      %v3415 = vsel %vm1522, %v3409, %v3411
      %v3416 = vsel %vm1522, %v3411, %v3413
      %3417 = vrot.lane.b32.xlu0 %v3375, 124
      %v3418 = vpop.permute.xlu0 %3417
      %3419 = vrot.lane.b32.xlu0 %v3376, 124
      %v3420 = vpop.permute.xlu0 %3419
      %3421 = vrot.lane.b32.xlu0 %v3377, 124
      %v3422 = vpop.permute.xlu0 %3421
      %3423 = vrot.lane.b32.xlu0 %v3378, 124
      %v3424 = vpop.permute.xlu0 %3423
      %v3425 = vsel %vm1534, %v3418, %v3420
      %v3426 = vsel %vm1534, %v3420, %v3422
      %v3427 = vsel %vm1534, %v3422, %v3424
      %3428 = vrot.lane.b32.xlu0 %v3375, 104
      %v3429 = vpop.permute.xlu0 %3428
      %3430 = vrot.lane.b32.xlu0 %v3376, 104
      %v3431 = vpop.permute.xlu0 %3430
      %3432 = vrot.lane.b32.xlu0 %v3377, 104
      %v3433 = vpop.permute.xlu0 %3432
      %3434 = vrot.lane.b32.xlu0 %v3378, 104
      %v3435 = vpop.permute.xlu0 %3434
      %v3436 = vsel %vm1546, %v3429, %v3431
      %v3437 = vsel %vm1546, %v3431, %v3433
      %v3438 = vsel %vm1546, %v3433, %v3435
      %3439 = vrot.lane.b32.xlu0 %v3375, 103
      %v3440 = vpop.permute.xlu0 %3439
      %3441 = vrot.lane.b32.xlu0 %v3376, 103
      %v3442 = vpop.permute.xlu0 %3441
      %3443 = vrot.lane.b32.xlu0 %v3377, 103
      %v3444 = vpop.permute.xlu0 %3443
      %3445 = vrot.lane.b32.xlu0 %v3378, 103
      %v3446 = vpop.permute.xlu0 %3445
      %v3447 = vsel %vm1558, %v3440, %v3442
      %v3448 = vsel %vm1558, %v3442, %v3444
      %v3449 = vsel %vm1558, %v3444, %v3446
      %3450 = vrot.lane.b32.xlu0 %v3375, 102
      %v3451 = vpop.permute.xlu0 %3450
      %3452 = vrot.lane.b32.xlu0 %v3376, 102
      %v3453 = vpop.permute.xlu0 %3452
      %3454 = vrot.lane.b32.xlu0 %v3377, 102
      %v3455 = vpop.permute.xlu0 %3454
      %3456 = vrot.lane.b32.xlu0 %v3378, 102
      %v3457 = vpop.permute.xlu0 %3456
      %v3458 = vsel %vm1570, %v3451, %v3453
      %v3459 = vsel %vm1570, %v3453, %v3455
      %v3460 = vsel %vm1570, %v3455, %v3457
      %3461 = vrot.lane.b32.xlu0 %v3375, 101
      %v3462 = vpop.permute.xlu0 %3461
      %3463 = vrot.lane.b32.xlu0 %v3376, 101
      %v3464 = vpop.permute.xlu0 %3463
      %3465 = vrot.lane.b32.xlu0 %v3377, 101
      %v3466 = vpop.permute.xlu0 %3465
      %3467 = vrot.lane.b32.xlu0 %v3378, 101
      %v3468 = vpop.permute.xlu0 %3467
      %v3469 = vsel %vm1582, %v3462, %v3464
      %v3470 = vsel %vm1582, %v3464, %v3466
      %v3471 = vsel %vm1582, %v3466, %v3468
      %3472 = vrot.lane.b32.xlu0 %v3375, 100
      %v3473 = vpop.permute.xlu0 %3472
      %3474 = vrot.lane.b32.xlu0 %v3376, 100
      %v3475 = vpop.permute.xlu0 %3474
      %3476 = vrot.lane.b32.xlu0 %v3377, 100
      %v3477 = vpop.permute.xlu0 %3476
      %3478 = vrot.lane.b32.xlu0 %v3378, 100
      %v3479 = vpop.permute.xlu0 %3478
      %v3480 = vsel %vm475, %v3473, %v3475
      %v3481 = vsel %vm475, %v3475, %v3477
      %v3482 = vsel %vm475, %v3477, %v3479
      %3483 = vrot.lane.b32.xlu0 %v3375, 80
      %v3484 = vpop.permute.xlu0 %3483
      %3485 = vrot.lane.b32.xlu0 %v3376, 80
      %v3486 = vpop.permute.xlu0 %3485
      %3487 = vrot.lane.b32.xlu0 %v3377, 80
      %v3488 = vpop.permute.xlu0 %3487
      %3489 = vrot.lane.b32.xlu0 %v3378, 80
      %v3490 = vpop.permute.xlu0 %3489
      %v3491 = vsel %vm1605, %v3484, %v3486
      %v3492 = vsel %vm1605, %v3486, %v3488
      %v3493 = vsel %vm1605, %v3488, %v3490
      %3494 = vrot.lane.b32.xlu0 %v3375, 79
      %v3495 = vpop.permute.xlu0 %3494
      %3496 = vrot.lane.b32.xlu0 %v3376, 79
      %v3497 = vpop.permute.xlu0 %3496
      %3498 = vrot.lane.b32.xlu0 %v3377, 79
      %v3499 = vpop.permute.xlu0 %3498
      %3500 = vrot.lane.b32.xlu0 %v3378, 79
      %v3501 = vpop.permute.xlu0 %3500
      %v3502 = vsel %vm1617, %v3495, %v3497
      %v3503 = vsel %vm1617, %v3497, %v3499
      %v3504 = vsel %vm1617, %v3499, %v3501
      %3505 = vrot.lane.b32.xlu0 %v3376, 78
      %v3506 = vpop.permute.xlu0 %3505
      %3507 = vrot.lane.b32.xlu0 %v3377, 78
      %v3508 = vpop.permute.xlu0 %3507
      %3509 = vrot.lane.b32.xlu0 %v3378, 78
      %v3510 = vpop.permute.xlu0 %3509
      %v3511 = vsel %vm1627, %v3506, %v3508
      %v3512 = vsel %vm1627, %v3508, %v3510
      %3514 = vrot.lane.b32.xlu0 %v3376, 77
      %v3515 = vpop.permute.xlu0 %3514
      %3516 = vrot.lane.b32.xlu0 %v3377, 77
      %v3517 = vpop.permute.xlu0 %3516
      %3518 = vrot.lane.b32.xlu0 %v3378, 77
      %v3519 = vpop.permute.xlu0 %3518
      %3520 = vrot.lane.b32.xlu0 %v3379, 77
      %v3521 = vpop.permute.xlu0 %3520
      %v3522 = vsel %vm1639, %v3515, %v3517
      %v3523 = vsel %vm1639, %v3517, %v3519
      %v3524 = vsel %vm1639, %v3519, %v3521
      %3525 = vrot.lane.b32.xlu0 %v3376, 76
      %v3526 = vpop.permute.xlu0 %3525
      %3527 = vrot.lane.b32.xlu0 %v3377, 76
      %v3528 = vpop.permute.xlu0 %3527
      %3529 = vrot.lane.b32.xlu0 %v3378, 76
      %v3530 = vpop.permute.xlu0 %3529
      %3531 = vrot.lane.b32.xlu0 %v3379, 76
      %v3532 = vpop.permute.xlu0 %3531
      %v3533 = vsel %vm1651, %v3526, %v3528
      %v3534 = vsel %vm1651, %v3528, %v3530
      %v3535 = vsel %vm1651, %v3530, %v3532
      %3536 = vrot.lane.b32.xlu0 %v3376, 56
      %v3537 = vpop.permute.xlu0 %3536
      %3538 = vrot.lane.b32.xlu0 %v3377, 56
      %v3539 = vpop.permute.xlu0 %3538
      %3540 = vrot.lane.b32.xlu0 %v3378, 56
      %v3541 = vpop.permute.xlu0 %3540
      %3542 = vrot.lane.b32.xlu0 %v3379, 56
      %v3543 = vpop.permute.xlu0 %3542
      %v3544 = vsel %vm1663, %v3537, %v3539
      %v3545 = vsel %vm1663, %v3539, %v3541
      %v3546 = vsel %vm1663, %v3541, %v3543
      %3547 = vrot.lane.b32.xlu0 %v3379, 127
      %v3548 = vpop.permute.xlu0 %3547
      %v3549 = vsel %vm1498, %v3391, %v3548
      %3550 = vrot.lane.b32.xlu0 %v3379, 126
      %v3551 = vpop.permute.xlu0 %3550
      %v3552 = vsel %vm1510, %v3402, %v3551
      %3553 = vrot.lane.b32.xlu0 %v3379, 125
      %v3554 = vpop.permute.xlu0 %3553
      %v3555 = vsel %vm1522, %v3413, %v3554
      %3556 = vrot.lane.b32.xlu0 %v3376, 105
      %v3557 = vpop.permute.xlu0 %3556
      %3558 = vrot.lane.b32.xlu0 %v3377, 105
      %v3559 = vpop.permute.xlu0 %3558
      %3560 = vrot.lane.b32.xlu0 %v3378, 105
      %v3561 = vpop.permute.xlu0 %3560
      %3562 = vrot.lane.b32.xlu0 %v3379, 105
      %v3563 = vpop.permute.xlu0 %3562
      %v3564 = vsel %vm1684, %v3557, %v3559
      %v3565 = vsel %vm1684, %v3559, %v3561
      %v3566 = vsel %vm1684, %v3561, %v3563
      %3567 = vrot.lane.b32.xlu0 %v3379, 104
      %v3568 = vpop.permute.xlu0 %3567
      %v3569 = vsel %vm1546, %v3435, %v3568
      %3570 = vrot.lane.b32.xlu0 %v3379, 103
      %v3571 = vpop.permute.xlu0 %3570
      %v3572 = vsel %vm1558, %v3446, %v3571
      %3573 = vrot.lane.b32.xlu0 %v3379, 102
      %v3574 = vpop.permute.xlu0 %3573
      %v3575 = vsel %vm1570, %v3457, %v3574
      %3576 = vrot.lane.b32.xlu0 %v3379, 101
      %v3577 = vpop.permute.xlu0 %3576
      %v3578 = vsel %vm1582, %v3468, %v3577
      %3579 = vrot.lane.b32.xlu0 %v3376, 55
      %v3580 = vpop.permute.xlu0 %3579
      %3581 = vrot.lane.b32.xlu0 %v3377, 55
      %v3582 = vpop.permute.xlu0 %3581
      %3583 = vrot.lane.b32.xlu0 %v3378, 55
      %v3584 = vpop.permute.xlu0 %3583
      %3585 = vrot.lane.b32.xlu0 %v3379, 55
      %v3586 = vpop.permute.xlu0 %3585
      %3587 = vrot.lane.b32.xlu0 %v3393, 55
      %v3588 = vpop.permute.xlu0 %3587
      %3589 = vrot.lane.b32.xlu0 %v3394, 55
      %v3590 = vpop.permute.xlu0 %3589
      %3591 = vrot.lane.b32.xlu0 %v3549, 55
      %v3592 = vpop.permute.xlu0 %3591
      %3593 = vrot.lane.b32.xlu0 %v3548, 55
      %v3594 = vpop.permute.xlu0 %3593
      %3595 = vrot.lane.b32.xlu0 %v3404, 55
      %v3596 = vpop.permute.xlu0 %3595
      %3597 = vrot.lane.b32.xlu0 %v3405, 55
      %v3598 = vpop.permute.xlu0 %3597
      %3599 = vrot.lane.b32.xlu0 %v3552, 55
      %v3600 = vpop.permute.xlu0 %3599
      %3601 = vrot.lane.b32.xlu0 %v3551, 55
      %v3602 = vpop.permute.xlu0 %3601
      %3603 = vrot.lane.b32.xlu0 %v3415, 55
      %v3604 = vpop.permute.xlu0 %3603
      %3605 = vrot.lane.b32.xlu0 %v3416, 55
      %v3606 = vpop.permute.xlu0 %3605
      %3607 = vrot.lane.b32.xlu0 %v3555, 55
      %v3608 = vpop.permute.xlu0 %3607
      %3609 = vrot.lane.b32.xlu0 %v3554, 55
      %v3610 = vpop.permute.xlu0 %3609
      %3611 = vrot.lane.b32.xlu0 %v3564, 55
      %v3612 = vpop.permute.xlu0 %3611
      %3613 = vrot.lane.b32.xlu0 %v3565, 55
      %v3614 = vpop.permute.xlu0 %3613
      %3615 = vrot.lane.b32.xlu0 %v3566, 55
      %v3616 = vpop.permute.xlu0 %3615
      %3617 = vrot.lane.b32.xlu0 %v3563, 55
      %v3618 = vpop.permute.xlu0 %3617
      %3619 = vrot.lane.b32.xlu0 %v3437, 55
      %v3620 = vpop.permute.xlu0 %3619
      %3621 = vrot.lane.b32.xlu0 %v3438, 55
      %v3622 = vpop.permute.xlu0 %3621
      %3623 = vrot.lane.b32.xlu0 %v3569, 55
      %v3624 = vpop.permute.xlu0 %3623
      %3625 = vrot.lane.b32.xlu0 %v3568, 55
      %v3626 = vpop.permute.xlu0 %3625
      %3627 = vrot.lane.b32.xlu0 %v3448, 55
      %v3628 = vpop.permute.xlu0 %3627
      %3629 = vrot.lane.b32.xlu0 %v3449, 55
      %v3630 = vpop.permute.xlu0 %3629
      %3631 = vrot.lane.b32.xlu0 %v3572, 55
      %v3632 = vpop.permute.xlu0 %3631
      %3633 = vrot.lane.b32.xlu0 %v3571, 55
      %v3634 = vpop.permute.xlu0 %3633
      %3635 = vrot.lane.b32.xlu0 %v3459, 55
      %v3636 = vpop.permute.xlu0 %3635
      %3637 = vrot.lane.b32.xlu0 %v3460, 55
      %v3638 = vpop.permute.xlu0 %3637
      %3639 = vrot.lane.b32.xlu0 %v3575, 55
      %v3640 = vpop.permute.xlu0 %3639
      %3641 = vrot.lane.b32.xlu0 %v3574, 55
      %v3642 = vpop.permute.xlu0 %3641
      %3643 = vrot.lane.b32.xlu0 %v3470, 55
      %v3644 = vpop.permute.xlu0 %3643
      %3645 = vrot.lane.b32.xlu0 %v3471, 55
      %v3646 = vpop.permute.xlu0 %3645
      %3647 = vrot.lane.b32.xlu0 %v3578, 55
      %v3648 = vpop.permute.xlu0 %3647
      %3649 = vrot.lane.b32.xlu0 %v3577, 55
      %v3650 = vpop.permute.xlu0 %3649
      %v3651 = vsel %vm1772, %v3580, %v3582
      %v3652 = vsel %vm1772, %v3582, %v3584
      %v3653 = vsel %vm1772, %v3584, %v3586
      %v3654 = vsel %vm1772, %v3588, %v3590
      %v3655 = vsel %vm1772, %v3590, %v3592
      %v3656 = vsel %vm1772, %v3592, %v3594
      %v3657 = vsel %vm1772, %v3596, %v3598
      %v3658 = vsel %vm1772, %v3598, %v3600
      %v3659 = vsel %vm1772, %v3600, %v3602
      %v3660 = vsel %vm1772, %v3604, %v3606
      %v3661 = vsel %vm1772, %v3606, %v3608
      %v3662 = vsel %vm1772, %v3608, %v3610
      %v3663 = vsel %vm1772, %v3612, %v3614
      %v3664 = vsel %vm1772, %v3614, %v3616
      %v3665 = vsel %vm1772, %v3616, %v3618
      %v3666 = vsel %vm1772, %v3620, %v3622
      %v3667 = vsel %vm1772, %v3622, %v3624
      %v3668 = vsel %vm1772, %v3624, %v3626
      %v3669 = vsel %vm1772, %v3628, %v3630
      %v3670 = vsel %vm1772, %v3630, %v3632
      %v3671 = vsel %vm1772, %v3632, %v3634
      %v3672 = vsel %vm1772, %v3636, %v3638
      %v3673 = vsel %vm1772, %v3638, %v3640
      %v3674 = vsel %vm1772, %v3640, %v3642
      %v3675 = vsel %vm1772, %v3644, %v3646
      %v3676 = vsel %vm1772, %v3646, %v3648
      %v3677 = vsel %vm1772, %v3648, %v3650
      %3678 = vrot.lane.b32.xlu0 %v3375, 50
      %v3679 = vpop.permute.xlu0 %3678
      %3680 = vrot.lane.b32.xlu0 %v3376, 50
      %v3681 = vpop.permute.xlu0 %3680
      %3682 = vrot.lane.b32.xlu0 %v3377, 50
      %v3683 = vpop.permute.xlu0 %3682
      %3684 = vrot.lane.b32.xlu0 %v3378, 50
      %v3685 = vpop.permute.xlu0 %3684
      %3686 = vrot.lane.b32.xlu0 %v3392, 50
      %v3687 = vpop.permute.xlu0 %3686
      %3688 = vrot.lane.b32.xlu0 %v3393, 50
      %v3689 = vpop.permute.xlu0 %3688
      %3690 = vrot.lane.b32.xlu0 %v3394, 50
      %v3691 = vpop.permute.xlu0 %3690
      %3692 = vrot.lane.b32.xlu0 %v3391, 50
      %v3693 = vpop.permute.xlu0 %3692
      %3694 = vrot.lane.b32.xlu0 %v3403, 50
      %v3695 = vpop.permute.xlu0 %3694
      %3696 = vrot.lane.b32.xlu0 %v3404, 50
      %v3697 = vpop.permute.xlu0 %3696
      %3698 = vrot.lane.b32.xlu0 %v3405, 50
      %v3699 = vpop.permute.xlu0 %3698
      %3700 = vrot.lane.b32.xlu0 %v3402, 50
      %v3701 = vpop.permute.xlu0 %3700
      %3702 = vrot.lane.b32.xlu0 %v3414, 50
      %v3703 = vpop.permute.xlu0 %3702
      %3704 = vrot.lane.b32.xlu0 %v3415, 50
      %v3705 = vpop.permute.xlu0 %3704
      %3706 = vrot.lane.b32.xlu0 %v3416, 50
      %v3707 = vpop.permute.xlu0 %3706
      %3708 = vrot.lane.b32.xlu0 %v3413, 50
      %v3709 = vpop.permute.xlu0 %3708
      %3710 = vrot.lane.b32.xlu0 %v3425, 50
      %v3711 = vpop.permute.xlu0 %3710
      %3712 = vrot.lane.b32.xlu0 %v3426, 50
      %v3713 = vpop.permute.xlu0 %3712
      %3714 = vrot.lane.b32.xlu0 %v3427, 50
      %v3715 = vpop.permute.xlu0 %3714
      %3716 = vrot.lane.b32.xlu0 %v3424, 50
      %v3717 = vpop.permute.xlu0 %3716
      %3718 = vrot.lane.b32.xlu0 %v3436, 50
      %v3719 = vpop.permute.xlu0 %3718
      %3720 = vrot.lane.b32.xlu0 %v3437, 50
      %v3721 = vpop.permute.xlu0 %3720
      %3722 = vrot.lane.b32.xlu0 %v3438, 50
      %v3723 = vpop.permute.xlu0 %3722
      %3724 = vrot.lane.b32.xlu0 %v3435, 50
      %v3725 = vpop.permute.xlu0 %3724
      %3726 = vrot.lane.b32.xlu0 %v3447, 50
      %v3727 = vpop.permute.xlu0 %3726
      %3728 = vrot.lane.b32.xlu0 %v3448, 50
      %v3729 = vpop.permute.xlu0 %3728
      %3730 = vrot.lane.b32.xlu0 %v3449, 50
      %v3731 = vpop.permute.xlu0 %3730
      %3732 = vrot.lane.b32.xlu0 %v3446, 50
      %v3733 = vpop.permute.xlu0 %3732
      %3734 = vrot.lane.b32.xlu0 %v3458, 50
      %v3735 = vpop.permute.xlu0 %3734
      %3736 = vrot.lane.b32.xlu0 %v3459, 50
      %v3737 = vpop.permute.xlu0 %3736
      %3738 = vrot.lane.b32.xlu0 %v3460, 50
      %v3739 = vpop.permute.xlu0 %3738
      %3740 = vrot.lane.b32.xlu0 %v3457, 50
      %v3741 = vpop.permute.xlu0 %3740
      %3742 = vrot.lane.b32.xlu0 %v3469, 50
      %v3743 = vpop.permute.xlu0 %3742
      %3744 = vrot.lane.b32.xlu0 %v3470, 50
      %v3745 = vpop.permute.xlu0 %3744
      %3746 = vrot.lane.b32.xlu0 %v3471, 50
      %v3747 = vpop.permute.xlu0 %3746
      %3748 = vrot.lane.b32.xlu0 %v3468, 50
      %v3749 = vpop.permute.xlu0 %3748
      %3750 = vrot.lane.b32.xlu0 %v3480, 50
      %v3751 = vpop.permute.xlu0 %3750
      %3752 = vrot.lane.b32.xlu0 %v3481, 50
      %v3753 = vpop.permute.xlu0 %3752
      %3754 = vrot.lane.b32.xlu0 %v3482, 50
      %v3755 = vpop.permute.xlu0 %3754
      %3756 = vrot.lane.b32.xlu0 %v3479, 50
      %v3757 = vpop.permute.xlu0 %3756
      %3758 = vrot.lane.b32.xlu0 %v3491, 50
      %v3759 = vpop.permute.xlu0 %3758
      %3760 = vrot.lane.b32.xlu0 %v3492, 50
      %v3761 = vpop.permute.xlu0 %3760
      %3762 = vrot.lane.b32.xlu0 %v3493, 50
      %v3763 = vpop.permute.xlu0 %3762
      %3764 = vrot.lane.b32.xlu0 %v3490, 50
      %v3765 = vpop.permute.xlu0 %3764
      %3766 = vrot.lane.b32.xlu0 %v3502, 50
      %v3767 = vpop.permute.xlu0 %3766
      %3768 = vrot.lane.b32.xlu0 %v3503, 50
      %v3769 = vpop.permute.xlu0 %3768
      %3770 = vrot.lane.b32.xlu0 %v3504, 50
      %v3771 = vpop.permute.xlu0 %3770
      %3772 = vrot.lane.b32.xlu0 %v3501, 50
      %v3773 = vpop.permute.xlu0 %3772
      %3774 = vrot.lane.b32.xlu0 %v3506, 50
      %v3775 = vpop.permute.xlu0 %3774
      %3776 = vrot.lane.b32.xlu0 %v3511, 50
      %v3777 = vpop.permute.xlu0 %3776
      %3778 = vrot.lane.b32.xlu0 %v3512, 50
      %v3779 = vpop.permute.xlu0 %3778
      %3780 = vrot.lane.b32.xlu0 %v3510, 50
      %v3781 = vpop.permute.xlu0 %3780
      %3782 = vrot.lane.b32.xlu0 %v3515, 50
      %v3783 = vpop.permute.xlu0 %3782
      %3784 = vrot.lane.b32.xlu0 %v3522, 50
      %v3785 = vpop.permute.xlu0 %3784
      %3786 = vrot.lane.b32.xlu0 %v3523, 50
      %v3787 = vpop.permute.xlu0 %3786
      %3788 = vrot.lane.b32.xlu0 %v3524, 50
      %v3789 = vpop.permute.xlu0 %3788
      %3790 = vrot.lane.b32.xlu0 %v3526, 50
      %v3791 = vpop.permute.xlu0 %3790
      %3792 = vrot.lane.b32.xlu0 %v3533, 50
      %v3793 = vpop.permute.xlu0 %3792
      %3794 = vrot.lane.b32.xlu0 %v3534, 50
      %v3795 = vpop.permute.xlu0 %3794
      %3796 = vrot.lane.b32.xlu0 %v3535, 50
      %v3797 = vpop.permute.xlu0 %3796
      %3798 = vrot.lane.b32.xlu0 %v3537, 50
      %v3799 = vpop.permute.xlu0 %3798
      %3800 = vrot.lane.b32.xlu0 %v3544, 50
      %v3801 = vpop.permute.xlu0 %3800
      %3802 = vrot.lane.b32.xlu0 %v3545, 50
      %v3803 = vpop.permute.xlu0 %3802
      %3804 = vrot.lane.b32.xlu0 %v3546, 50
      %v3805 = vpop.permute.xlu0 %3804
      %3806 = vrot.lane.b32.xlu0 %v3580, 50
      %v3807 = vpop.permute.xlu0 %3806
      %3808 = vrot.lane.b32.xlu0 %v3651, 50
      %v3809 = vpop.permute.xlu0 %3808
      %3810 = vrot.lane.b32.xlu0 %v3652, 50
      %v3811 = vpop.permute.xlu0 %3810
      %3812 = vrot.lane.b32.xlu0 %v3653, 50
      %v3813 = vpop.permute.xlu0 %3812
      %3814 = vrot.lane.b32.xlu0 %v3588, 50
      %v3815 = vpop.permute.xlu0 %3814
      %3816 = vrot.lane.b32.xlu0 %v3654, 50
      %v3817 = vpop.permute.xlu0 %3816
      %3818 = vrot.lane.b32.xlu0 %v3655, 50
      %v3819 = vpop.permute.xlu0 %3818
      %3820 = vrot.lane.b32.xlu0 %v3656, 50
      %v3821 = vpop.permute.xlu0 %3820
      %3822 = vrot.lane.b32.xlu0 %v3596, 50
      %v3823 = vpop.permute.xlu0 %3822
      %3824 = vrot.lane.b32.xlu0 %v3657, 50
      %v3825 = vpop.permute.xlu0 %3824
      %3826 = vrot.lane.b32.xlu0 %v3658, 50
      %v3827 = vpop.permute.xlu0 %3826
      %3828 = vrot.lane.b32.xlu0 %v3659, 50
      %v3829 = vpop.permute.xlu0 %3828
      %3830 = vrot.lane.b32.xlu0 %v3604, 50
      %v3831 = vpop.permute.xlu0 %3830
      %3832 = vrot.lane.b32.xlu0 %v3660, 50
      %v3833 = vpop.permute.xlu0 %3832
      %3834 = vrot.lane.b32.xlu0 %v3661, 50
      %v3835 = vpop.permute.xlu0 %3834
      %3836 = vrot.lane.b32.xlu0 %v3662, 50
      %v3837 = vpop.permute.xlu0 %3836
      %3838 = vrot.lane.b32.xlu0 %v3612, 50
      %v3839 = vpop.permute.xlu0 %3838
      %3840 = vrot.lane.b32.xlu0 %v3663, 50
      %v3841 = vpop.permute.xlu0 %3840
      %3842 = vrot.lane.b32.xlu0 %v3664, 50
      %v3843 = vpop.permute.xlu0 %3842
      %3844 = vrot.lane.b32.xlu0 %v3665, 50
      %v3845 = vpop.permute.xlu0 %3844
      %3846 = vrot.lane.b32.xlu0 %v3620, 50
      %v3847 = vpop.permute.xlu0 %3846
      %3848 = vrot.lane.b32.xlu0 %v3666, 50
      %v3849 = vpop.permute.xlu0 %3848
      %3850 = vrot.lane.b32.xlu0 %v3667, 50
      %v3851 = vpop.permute.xlu0 %3850
      %3852 = vrot.lane.b32.xlu0 %v3668, 50
      %v3853 = vpop.permute.xlu0 %3852
      %3854 = vrot.lane.b32.xlu0 %v3628, 50
      %v3855 = vpop.permute.xlu0 %3854
      %3856 = vrot.lane.b32.xlu0 %v3669, 50
      %v3857 = vpop.permute.xlu0 %3856
      %3858 = vrot.lane.b32.xlu0 %v3670, 50
      %v3859 = vpop.permute.xlu0 %3858
      %3860 = vrot.lane.b32.xlu0 %v3671, 50
      %v3861 = vpop.permute.xlu0 %3860
      %3862 = vrot.lane.b32.xlu0 %v3636, 50
      %v3863 = vpop.permute.xlu0 %3862
      %3864 = vrot.lane.b32.xlu0 %v3672, 50
      %v3865 = vpop.permute.xlu0 %3864
      %3866 = vrot.lane.b32.xlu0 %v3673, 50
      %v3867 = vpop.permute.xlu0 %3866
      %3868 = vrot.lane.b32.xlu0 %v3674, 50
      %v3869 = vpop.permute.xlu0 %3868
      %3870 = vrot.lane.b32.xlu0 %v3644, 50
      %v3871 = vpop.permute.xlu0 %3870
      %3872 = vrot.lane.b32.xlu0 %v3675, 50
      %v3873 = vpop.permute.xlu0 %3872
      %3874 = vrot.lane.b32.xlu0 %v3676, 50
      %v3875 = vpop.permute.xlu0 %3874
      %3876 = vrot.lane.b32.xlu0 %v3677, 50
      %v3877 = vpop.permute.xlu0 %3876
      %v3878 = vsel %vm2000, %v3679, %v3681
      %v3879 = vsel %vm2000, %v3681, %v3683
      %v3880 = vsel %vm2000, %v3683, %v3685
      %v3881 = vsel %vm2000, %v3687, %v3689
      %v3882 = vsel %vm2000, %v3689, %v3691
      %v3883 = vsel %vm2000, %v3691, %v3693
      %v3884 = vsel %vm2000, %v3695, %v3697
      %v3885 = vsel %vm2000, %v3697, %v3699
      %v3886 = vsel %vm2000, %v3699, %v3701
      %v3887 = vsel %vm2000, %v3703, %v3705
      %v3888 = vsel %vm2000, %v3705, %v3707
      %v3889 = vsel %vm2000, %v3707, %v3709
      %v3890 = vsel %vm2000, %v3711, %v3713
      %v3891 = vsel %vm2000, %v3713, %v3715
      %v3892 = vsel %vm2000, %v3715, %v3717
      %v3893 = vsel %vm2000, %v3719, %v3721
      %v3894 = vsel %vm2000, %v3721, %v3723
      %v3895 = vsel %vm2000, %v3723, %v3725
      %v3896 = vsel %vm2000, %v3727, %v3729
      %v3897 = vsel %vm2000, %v3729, %v3731
      %v3898 = vsel %vm2000, %v3731, %v3733
      %v3899 = vsel %vm2000, %v3735, %v3737
      %v3900 = vsel %vm2000, %v3737, %v3739
      %v3901 = vsel %vm2000, %v3739, %v3741
      %v3902 = vsel %vm2000, %v3743, %v3745
      %v3903 = vsel %vm2000, %v3745, %v3747
      %v3904 = vsel %vm2000, %v3747, %v3749
      %v3905 = vsel %vm2000, %v3751, %v3753
      %v3906 = vsel %vm2000, %v3753, %v3755
      %v3907 = vsel %vm2000, %v3755, %v3757
      %v3908 = vsel %vm2000, %v3759, %v3761
      %v3909 = vsel %vm2000, %v3761, %v3763
      %v3910 = vsel %vm2000, %v3763, %v3765
      %v3911 = vsel %vm2000, %v3767, %v3769
      %v3912 = vsel %vm2000, %v3769, %v3771
      %v3913 = vsel %vm2000, %v3771, %v3773
      %v3914 = vsel %vm2000, %v3775, %v3777
      %v3915 = vsel %vm2000, %v3777, %v3779
      %v3916 = vsel %vm2000, %v3779, %v3781
      %v3917 = vsel %vm2000, %v3783, %v3785
      %v3918 = vsel %vm2000, %v3785, %v3787
      %v3919 = vsel %vm2000, %v3787, %v3789
      %v3920 = vsel %vm2000, %v3791, %v3793
      %v3921 = vsel %vm2000, %v3793, %v3795
      %v3922 = vsel %vm2000, %v3795, %v3797
      %v3923 = vsel %vm2000, %v3799, %v3801
      %v3924 = vsel %vm2000, %v3801, %v3803
      %v3925 = vsel %vm2000, %v3803, %v3805
      %v3926 = vsel %vm2000, %v3807, %v3809
      %v3927 = vsel %vm2000, %v3809, %v3811
      %v3928 = vsel %vm2000, %v3811, %v3813
      %v3929 = vsel %vm2000, %v3815, %v3817
      %v3930 = vsel %vm2000, %v3817, %v3819
      %v3931 = vsel %vm2000, %v3819, %v3821
      %v3932 = vsel %vm2000, %v3823, %v3825
      %v3933 = vsel %vm2000, %v3825, %v3827
      %v3934 = vsel %vm2000, %v3827, %v3829
      %v3935 = vsel %vm2000, %v3831, %v3833
      %v3936 = vsel %vm2000, %v3833, %v3835
      %v3937 = vsel %vm2000, %v3835, %v3837
      %v3938 = vsel %vm2000, %v3839, %v3841
      %v3939 = vsel %vm2000, %v3841, %v3843
      %v3940 = vsel %vm2000, %v3843, %v3845
      %v3941 = vsel %vm2000, %v3847, %v3849
      %v3942 = vsel %vm2000, %v3849, %v3851
      %v3943 = vsel %vm2000, %v3851, %v3853
      %v3944 = vsel %vm2000, %v3855, %v3857
      %v3945 = vsel %vm2000, %v3857, %v3859
      %v3946 = vsel %vm2000, %v3859, %v3861
      %v3947 = vsel %vm2000, %v3863, %v3865
      %v3948 = vsel %vm2000, %v3865, %v3867
      %v3949 = vsel %vm2000, %v3867, %v3869
      %v3950 = vsel %vm2000, %v3871, %v3873
      %v3951 = vsel %vm2000, %v3873, %v3875
      %v3952 = vsel %vm2000, %v3875, %v3877
      %4028 = vmatprep.subr.mxu0 %v3924
      %4029 = vmatpush1.msra.mxu0 %v3923
      %4030 = vmatprep.subr.mxu0 %v3921
      %4031 = vmatpush1.msra.mxu0 %v3920
      %4032 = vmatprep.subr.mxu0 %v3918
      %4033 = vmatpush1.msra.mxu0 %v3917
      %4034 = vmatprep.subr.mxu0 %v3915
      %4035 = vmatpush1.msra.mxu0 %v3914
      %4036 = vmatprep.subr.mxu0 %v3912
      %4037 = vmatpush1.msra.mxu0 %v3911
      %4038 = vmatprep.subr.mxu0 %v3909
      %4039 = vmatpush1.msra.mxu0 %v3908
      %4040 = vmatprep.subr.mxu0 %v3906
      %4041 = vmatpush1.msra.mxu0 %v3905
      %4042 = vmatprep.subr.mxu0 %v3903
      %4043 = vmatpush1.msra.mxu0 %v3902
      %4044 = vmatprep.subr.mxu0 %v3900
      %4045 = vmatpush1.msra.mxu0 %v3899
      %4046 = vmatprep.subr.mxu0 %v3897
      %4047 = vmatpush1.msra.mxu0 %v3896
      %4048 = vmatprep.subr.mxu0 %v3894
      %4049 = vmatpush1.msra.mxu0 %v3893
      %4050 = vmatprep.subr.mxu0 %v3891
      %4051 = vmatpush1.msra.mxu0 %v3890
      %4052 = vmatprep.subr.mxu0 %v3888
      %4053 = vmatpush1.msra.mxu0 %v3887
      %4054 = vmatprep.subr.mxu0 %v3885
      %4055 = vmatpush1.msra.mxu0 %v3884
      %4056 = vmatprep.subr.mxu0 %v3882
      %4057 = vmatpush1.msra.mxu0 %v3881
      %4058 = vmatprep.subr.mxu0 %v3879
      %4059 = vmatpush1.msra.mxu0 %v3878
      %4060 = vmatprep.subr.mxu0 0.0
      %4061 = vmatpush2.msra.mxu0 0.0
      %4062 = vmatprep.subr.mxu0 0.0
      %4063 = vmatpush2.msra.mxu0 0.0
      %4064 = vmatprep.subr.mxu0 0.0
      %4065 = vmatpush2.msra.mxu0 0.0
      %4066 = vmatprep.subr.mxu0 0.0
      %4067 = vmatpush2.msra.mxu0 0.0
      %4068 = vmatprep.subr.mxu0 0.0
      %4069 = vmatpush2.msra.mxu0 0.0
      %4070 = vmatprep.subr.mxu0 0.0
      %4071 = vmatpush2.msra.mxu0 0.0
      %4072 = vmatprep.subr.mxu0 0.0
      %4073 = vmatpush2.msra.mxu0 0.0
      %4074 = vmatprep.subr.mxu0 %v3951
      %4075 = vmatpush2.msra.mxu0 %v3950
      %4076 = vmatprep.subr.mxu0 %v3948
      %4077 = vmatpush2.msra.mxu0 %v3947
      %4078 = vmatprep.subr.mxu0 %v3945
      %4079 = vmatpush2.msra.mxu0 %v3944
      %4080 = vmatprep.subr.mxu0 %v3942
      %4081 = vmatpush2.msra.mxu0 %v3941
      %4082 = vmatprep.subr.mxu0 %v3939
      %4083 = vmatpush2.msra.mxu0 %v3938
      %4084 = vmatprep.subr.mxu0 %v3936
      %4085 = vmatpush2.msra.mxu0 %v3935
      %4086 = vmatprep.subr.mxu0 %v3933
      %4087 = vmatpush2.msra.mxu0 %v3932
      %4088 = vmatprep.subr.mxu0 %v3930
      %4089 = vmatpush2.msra.mxu0 %v3929
      %4090 = vmatprep.subr.mxu0 %v3927
      %4091 = vmatpush2.msra.mxu0 %v3926
      %4092 = vmatprep.mubr.f32.mxu0 %v2153
      %4093 = vmatmul.mubr.f32.gmra.mxu0 %v1368
      %v4094 = vpop.f32.mrf.mxu0
      %v4095 = vadd.f32 0.0, %v4094
      %v4096 = vpop.f32.mrf.mxu0
      %v4097 = vadd.f32 0.0, %v4096
      %4098 = vmatprep.mubr.f32.mxu0 %v2156
      %4099 = vmatmul.mubr.f32.gmra.mxu0 %v1370
      %v4100 = vpop.f32.mrf.mxu0
      %v4101 = vadd.f32 0.0, %v4100
      %v4102 = vpop.f32.mrf.mxu0
      %v4103 = vadd.f32 0.0, %v4102
      %4104 = vmatprep.mubr.f32.mxu0 %v2159
      %4105 = vmatmul.mubr.f32.gmra.mxu0 %v1372
      %v4106 = vpop.f32.mrf.mxu0
      %v4107 = vadd.f32 0.0, %v4106
      %v4108 = vpop.f32.mrf.mxu0
      %v4109 = vadd.f32 0.0, %v4108
      %4110 = vmatprep.mubr.f32.mxu0 %v2162
      %4111 = vmatmul.mubr.f32.gmra.mxu0 %v1374
      %v4112 = vpop.f32.mrf.mxu0
      %v4113 = vadd.f32 0.0, %v4112
      %v4114 = vpop.f32.mrf.mxu0
      %v4115 = vadd.f32 0.0, %v4114
      %4116 = vdwg.mxu0
      %4117 = vmatprep.subr.mxu0 0.0
      %4118 = vmatpush1.msra.mxu0 %v3925
      %4119 = vmatprep.subr.mxu0 0.0
      %4120 = vmatpush1.msra.mxu0 %v3922
      %4121 = vmatprep.subr.mxu0 0.0
      %4122 = vmatpush1.msra.mxu0 %v3919
      %4123 = vmatprep.subr.mxu0 0.0
      %4124 = vmatpush1.msra.mxu0 %v3916
      %4125 = vmatprep.subr.mxu0 0.0
      %4126 = vmatpush1.msra.mxu0 %v3913
      %4127 = vmatprep.subr.mxu0 0.0
      %4128 = vmatpush1.msra.mxu0 %v3910
      %4129 = vmatprep.subr.mxu0 0.0
      %4130 = vmatpush1.msra.mxu0 %v3907
      %4131 = vmatprep.subr.mxu0 0.0
      %4132 = vmatpush1.msra.mxu0 %v3904
      %4133 = vmatprep.subr.mxu0 0.0
      %4134 = vmatpush1.msra.mxu0 %v3901
      %4135 = vmatprep.subr.mxu0 0.0
      %4136 = vmatpush1.msra.mxu0 %v3898
      %4137 = vmatprep.subr.mxu0 0.0
      %4138 = vmatpush1.msra.mxu0 %v3895
      %4139 = vmatprep.subr.mxu0 0.0
      %4140 = vmatpush1.msra.mxu0 %v3892
      %4141 = vmatprep.subr.mxu0 0.0
      %4142 = vmatpush1.msra.mxu0 %v3889
      %4143 = vmatprep.subr.mxu0 0.0
      %4144 = vmatpush1.msra.mxu0 %v3886
      %4145 = vmatprep.subr.mxu0 0.0
      %4146 = vmatpush1.msra.mxu0 %v3883
      %4147 = vmatprep.subr.mxu0 0.0
      %4148 = vmatpush1.msra.mxu0 %v3880
      %4149 = vmatprep.subr.mxu0 0.0
      %4150 = vmatpush2.msra.mxu0 0.0
      %4151 = vmatprep.subr.mxu0 0.0
      %4152 = vmatpush2.msra.mxu0 0.0
      %4153 = vmatprep.subr.mxu0 0.0
      %4154 = vmatpush2.msra.mxu0 0.0
      %4155 = vmatprep.subr.mxu0 0.0
      %4156 = vmatpush2.msra.mxu0 0.0
      %4157 = vmatprep.subr.mxu0 0.0
      %4158 = vmatpush2.msra.mxu0 0.0
      %4159 = vmatprep.subr.mxu0 0.0
      %4160 = vmatpush2.msra.mxu0 0.0
      %4161 = vmatprep.subr.mxu0 0.0
      %4162 = vmatpush2.msra.mxu0 0.0
      %4163 = vmatprep.subr.mxu0 0.0
      %4164 = vmatpush2.msra.mxu0 %v3952
      %4165 = vmatprep.subr.mxu0 0.0
      %4166 = vmatpush2.msra.mxu0 %v3949
      %4167 = vmatprep.subr.mxu0 0.0
      %4168 = vmatpush2.msra.mxu0 %v3946
      %4169 = vmatprep.subr.mxu0 0.0
      %4170 = vmatpush2.msra.mxu0 %v3943
      %4171 = vmatprep.subr.mxu0 0.0
      %4172 = vmatpush2.msra.mxu0 %v3940
      %4173 = vmatprep.subr.mxu0 0.0
      %4174 = vmatpush2.msra.mxu0 %v3937
      %4175 = vmatprep.subr.mxu0 0.0
      %4176 = vmatpush2.msra.mxu0 %v3934
      %4177 = vmatprep.subr.mxu0 0.0
      %4178 = vmatpush2.msra.mxu0 %v3931
      %4179 = vmatprep.subr.mxu0 0.0
      %4180 = vmatpush2.msra.mxu0 %v3928
      %4181 = vmatprep.mubr.f32.mxu0 %v2153
      %4182 = vmatmul.mubr.f32.gmra.mxu0 %v1368
      %v4183 = vpop.f32.mrf.mxu0
      %v4184 = vadd.f32 0.0, %v4183
      %v4185 = vpop.f32.mrf.mxu0
      %4186 = vmatprep.mubr.f32.mxu0 %v2156
      %4187 = vmatmul.mubr.f32.gmra.mxu0 %v1370
      %v4188 = vpop.f32.mrf.mxu0
      %v4189 = vadd.f32 0.0, %v4188
      %v4190 = vpop.f32.mrf.mxu0
      %4191 = vmatprep.mubr.f32.mxu0 %v2159
      %4192 = vmatmul.mubr.f32.gmra.mxu0 %v1372
      %v4193 = vpop.f32.mrf.mxu0
      %v4194 = vadd.f32 0.0, %v4193
      %v4195 = vpop.f32.mrf.mxu0
      %4196 = vmatprep.mubr.f32.mxu0 %v2162
      %4197 = vmatmul.mubr.f32.gmra.mxu0 %v1374
      %v4198 = vpop.f32.mrf.mxu0
      %v4199 = vadd.f32 0.0, %v4198
      %v4200 = vpop.f32.mrf.mxu0
      %4201 = vdwg.mxu0
      %v4202 = vadd.f32 %v3363, %v4095
      %v4203 = vadd.f32 %v3364, %v4097
      %v4204 = vadd.f32 %v3365, %v4184
      %v4205 = vadd.f32 %v3366, %v4101
      %v4206 = vadd.f32 %v3367, %v4103
      %v4207 = vadd.f32 %v3368, %v4189
      %v4208 = vadd.f32 %v3369, %v4107
      %v4209 = vadd.f32 %v3370, %v4109
      %v4210 = vadd.f32 %v3371, %v4194
      %v4211 = vadd.f32 %v3372, %v4113
      %v4212 = vadd.f32 %v3373, %v4115
      %v4213 = vadd.f32 %v3374, %v4199
      %v4214 = vxor.u32 %v4202, 2147483648
      %v4215 = vxor.u32 %v4203, 2147483648
      %v4216 = vxor.u32 %v4204, 2147483648
      %v4217 = vmul.f32 %v4214, 1.442695
      %v4218 = vpow.pop %v4217
      %v4219 = vmul.f32 %v4215, 1.442695
      %v4220 = vpow.pop %v4219
      %v4221 = vmul.f32 %v4216, 1.442695
      %v4222 = vpow.pop %v4221
      %v4223 = vadd.f32 %v4218, 1.0
      %v4224 = vadd.f32 %v4220, 1.0
      %v4225 = vadd.f32 %v4222, 1.0
      %v4226 = vrcp.pop %v4223
      %v4227 = vmul.f32 1.0, %v4226
      %v4228 = vrcp.pop %v4224
      %v4229 = vmul.f32 1.0, %v4228
      %v4230 = vrcp.pop %v4225
      %v4231 = vmul.f32 1.0, %v4230
      %v4232 = vxor.u32 %v4205, 2147483648
      %v4233 = vxor.u32 %v4206, 2147483648
      %v4234 = vxor.u32 %v4207, 2147483648
      %v4235 = vmul.f32 %v4232, 1.442695
      %v4236 = vpow.pop %v4235
      %v4237 = vmul.f32 %v4233, 1.442695
      %v4238 = vpow.pop %v4237
      %v4239 = vmul.f32 %v4234, 1.442695
      %v4240 = vpow.pop %v4239
      %v4241 = vadd.f32 %v4236, 1.0
      %v4242 = vadd.f32 %v4238, 1.0
      %v4243 = vadd.f32 %v4240, 1.0
      %v4244 = vrcp.pop %v4241
      %v4245 = vmul.f32 1.0, %v4244
      %v4246 = vrcp.pop %v4242
      %v4247 = vmul.f32 1.0, %v4246
      %v4248 = vrcp.pop %v4243
      %v4249 = vmul.f32 1.0, %v4248
      %v4250 = vxor.u32 %v4208, 2147483648
      %v4251 = vxor.u32 %v4209, 2147483648
      %v4252 = vxor.u32 %v4210, 2147483648
      %v4253 = vmul.f32 %v4250, 1.442695
      %v4254 = vpow.pop %v4253
      %v4255 = vmul.f32 %v4251, 1.442695
      %v4256 = vpow.pop %v4255
      %v4257 = vmul.f32 %v4252, 1.442695
      %v4258 = vpow.pop %v4257
      %v4259 = vadd.f32 %v4254, 1.0
      %v4260 = vadd.f32 %v4256, 1.0
      %v4261 = vadd.f32 %v4258, 1.0
      %v4262 = vrcp.pop %v4259
      %v4263 = vmul.f32 1.0, %v4262
      %v4264 = vrcp.pop %v4260
      %v4265 = vmul.f32 1.0, %v4264
      %v4266 = vrcp.pop %v4261
      %v4267 = vmul.f32 1.0, %v4266
      %v4268 = vtanh.pop %v4211
      %v4269 = vtanh.pop %v4212
      %v4270 = vtanh.pop %v4213
      %v4271 = vmul.f32 %v3345, %v4245
      %v4272 = vmul.f32 %v3346, %v4247
      %v4273 = vmul.f32 %v3347, %v4249
      %v4274 = vmul.f32 %v4227, %v4268
      %v4275 = vmul.f32 %v4229, %v4269
      %v4276 = vmul.f32 %v4231, %v4270
      %v4277 = vadd.f32 %v4271, %v4274
      %v4278 = vadd.f32 %v4272, %v4275
      %v4279 = vadd.f32 %v4273, %v4276
      %v4280 = vtanh.pop %v4277
      %v4281 = vtanh.pop %v4278
      %v4282 = vtanh.pop %v4279
      %v4283 = vmul.f32 %v4263, %v4280
      %v4284 = vmul.f32 %v4265, %v4281
      %v4285 = vmul.f32 %v4267, %v4282
      %4286 = vst [vmem:[#allocation4 + $0x48] sm:$0xff] %v4283
      %4287 = vst [vmem:[#allocation4 + $0x50] sm:$0xff] %v4284
      %4288 = vst [vmem:[#allocation4 + $0x58] sm:$0xff] %v4285
      %v4289 = vmul.f32 %v4283, %v1360
      %v4290 = vmul.f32 %v4284, %v1361
      %v4291 = vmul.f32 %v4285, %v1362
      %4292 = vst [vmem:[#allocation3 + $0x8] sm:$0xff] %v4289
      %4293 = vst [vmem:[#allocation3 + $0x10] sm:$0xff] %v4290
      %4294 = vst [vmem:[#allocation3 + $0x18] sm:$0xff] %v4291
      %v4295 = vld [vmem:[#allocation2 + $0x60] sm:$0xff]
      %v4296 = vld [vmem:[#allocation2 + $0x68] sm:$0xff]
      %v4297 = vld [vmem:[#allocation2 + $0x70] sm:$0xff]
      %v4298 = vld [vmem:[#allocation2 + $0xd8] sm:$0xff]
      %v4299 = vld [vmem:[#allocation2 + $0xe0] sm:$0xff]
      %v4300 = vld [vmem:[#allocation2 + $0xe8] sm:$0xff]
      %v4301 = vld [vmem:[#allocation2 + $0x150] sm:$0xff]
      %v4302 = vld [vmem:[#allocation2 + $0x158] sm:$0xff]
      %v4303 = vld [vmem:[#allocation2 + $0x160] sm:$0xff]
      %v4304 = vld [vmem:[#allocation2 + $0x1c8] sm:$0xff]
      %v4305 = vld [vmem:[#allocation2 + $0x1d0] sm:$0xff]
      %v4306 = vld [vmem:[#allocation2 + $0x1d8] sm:$0xff]
      %v4307 = vld [vmem:[#allocation3] sm:$0xff]
      %v4308 = vld [vmem:[#allocation3 + $0x8] sm:$0xff]
      %v4309 = vld [vmem:[#allocation3 + $0x10] sm:$0xff]
      %v4310 = vld [vmem:[#allocation3 + $0x18] sm:$0xff]
      %v4311 = vld [vmem:[#allocation3 + $0x20] sm:$0xff]
      %4316 = vrot.lane.b32.xlu0 %v4307, 127
      %v4317 = vpop.permute.xlu0 %4316
      %4318 = vrot.lane.b32.xlu0 %v4308, 127
      %v4319 = vpop.permute.xlu0 %4318
      %4320 = vrot.lane.b32.xlu0 %v4309, 127
      %v4321 = vpop.permute.xlu0 %4320
      %4322 = vrot.lane.b32.xlu0 %v4310, 127
      %v4323 = vpop.permute.xlu0 %4322
      %v4324 = vsel %vm1498, %v4317, %v4319
      %v4325 = vsel %vm1498, %v4319, %v4321
      %v4326 = vsel %vm1498, %v4321, %v4323
      %4327 = vrot.lane.b32.xlu0 %v4307, 126
      %v4328 = vpop.permute.xlu0 %4327
      %4329 = vrot.lane.b32.xlu0 %v4308, 126
      %v4330 = vpop.permute.xlu0 %4329
      %4331 = vrot.lane.b32.xlu0 %v4309, 126
      %v4332 = vpop.permute.xlu0 %4331
      %4333 = vrot.lane.b32.xlu0 %v4310, 126
      %v4334 = vpop.permute.xlu0 %4333
      %v4335 = vsel %vm1510, %v4328, %v4330
      %v4336 = vsel %vm1510, %v4330, %v4332
      %v4337 = vsel %vm1510, %v4332, %v4334
      %4338 = vrot.lane.b32.xlu0 %v4307, 125
      %v4339 = vpop.permute.xlu0 %4338
      %4340 = vrot.lane.b32.xlu0 %v4308, 125
      %v4341 = vpop.permute.xlu0 %4340
      %4342 = vrot.lane.b32.xlu0 %v4309, 125
      %v4343 = vpop.permute.xlu0 %4342
      %4344 = vrot.lane.b32.xlu0 %v4310, 125
      %v4345 = vpop.permute.xlu0 %4344
      %v4346 = vsel %vm1522, %v4339, %v4341
      %v4347 = vsel %vm1522, %v4341, %v4343
      %v4348 = vsel %vm1522, %v4343, %v4345
      %4349 = vrot.lane.b32.xlu0 %v4307, 124
      %v4350 = vpop.permute.xlu0 %4349
      %4351 = vrot.lane.b32.xlu0 %v4308, 124
      %v4352 = vpop.permute.xlu0 %4351
      %4353 = vrot.lane.b32.xlu0 %v4309, 124
      %v4354 = vpop.permute.xlu0 %4353
      %4355 = vrot.lane.b32.xlu0 %v4310, 124
      %v4356 = vpop.permute.xlu0 %4355
      %v4357 = vsel %vm1534, %v4350, %v4352
      %v4358 = vsel %vm1534, %v4352, %v4354
      %v4359 = vsel %vm1534, %v4354, %v4356
      %4360 = vrot.lane.b32.xlu0 %v4307, 104
      %v4361 = vpop.permute.xlu0 %4360
      %4362 = vrot.lane.b32.xlu0 %v4308, 104
      %v4363 = vpop.permute.xlu0 %4362
      %4364 = vrot.lane.b32.xlu0 %v4309, 104
      %v4365 = vpop.permute.xlu0 %4364
      %4366 = vrot.lane.b32.xlu0 %v4310, 104
      %v4367 = vpop.permute.xlu0 %4366
      %v4368 = vsel %vm1546, %v4361, %v4363
      %v4369 = vsel %vm1546, %v4363, %v4365
      %v4370 = vsel %vm1546, %v4365, %v4367
      %4371 = vrot.lane.b32.xlu0 %v4307, 103
      %v4372 = vpop.permute.xlu0 %4371
      %4373 = vrot.lane.b32.xlu0 %v4308, 103
      %v4374 = vpop.permute.xlu0 %4373
      %4375 = vrot.lane.b32.xlu0 %v4309, 103
      %v4376 = vpop.permute.xlu0 %4375
      %4377 = vrot.lane.b32.xlu0 %v4310, 103
      %v4378 = vpop.permute.xlu0 %4377
      %v4379 = vsel %vm1558, %v4372, %v4374
      %v4380 = vsel %vm1558, %v4374, %v4376
      %v4381 = vsel %vm1558, %v4376, %v4378
      %4382 = vrot.lane.b32.xlu0 %v4307, 102
      %v4383 = vpop.permute.xlu0 %4382
      %4384 = vrot.lane.b32.xlu0 %v4308, 102
      %v4385 = vpop.permute.xlu0 %4384
      %4386 = vrot.lane.b32.xlu0 %v4309, 102
      %v4387 = vpop.permute.xlu0 %4386
      %4388 = vrot.lane.b32.xlu0 %v4310, 102
      %v4389 = vpop.permute.xlu0 %4388
      %v4390 = vsel %vm1570, %v4383, %v4385
      %v4391 = vsel %vm1570, %v4385, %v4387
      %v4392 = vsel %vm1570, %v4387, %v4389
      %4393 = vrot.lane.b32.xlu0 %v4307, 101
      %v4394 = vpop.permute.xlu0 %4393
      %4395 = vrot.lane.b32.xlu0 %v4308, 101
      %v4396 = vpop.permute.xlu0 %4395
      %4397 = vrot.lane.b32.xlu0 %v4309, 101
      %v4398 = vpop.permute.xlu0 %4397
      %4399 = vrot.lane.b32.xlu0 %v4310, 101
      %v4400 = vpop.permute.xlu0 %4399
      %v4401 = vsel %vm1582, %v4394, %v4396
      %v4402 = vsel %vm1582, %v4396, %v4398
      %v4403 = vsel %vm1582, %v4398, %v4400
      %4404 = vrot.lane.b32.xlu0 %v4307, 100
      %v4405 = vpop.permute.xlu0 %4404
      %4406 = vrot.lane.b32.xlu0 %v4308, 100
      %v4407 = vpop.permute.xlu0 %4406
      %4408 = vrot.lane.b32.xlu0 %v4309, 100
      %v4409 = vpop.permute.xlu0 %4408
      %4410 = vrot.lane.b32.xlu0 %v4310, 100
      %v4411 = vpop.permute.xlu0 %4410
      %v4412 = vsel %vm475, %v4405, %v4407
      %v4413 = vsel %vm475, %v4407, %v4409
      %v4414 = vsel %vm475, %v4409, %v4411
      %4415 = vrot.lane.b32.xlu0 %v4307, 80
      %v4416 = vpop.permute.xlu0 %4415
      %4417 = vrot.lane.b32.xlu0 %v4308, 80
      %v4418 = vpop.permute.xlu0 %4417
      %4419 = vrot.lane.b32.xlu0 %v4309, 80
      %v4420 = vpop.permute.xlu0 %4419
      %4421 = vrot.lane.b32.xlu0 %v4310, 80
      %v4422 = vpop.permute.xlu0 %4421
      %v4423 = vsel %vm1605, %v4416, %v4418
      %v4424 = vsel %vm1605, %v4418, %v4420
      %v4425 = vsel %vm1605, %v4420, %v4422
      %4426 = vrot.lane.b32.xlu0 %v4307, 79
      %v4427 = vpop.permute.xlu0 %4426
      %4428 = vrot.lane.b32.xlu0 %v4308, 79
      %v4429 = vpop.permute.xlu0 %4428
      %4430 = vrot.lane.b32.xlu0 %v4309, 79
      %v4431 = vpop.permute.xlu0 %4430
      %4432 = vrot.lane.b32.xlu0 %v4310, 79
      %v4433 = vpop.permute.xlu0 %4432
      %v4434 = vsel %vm1617, %v4427, %v4429
      %v4435 = vsel %vm1617, %v4429, %v4431
      %v4436 = vsel %vm1617, %v4431, %v4433
      %4437 = vrot.lane.b32.xlu0 %v4308, 78
      %v4438 = vpop.permute.xlu0 %4437
      %4439 = vrot.lane.b32.xlu0 %v4309, 78
      %v4440 = vpop.permute.xlu0 %4439
      %4441 = vrot.lane.b32.xlu0 %v4310, 78
      %v4442 = vpop.permute.xlu0 %4441
      %v4443 = vsel %vm1627, %v4438, %v4440
      %v4444 = vsel %vm1627, %v4440, %v4442
      %4446 = vrot.lane.b32.xlu0 %v4308, 77
      %v4447 = vpop.permute.xlu0 %4446
      %4448 = vrot.lane.b32.xlu0 %v4309, 77
      %v4449 = vpop.permute.xlu0 %4448
      %4450 = vrot.lane.b32.xlu0 %v4310, 77
      %v4451 = vpop.permute.xlu0 %4450
      %4452 = vrot.lane.b32.xlu0 %v4311, 77
      %v4453 = vpop.permute.xlu0 %4452
      %v4454 = vsel %vm1639, %v4447, %v4449
      %v4455 = vsel %vm1639, %v4449, %v4451
      %v4456 = vsel %vm1639, %v4451, %v4453
      %4457 = vrot.lane.b32.xlu0 %v4308, 76
      %v4458 = vpop.permute.xlu0 %4457
      %4459 = vrot.lane.b32.xlu0 %v4309, 76
      %v4460 = vpop.permute.xlu0 %4459
      %4461 = vrot.lane.b32.xlu0 %v4310, 76
      %v4462 = vpop.permute.xlu0 %4461
      %4463 = vrot.lane.b32.xlu0 %v4311, 76
      %v4464 = vpop.permute.xlu0 %4463
      %v4465 = vsel %vm1651, %v4458, %v4460
      %v4466 = vsel %vm1651, %v4460, %v4462
      %v4467 = vsel %vm1651, %v4462, %v4464
      %4468 = vrot.lane.b32.xlu0 %v4308, 56
      %v4469 = vpop.permute.xlu0 %4468
      %4470 = vrot.lane.b32.xlu0 %v4309, 56
      %v4471 = vpop.permute.xlu0 %4470
      %4472 = vrot.lane.b32.xlu0 %v4310, 56
      %v4473 = vpop.permute.xlu0 %4472
      %4474 = vrot.lane.b32.xlu0 %v4311, 56
      %v4475 = vpop.permute.xlu0 %4474
      %v4476 = vsel %vm1663, %v4469, %v4471
      %v4477 = vsel %vm1663, %v4471, %v4473
      %v4478 = vsel %vm1663, %v4473, %v4475
      %4479 = vrot.lane.b32.xlu0 %v4311, 127
      %v4480 = vpop.permute.xlu0 %4479
      %v4481 = vsel %vm1498, %v4323, %v4480
      %4482 = vrot.lane.b32.xlu0 %v4311, 126
      %v4483 = vpop.permute.xlu0 %4482
      %v4484 = vsel %vm1510, %v4334, %v4483
      %4485 = vrot.lane.b32.xlu0 %v4311, 125
      %v4486 = vpop.permute.xlu0 %4485
      %v4487 = vsel %vm1522, %v4345, %v4486
      %4488 = vrot.lane.b32.xlu0 %v4308, 105
      %v4489 = vpop.permute.xlu0 %4488
      %4490 = vrot.lane.b32.xlu0 %v4309, 105
      %v4491 = vpop.permute.xlu0 %4490
      %4492 = vrot.lane.b32.xlu0 %v4310, 105
      %v4493 = vpop.permute.xlu0 %4492
      %4494 = vrot.lane.b32.xlu0 %v4311, 105
      %v4495 = vpop.permute.xlu0 %4494
      %v4496 = vsel %vm1684, %v4489, %v4491
      %v4497 = vsel %vm1684, %v4491, %v4493
      %v4498 = vsel %vm1684, %v4493, %v4495
      %4499 = vrot.lane.b32.xlu0 %v4311, 104
      %v4500 = vpop.permute.xlu0 %4499
      %v4501 = vsel %vm1546, %v4367, %v4500
      %4502 = vrot.lane.b32.xlu0 %v4311, 103
      %v4503 = vpop.permute.xlu0 %4502
      %v4504 = vsel %vm1558, %v4378, %v4503
      %4505 = vrot.lane.b32.xlu0 %v4311, 102
      %v4506 = vpop.permute.xlu0 %4505
      %v4507 = vsel %vm1570, %v4389, %v4506
      %4508 = vrot.lane.b32.xlu0 %v4311, 101
      %v4509 = vpop.permute.xlu0 %4508
      %v4510 = vsel %vm1582, %v4400, %v4509
      %4511 = vrot.lane.b32.xlu0 %v4308, 55
      %v4512 = vpop.permute.xlu0 %4511
      %4513 = vrot.lane.b32.xlu0 %v4309, 55
      %v4514 = vpop.permute.xlu0 %4513
      %4515 = vrot.lane.b32.xlu0 %v4310, 55
      %v4516 = vpop.permute.xlu0 %4515
      %4517 = vrot.lane.b32.xlu0 %v4311, 55
      %v4518 = vpop.permute.xlu0 %4517
      %4519 = vrot.lane.b32.xlu0 %v4325, 55
      %v4520 = vpop.permute.xlu0 %4519
      %4521 = vrot.lane.b32.xlu0 %v4326, 55
      %v4522 = vpop.permute.xlu0 %4521
      %4523 = vrot.lane.b32.xlu0 %v4481, 55
      %v4524 = vpop.permute.xlu0 %4523
      %4525 = vrot.lane.b32.xlu0 %v4480, 55
      %v4526 = vpop.permute.xlu0 %4525
      %4527 = vrot.lane.b32.xlu0 %v4336, 55
      %v4528 = vpop.permute.xlu0 %4527
      %4529 = vrot.lane.b32.xlu0 %v4337, 55
      %v4530 = vpop.permute.xlu0 %4529
      %4531 = vrot.lane.b32.xlu0 %v4484, 55
      %v4532 = vpop.permute.xlu0 %4531
      %4533 = vrot.lane.b32.xlu0 %v4483, 55
      %v4534 = vpop.permute.xlu0 %4533
      %4535 = vrot.lane.b32.xlu0 %v4347, 55
      %v4536 = vpop.permute.xlu0 %4535
      %4537 = vrot.lane.b32.xlu0 %v4348, 55
      %v4538 = vpop.permute.xlu0 %4537
      %4539 = vrot.lane.b32.xlu0 %v4487, 55
      %v4540 = vpop.permute.xlu0 %4539
      %4541 = vrot.lane.b32.xlu0 %v4486, 55
      %v4542 = vpop.permute.xlu0 %4541
      %4543 = vrot.lane.b32.xlu0 %v4496, 55
      %v4544 = vpop.permute.xlu0 %4543
      %4545 = vrot.lane.b32.xlu0 %v4497, 55
      %v4546 = vpop.permute.xlu0 %4545
      %4547 = vrot.lane.b32.xlu0 %v4498, 55
      %v4548 = vpop.permute.xlu0 %4547
      %4549 = vrot.lane.b32.xlu0 %v4495, 55
      %v4550 = vpop.permute.xlu0 %4549
      %4551 = vrot.lane.b32.xlu0 %v4369, 55
      %v4552 = vpop.permute.xlu0 %4551
      %4553 = vrot.lane.b32.xlu0 %v4370, 55
      %v4554 = vpop.permute.xlu0 %4553
      %4555 = vrot.lane.b32.xlu0 %v4501, 55
      %v4556 = vpop.permute.xlu0 %4555
      %4557 = vrot.lane.b32.xlu0 %v4500, 55
      %v4558 = vpop.permute.xlu0 %4557
      %4559 = vrot.lane.b32.xlu0 %v4380, 55
      %v4560 = vpop.permute.xlu0 %4559
      %4561 = vrot.lane.b32.xlu0 %v4381, 55
      %v4562 = vpop.permute.xlu0 %4561
      %4563 = vrot.lane.b32.xlu0 %v4504, 55
      %v4564 = vpop.permute.xlu0 %4563
      %4565 = vrot.lane.b32.xlu0 %v4503, 55
      %v4566 = vpop.permute.xlu0 %4565
      %4567 = vrot.lane.b32.xlu0 %v4391, 55
      %v4568 = vpop.permute.xlu0 %4567
      %4569 = vrot.lane.b32.xlu0 %v4392, 55
      %v4570 = vpop.permute.xlu0 %4569
      %4571 = vrot.lane.b32.xlu0 %v4507, 55
      %v4572 = vpop.permute.xlu0 %4571
      %4573 = vrot.lane.b32.xlu0 %v4506, 55
      %v4574 = vpop.permute.xlu0 %4573
      %4575 = vrot.lane.b32.xlu0 %v4402, 55
      %v4576 = vpop.permute.xlu0 %4575
      %4577 = vrot.lane.b32.xlu0 %v4403, 55
      %v4578 = vpop.permute.xlu0 %4577
      %4579 = vrot.lane.b32.xlu0 %v4510, 55
      %v4580 = vpop.permute.xlu0 %4579
      %4581 = vrot.lane.b32.xlu0 %v4509, 55
      %v4582 = vpop.permute.xlu0 %4581
      %v4583 = vsel %vm1772, %v4512, %v4514
      %v4584 = vsel %vm1772, %v4514, %v4516
      %v4585 = vsel %vm1772, %v4516, %v4518
      %v4586 = vsel %vm1772, %v4520, %v4522
      %v4587 = vsel %vm1772, %v4522, %v4524
      %v4588 = vsel %vm1772, %v4524, %v4526
      %v4589 = vsel %vm1772, %v4528, %v4530
      %v4590 = vsel %vm1772, %v4530, %v4532
      %v4591 = vsel %vm1772, %v4532, %v4534
      %v4592 = vsel %vm1772, %v4536, %v4538
      %v4593 = vsel %vm1772, %v4538, %v4540
      %v4594 = vsel %vm1772, %v4540, %v4542
      %v4595 = vsel %vm1772, %v4544, %v4546
      %v4596 = vsel %vm1772, %v4546, %v4548
      %v4597 = vsel %vm1772, %v4548, %v4550
      %v4598 = vsel %vm1772, %v4552, %v4554
      %v4599 = vsel %vm1772, %v4554, %v4556
      %v4600 = vsel %vm1772, %v4556, %v4558
      %v4601 = vsel %vm1772, %v4560, %v4562
      %v4602 = vsel %vm1772, %v4562, %v4564
      %v4603 = vsel %vm1772, %v4564, %v4566
      %v4604 = vsel %vm1772, %v4568, %v4570
      %v4605 = vsel %vm1772, %v4570, %v4572
      %v4606 = vsel %vm1772, %v4572, %v4574
      %v4607 = vsel %vm1772, %v4576, %v4578
      %v4608 = vsel %vm1772, %v4578, %v4580
      %v4609 = vsel %vm1772, %v4580, %v4582
      %4610 = vrot.lane.b32.xlu0 %v4307, 50
      %v4611 = vpop.permute.xlu0 %4610
      %4612 = vrot.lane.b32.xlu0 %v4308, 50
      %v4613 = vpop.permute.xlu0 %4612
      %4614 = vrot.lane.b32.xlu0 %v4309, 50
      %v4615 = vpop.permute.xlu0 %4614
      %4616 = vrot.lane.b32.xlu0 %v4310, 50
      %v4617 = vpop.permute.xlu0 %4616
      %4618 = vrot.lane.b32.xlu0 %v4324, 50
      %v4619 = vpop.permute.xlu0 %4618
      %4620 = vrot.lane.b32.xlu0 %v4325, 50
      %v4621 = vpop.permute.xlu0 %4620
      %4622 = vrot.lane.b32.xlu0 %v4326, 50
      %v4623 = vpop.permute.xlu0 %4622
      %4624 = vrot.lane.b32.xlu0 %v4323, 50
      %v4625 = vpop.permute.xlu0 %4624
      %4626 = vrot.lane.b32.xlu0 %v4335, 50
      %v4627 = vpop.permute.xlu0 %4626
      %4628 = vrot.lane.b32.xlu0 %v4336, 50
      %v4629 = vpop.permute.xlu0 %4628
      %4630 = vrot.lane.b32.xlu0 %v4337, 50
      %v4631 = vpop.permute.xlu0 %4630
      %4632 = vrot.lane.b32.xlu0 %v4334, 50
      %v4633 = vpop.permute.xlu0 %4632
      %4634 = vrot.lane.b32.xlu0 %v4346, 50
      %v4635 = vpop.permute.xlu0 %4634
      %4636 = vrot.lane.b32.xlu0 %v4347, 50
      %v4637 = vpop.permute.xlu0 %4636
      %4638 = vrot.lane.b32.xlu0 %v4348, 50
      %v4639 = vpop.permute.xlu0 %4638
      %4640 = vrot.lane.b32.xlu0 %v4345, 50
      %v4641 = vpop.permute.xlu0 %4640
      %4642 = vrot.lane.b32.xlu0 %v4357, 50
      %v4643 = vpop.permute.xlu0 %4642
      %4644 = vrot.lane.b32.xlu0 %v4358, 50
      %v4645 = vpop.permute.xlu0 %4644
      %4646 = vrot.lane.b32.xlu0 %v4359, 50
      %v4647 = vpop.permute.xlu0 %4646
      %4648 = vrot.lane.b32.xlu0 %v4356, 50
      %v4649 = vpop.permute.xlu0 %4648
      %4650 = vrot.lane.b32.xlu0 %v4368, 50
      %v4651 = vpop.permute.xlu0 %4650
      %4652 = vrot.lane.b32.xlu0 %v4369, 50
      %v4653 = vpop.permute.xlu0 %4652
      %4654 = vrot.lane.b32.xlu0 %v4370, 50
      %v4655 = vpop.permute.xlu0 %4654
      %4656 = vrot.lane.b32.xlu0 %v4367, 50
      %v4657 = vpop.permute.xlu0 %4656
      %4658 = vrot.lane.b32.xlu0 %v4379, 50
      %v4659 = vpop.permute.xlu0 %4658
      %4660 = vrot.lane.b32.xlu0 %v4380, 50
      %v4661 = vpop.permute.xlu0 %4660
      %4662 = vrot.lane.b32.xlu0 %v4381, 50
      %v4663 = vpop.permute.xlu0 %4662
      %4664 = vrot.lane.b32.xlu0 %v4378, 50
      %v4665 = vpop.permute.xlu0 %4664
      %4666 = vrot.lane.b32.xlu0 %v4390, 50
      %v4667 = vpop.permute.xlu0 %4666
      %4668 = vrot.lane.b32.xlu0 %v4391, 50
      %v4669 = vpop.permute.xlu0 %4668
      %4670 = vrot.lane.b32.xlu0 %v4392, 50
      %v4671 = vpop.permute.xlu0 %4670
      %4672 = vrot.lane.b32.xlu0 %v4389, 50
      %v4673 = vpop.permute.xlu0 %4672
      %4674 = vrot.lane.b32.xlu0 %v4401, 50
      %v4675 = vpop.permute.xlu0 %4674
      %4676 = vrot.lane.b32.xlu0 %v4402, 50
      %v4677 = vpop.permute.xlu0 %4676
      %4678 = vrot.lane.b32.xlu0 %v4403, 50
      %v4679 = vpop.permute.xlu0 %4678
      %4680 = vrot.lane.b32.xlu0 %v4400, 50
      %v4681 = vpop.permute.xlu0 %4680
      %4682 = vrot.lane.b32.xlu0 %v4412, 50
      %v4683 = vpop.permute.xlu0 %4682
      %4684 = vrot.lane.b32.xlu0 %v4413, 50
      %v4685 = vpop.permute.xlu0 %4684
      %4686 = vrot.lane.b32.xlu0 %v4414, 50
      %v4687 = vpop.permute.xlu0 %4686
      %4688 = vrot.lane.b32.xlu0 %v4411, 50
      %v4689 = vpop.permute.xlu0 %4688
      %4690 = vrot.lane.b32.xlu0 %v4423, 50
      %v4691 = vpop.permute.xlu0 %4690
      %4692 = vrot.lane.b32.xlu0 %v4424, 50
      %v4693 = vpop.permute.xlu0 %4692
      %4694 = vrot.lane.b32.xlu0 %v4425, 50
      %v4695 = vpop.permute.xlu0 %4694
      %4696 = vrot.lane.b32.xlu0 %v4422, 50
      %v4697 = vpop.permute.xlu0 %4696
      %4698 = vrot.lane.b32.xlu0 %v4434, 50
      %v4699 = vpop.permute.xlu0 %4698
      %4700 = vrot.lane.b32.xlu0 %v4435, 50
      %v4701 = vpop.permute.xlu0 %4700
      %4702 = vrot.lane.b32.xlu0 %v4436, 50
      %v4703 = vpop.permute.xlu0 %4702
      %4704 = vrot.lane.b32.xlu0 %v4433, 50
      %v4705 = vpop.permute.xlu0 %4704
      %4706 = vrot.lane.b32.xlu0 %v4438, 50
      %v4707 = vpop.permute.xlu0 %4706
      %4708 = vrot.lane.b32.xlu0 %v4443, 50
      %v4709 = vpop.permute.xlu0 %4708
      %4710 = vrot.lane.b32.xlu0 %v4444, 50
      %v4711 = vpop.permute.xlu0 %4710
      %4712 = vrot.lane.b32.xlu0 %v4442, 50
      %v4713 = vpop.permute.xlu0 %4712
      %4714 = vrot.lane.b32.xlu0 %v4447, 50
      %v4715 = vpop.permute.xlu0 %4714
      %4716 = vrot.lane.b32.xlu0 %v4454, 50
      %v4717 = vpop.permute.xlu0 %4716
      %4718 = vrot.lane.b32.xlu0 %v4455, 50
      %v4719 = vpop.permute.xlu0 %4718
      %4720 = vrot.lane.b32.xlu0 %v4456, 50
      %v4721 = vpop.permute.xlu0 %4720
      %4722 = vrot.lane.b32.xlu0 %v4458, 50
      %v4723 = vpop.permute.xlu0 %4722
      %4724 = vrot.lane.b32.xlu0 %v4465, 50
      %v4725 = vpop.permute.xlu0 %4724
      %4726 = vrot.lane.b32.xlu0 %v4466, 50
      %v4727 = vpop.permute.xlu0 %4726
      %4728 = vrot.lane.b32.xlu0 %v4467, 50
      %v4729 = vpop.permute.xlu0 %4728
      %4730 = vrot.lane.b32.xlu0 %v4469, 50
      %v4731 = vpop.permute.xlu0 %4730
      %4732 = vrot.lane.b32.xlu0 %v4476, 50
      %v4733 = vpop.permute.xlu0 %4732
      %4734 = vrot.lane.b32.xlu0 %v4477, 50
      %v4735 = vpop.permute.xlu0 %4734
      %4736 = vrot.lane.b32.xlu0 %v4478, 50
      %v4737 = vpop.permute.xlu0 %4736
      %4738 = vrot.lane.b32.xlu0 %v4512, 50
      %v4739 = vpop.permute.xlu0 %4738
      %4740 = vrot.lane.b32.xlu0 %v4583, 50
      %v4741 = vpop.permute.xlu0 %4740
      %4742 = vrot.lane.b32.xlu0 %v4584, 50
      %v4743 = vpop.permute.xlu0 %4742
      %4744 = vrot.lane.b32.xlu0 %v4585, 50
      %v4745 = vpop.permute.xlu0 %4744
      %4746 = vrot.lane.b32.xlu0 %v4520, 50
      %v4747 = vpop.permute.xlu0 %4746
      %4748 = vrot.lane.b32.xlu0 %v4586, 50
      %v4749 = vpop.permute.xlu0 %4748
      %4750 = vrot.lane.b32.xlu0 %v4587, 50
      %v4751 = vpop.permute.xlu0 %4750
      %4752 = vrot.lane.b32.xlu0 %v4588, 50
      %v4753 = vpop.permute.xlu0 %4752
      %4754 = vrot.lane.b32.xlu0 %v4528, 50
      %v4755 = vpop.permute.xlu0 %4754
      %4756 = vrot.lane.b32.xlu0 %v4589, 50
      %v4757 = vpop.permute.xlu0 %4756
      %4758 = vrot.lane.b32.xlu0 %v4590, 50
      %v4759 = vpop.permute.xlu0 %4758
      %4760 = vrot.lane.b32.xlu0 %v4591, 50
      %v4761 = vpop.permute.xlu0 %4760
      %4762 = vrot.lane.b32.xlu0 %v4536, 50
      %v4763 = vpop.permute.xlu0 %4762
      %4764 = vrot.lane.b32.xlu0 %v4592, 50
      %v4765 = vpop.permute.xlu0 %4764
      %4766 = vrot.lane.b32.xlu0 %v4593, 50
      %v4767 = vpop.permute.xlu0 %4766
      %4768 = vrot.lane.b32.xlu0 %v4594, 50
      %v4769 = vpop.permute.xlu0 %4768
      %4770 = vrot.lane.b32.xlu0 %v4544, 50
      %v4771 = vpop.permute.xlu0 %4770
      %4772 = vrot.lane.b32.xlu0 %v4595, 50
      %v4773 = vpop.permute.xlu0 %4772
      %4774 = vrot.lane.b32.xlu0 %v4596, 50
      %v4775 = vpop.permute.xlu0 %4774
      %4776 = vrot.lane.b32.xlu0 %v4597, 50
      %v4777 = vpop.permute.xlu0 %4776
      %4778 = vrot.lane.b32.xlu0 %v4552, 50
      %v4779 = vpop.permute.xlu0 %4778
      %4780 = vrot.lane.b32.xlu0 %v4598, 50
      %v4781 = vpop.permute.xlu0 %4780
      %4782 = vrot.lane.b32.xlu0 %v4599, 50
      %v4783 = vpop.permute.xlu0 %4782
      %4784 = vrot.lane.b32.xlu0 %v4600, 50
      %v4785 = vpop.permute.xlu0 %4784
      %4786 = vrot.lane.b32.xlu0 %v4560, 50
      %v4787 = vpop.permute.xlu0 %4786
      %4788 = vrot.lane.b32.xlu0 %v4601, 50
      %v4789 = vpop.permute.xlu0 %4788
      %4790 = vrot.lane.b32.xlu0 %v4602, 50
      %v4791 = vpop.permute.xlu0 %4790
      %4792 = vrot.lane.b32.xlu0 %v4603, 50
      %v4793 = vpop.permute.xlu0 %4792
      %4794 = vrot.lane.b32.xlu0 %v4568, 50
      %v4795 = vpop.permute.xlu0 %4794
      %4796 = vrot.lane.b32.xlu0 %v4604, 50
      %v4797 = vpop.permute.xlu0 %4796
      %4798 = vrot.lane.b32.xlu0 %v4605, 50
      %v4799 = vpop.permute.xlu0 %4798
      %4800 = vrot.lane.b32.xlu0 %v4606, 50
      %v4801 = vpop.permute.xlu0 %4800
      %4802 = vrot.lane.b32.xlu0 %v4576, 50
      %v4803 = vpop.permute.xlu0 %4802
      %4804 = vrot.lane.b32.xlu0 %v4607, 50
      %v4805 = vpop.permute.xlu0 %4804
      %4806 = vrot.lane.b32.xlu0 %v4608, 50
      %v4807 = vpop.permute.xlu0 %4806
      %4808 = vrot.lane.b32.xlu0 %v4609, 50
      %v4809 = vpop.permute.xlu0 %4808
      %v4810 = vsel %vm2000, %v4611, %v4613
      %v4811 = vsel %vm2000, %v4613, %v4615
      %v4812 = vsel %vm2000, %v4615, %v4617
      %v4813 = vsel %vm2000, %v4619, %v4621
      %v4814 = vsel %vm2000, %v4621, %v4623
      %v4815 = vsel %vm2000, %v4623, %v4625
      %v4816 = vsel %vm2000, %v4627, %v4629
      %v4817 = vsel %vm2000, %v4629, %v4631
      %v4818 = vsel %vm2000, %v4631, %v4633
      %v4819 = vsel %vm2000, %v4635, %v4637
      %v4820 = vsel %vm2000, %v4637, %v4639
      %v4821 = vsel %vm2000, %v4639, %v4641
      %v4822 = vsel %vm2000, %v4643, %v4645
      %v4823 = vsel %vm2000, %v4645, %v4647
      %v4824 = vsel %vm2000, %v4647, %v4649
      %v4825 = vsel %vm2000, %v4651, %v4653
      %v4826 = vsel %vm2000, %v4653, %v4655
      %v4827 = vsel %vm2000, %v4655, %v4657
      %v4828 = vsel %vm2000, %v4659, %v4661
      %v4829 = vsel %vm2000, %v4661, %v4663
      %v4830 = vsel %vm2000, %v4663, %v4665
      %v4831 = vsel %vm2000, %v4667, %v4669
      %v4832 = vsel %vm2000, %v4669, %v4671
      %v4833 = vsel %vm2000, %v4671, %v4673
      %v4834 = vsel %vm2000, %v4675, %v4677
      %v4835 = vsel %vm2000, %v4677, %v4679
      %v4836 = vsel %vm2000, %v4679, %v4681
      %v4837 = vsel %vm2000, %v4683, %v4685
      %v4838 = vsel %vm2000, %v4685, %v4687
      %v4839 = vsel %vm2000, %v4687, %v4689
      %v4840 = vsel %vm2000, %v4691, %v4693
      %v4841 = vsel %vm2000, %v4693, %v4695
      %v4842 = vsel %vm2000, %v4695, %v4697
      %v4843 = vsel %vm2000, %v4699, %v4701
      %v4844 = vsel %vm2000, %v4701, %v4703
      %v4845 = vsel %vm2000, %v4703, %v4705
      %v4846 = vsel %vm2000, %v4707, %v4709
      %v4847 = vsel %vm2000, %v4709, %v4711
      %v4848 = vsel %vm2000, %v4711, %v4713
      %v4849 = vsel %vm2000, %v4715, %v4717
      %v4850 = vsel %vm2000, %v4717, %v4719
      %v4851 = vsel %vm2000, %v4719, %v4721
      %v4852 = vsel %vm2000, %v4723, %v4725
      %v4853 = vsel %vm2000, %v4725, %v4727
      %v4854 = vsel %vm2000, %v4727, %v4729
      %v4855 = vsel %vm2000, %v4731, %v4733
      %v4856 = vsel %vm2000, %v4733, %v4735
      %v4857 = vsel %vm2000, %v4735, %v4737
      %v4858 = vsel %vm2000, %v4739, %v4741
      %v4859 = vsel %vm2000, %v4741, %v4743
      %v4860 = vsel %vm2000, %v4743, %v4745
      %v4861 = vsel %vm2000, %v4747, %v4749
      %v4862 = vsel %vm2000, %v4749, %v4751
      %v4863 = vsel %vm2000, %v4751, %v4753
      %v4864 = vsel %vm2000, %v4755, %v4757
      %v4865 = vsel %vm2000, %v4757, %v4759
      %v4866 = vsel %vm2000, %v4759, %v4761
      %v4867 = vsel %vm2000, %v4763, %v4765
      %v4868 = vsel %vm2000, %v4765, %v4767
      %v4869 = vsel %vm2000, %v4767, %v4769
      %v4870 = vsel %vm2000, %v4771, %v4773
      %v4871 = vsel %vm2000, %v4773, %v4775
      %v4872 = vsel %vm2000, %v4775, %v4777
      %v4873 = vsel %vm2000, %v4779, %v4781
      %v4874 = vsel %vm2000, %v4781, %v4783
      %v4875 = vsel %vm2000, %v4783, %v4785
      %v4876 = vsel %vm2000, %v4787, %v4789
      %v4877 = vsel %vm2000, %v4789, %v4791
      %v4878 = vsel %vm2000, %v4791, %v4793
      %v4879 = vsel %vm2000, %v4795, %v4797
      %v4880 = vsel %vm2000, %v4797, %v4799
      %v4881 = vsel %vm2000, %v4799, %v4801
      %v4882 = vsel %vm2000, %v4803, %v4805
      %v4883 = vsel %vm2000, %v4805, %v4807
      %v4884 = vsel %vm2000, %v4807, %v4809
      %4960 = vmatprep.subr.mxu0 %v4856
      %4961 = vmatpush1.msra.mxu0 %v4855
      %4962 = vmatprep.subr.mxu0 %v4853
      %4963 = vmatpush1.msra.mxu0 %v4852
      %4964 = vmatprep.subr.mxu0 %v4850
      %4965 = vmatpush1.msra.mxu0 %v4849
      %4966 = vmatprep.subr.mxu0 %v4847
      %4967 = vmatpush1.msra.mxu0 %v4846
      %4968 = vmatprep.subr.mxu0 %v4844
      %4969 = vmatpush1.msra.mxu0 %v4843
      %4970 = vmatprep.subr.mxu0 %v4841
      %4971 = vmatpush1.msra.mxu0 %v4840
      %4972 = vmatprep.subr.mxu0 %v4838
      %4973 = vmatpush1.msra.mxu0 %v4837
      %4974 = vmatprep.subr.mxu0 %v4835
      %4975 = vmatpush1.msra.mxu0 %v4834
      %4976 = vmatprep.subr.mxu0 %v4832
      %4977 = vmatpush1.msra.mxu0 %v4831
      %4978 = vmatprep.subr.mxu0 %v4829
      %4979 = vmatpush1.msra.mxu0 %v4828
      %4980 = vmatprep.subr.mxu0 %v4826
      %4981 = vmatpush1.msra.mxu0 %v4825
      %4982 = vmatprep.subr.mxu0 %v4823
      %4983 = vmatpush1.msra.mxu0 %v4822
      %4984 = vmatprep.subr.mxu0 %v4820
      %4985 = vmatpush1.msra.mxu0 %v4819
      %4986 = vmatprep.subr.mxu0 %v4817
      %4987 = vmatpush1.msra.mxu0 %v4816
      %4988 = vmatprep.subr.mxu0 %v4814
      %4989 = vmatpush1.msra.mxu0 %v4813
      %4990 = vmatprep.subr.mxu0 %v4811
      %4991 = vmatpush1.msra.mxu0 %v4810
      %4992 = vmatprep.subr.mxu0 0.0
      %4993 = vmatpush2.msra.mxu0 0.0
      %4994 = vmatprep.subr.mxu0 0.0
      %4995 = vmatpush2.msra.mxu0 0.0
      %4996 = vmatprep.subr.mxu0 0.0
      %4997 = vmatpush2.msra.mxu0 0.0
      %4998 = vmatprep.subr.mxu0 0.0
      %4999 = vmatpush2.msra.mxu0 0.0
      %5000 = vmatprep.subr.mxu0 0.0
      %5001 = vmatpush2.msra.mxu0 0.0
      %5002 = vmatprep.subr.mxu0 0.0
      %5003 = vmatpush2.msra.mxu0 0.0
      %5004 = vmatprep.subr.mxu0 0.0
      %5005 = vmatpush2.msra.mxu0 0.0
      %5006 = vmatprep.subr.mxu0 %v4883
      %5007 = vmatpush2.msra.mxu0 %v4882
      %5008 = vmatprep.subr.mxu0 %v4880
      %5009 = vmatpush2.msra.mxu0 %v4879
      %5010 = vmatprep.subr.mxu0 %v4877
      %5011 = vmatpush2.msra.mxu0 %v4876
      %5012 = vmatprep.subr.mxu0 %v4874
      %5013 = vmatpush2.msra.mxu0 %v4873
      %5014 = vmatprep.subr.mxu0 %v4871
      %5015 = vmatpush2.msra.mxu0 %v4870
      %5016 = vmatprep.subr.mxu0 %v4868
      %5017 = vmatpush2.msra.mxu0 %v4867
      %5018 = vmatprep.subr.mxu0 %v4865
      %5019 = vmatpush2.msra.mxu0 %v4864
      %5020 = vmatprep.subr.mxu0 %v4862
      %5021 = vmatpush2.msra.mxu0 %v4861
      %5022 = vmatprep.subr.mxu0 %v4859
      %5023 = vmatpush2.msra.mxu0 %v4858
      %5024 = vmatprep.mubr.f32.mxu0 %v2153
      %5025 = vmatmul.mubr.f32.gmra.mxu0 %v1368
      %v5026 = vpop.f32.mrf.mxu0
      %v5027 = vadd.f32 0.0, %v5026
      %v5028 = vpop.f32.mrf.mxu0
      %v5029 = vadd.f32 0.0, %v5028
      %5030 = vmatprep.mubr.f32.mxu0 %v2156
      %5031 = vmatmul.mubr.f32.gmra.mxu0 %v1370
      %v5032 = vpop.f32.mrf.mxu0
      %v5033 = vadd.f32 0.0, %v5032
      %v5034 = vpop.f32.mrf.mxu0
      %v5035 = vadd.f32 0.0, %v5034
      %5036 = vmatprep.mubr.f32.mxu0 %v2159
      %5037 = vmatmul.mubr.f32.gmra.mxu0 %v1372
      %v5038 = vpop.f32.mrf.mxu0
      %v5039 = vadd.f32 0.0, %v5038
      %v5040 = vpop.f32.mrf.mxu0
      %v5041 = vadd.f32 0.0, %v5040
      %5042 = vmatprep.mubr.f32.mxu0 %v2162
      %5043 = vmatmul.mubr.f32.gmra.mxu0 %v1374
      %v5044 = vpop.f32.mrf.mxu0
      %v5045 = vadd.f32 0.0, %v5044
      %v5046 = vpop.f32.mrf.mxu0
      %v5047 = vadd.f32 0.0, %v5046
      %5048 = vdwg.mxu0
      %5049 = vmatprep.subr.mxu0 0.0
      %5050 = vmatpush1.msra.mxu0 %v4857
      %5051 = vmatprep.subr.mxu0 0.0
      %5052 = vmatpush1.msra.mxu0 %v4854
      %5053 = vmatprep.subr.mxu0 0.0
      %5054 = vmatpush1.msra.mxu0 %v4851
      %5055 = vmatprep.subr.mxu0 0.0
      %5056 = vmatpush1.msra.mxu0 %v4848
      %5057 = vmatprep.subr.mxu0 0.0
      %5058 = vmatpush1.msra.mxu0 %v4845
      %5059 = vmatprep.subr.mxu0 0.0
      %5060 = vmatpush1.msra.mxu0 %v4842
      %5061 = vmatprep.subr.mxu0 0.0
      %5062 = vmatpush1.msra.mxu0 %v4839
      %5063 = vmatprep.subr.mxu0 0.0
      %5064 = vmatpush1.msra.mxu0 %v4836
      %5065 = vmatprep.subr.mxu0 0.0
      %5066 = vmatpush1.msra.mxu0 %v4833
      %5067 = vmatprep.subr.mxu0 0.0
      %5068 = vmatpush1.msra.mxu0 %v4830
      %5069 = vmatprep.subr.mxu0 0.0
      %5070 = vmatpush1.msra.mxu0 %v4827
      %5071 = vmatprep.subr.mxu0 0.0
      %5072 = vmatpush1.msra.mxu0 %v4824
      %5073 = vmatprep.subr.mxu0 0.0
      %5074 = vmatpush1.msra.mxu0 %v4821
      %5075 = vmatprep.subr.mxu0 0.0
      %5076 = vmatpush1.msra.mxu0 %v4818
      %5077 = vmatprep.subr.mxu0 0.0
      %5078 = vmatpush1.msra.mxu0 %v4815
      %5079 = vmatprep.subr.mxu0 0.0
      %5080 = vmatpush1.msra.mxu0 %v4812
      %5081 = vmatprep.subr.mxu0 0.0
      %5082 = vmatpush2.msra.mxu0 0.0
      %5083 = vmatprep.subr.mxu0 0.0
      %5084 = vmatpush2.msra.mxu0 0.0
      %5085 = vmatprep.subr.mxu0 0.0
      %5086 = vmatpush2.msra.mxu0 0.0
      %5087 = vmatprep.subr.mxu0 0.0
      %5088 = vmatpush2.msra.mxu0 0.0
      %5089 = vmatprep.subr.mxu0 0.0
      %5090 = vmatpush2.msra.mxu0 0.0
      %5091 = vmatprep.subr.mxu0 0.0
      %5092 = vmatpush2.msra.mxu0 0.0
      %5093 = vmatprep.subr.mxu0 0.0
      %5094 = vmatpush2.msra.mxu0 0.0
      %5095 = vmatprep.subr.mxu0 0.0
      %5096 = vmatpush2.msra.mxu0 %v4884
      %5097 = vmatprep.subr.mxu0 0.0
      %5098 = vmatpush2.msra.mxu0 %v4881
      %5099 = vmatprep.subr.mxu0 0.0
      %5100 = vmatpush2.msra.mxu0 %v4878
      %5101 = vmatprep.subr.mxu0 0.0
      %5102 = vmatpush2.msra.mxu0 %v4875
      %5103 = vmatprep.subr.mxu0 0.0
      %5104 = vmatpush2.msra.mxu0 %v4872
      %5105 = vmatprep.subr.mxu0 0.0
      %5106 = vmatpush2.msra.mxu0 %v4869
      %5107 = vmatprep.subr.mxu0 0.0
      %5108 = vmatpush2.msra.mxu0 %v4866
      %5109 = vmatprep.subr.mxu0 0.0
      %5110 = vmatpush2.msra.mxu0 %v4863
      %5111 = vmatprep.subr.mxu0 0.0
      %5112 = vmatpush2.msra.mxu0 %v4860
      %5113 = vmatprep.mubr.f32.mxu0 %v2153
      %5114 = vmatmul.mubr.f32.gmra.mxu0 %v1368
      %v5115 = vpop.f32.mrf.mxu0
      %v5116 = vadd.f32 0.0, %v5115
      %v5117 = vpop.f32.mrf.mxu0
      %5118 = vmatprep.mubr.f32.mxu0 %v2156
      %5119 = vmatmul.mubr.f32.gmra.mxu0 %v1370
      %v5120 = vpop.f32.mrf.mxu0
      %v5121 = vadd.f32 0.0, %v5120
      %v5122 = vpop.f32.mrf.mxu0
      %5123 = vmatprep.mubr.f32.mxu0 %v2159
      %5124 = vmatmul.mubr.f32.gmra.mxu0 %v1372
      %v5125 = vpop.f32.mrf.mxu0
      %v5126 = vadd.f32 0.0, %v5125
      %v5127 = vpop.f32.mrf.mxu0
      %5128 = vmatprep.mubr.f32.mxu0 %v2162
      %5129 = vmatmul.mubr.f32.gmra.mxu0 %v1374
      %v5130 = vpop.f32.mrf.mxu0
      %v5131 = vadd.f32 0.0, %v5130
      %v5132 = vpop.f32.mrf.mxu0
      %5133 = vdwg.mxu0
      %v5134 = vadd.f32 %v4295, %v5027
      %v5135 = vadd.f32 %v4296, %v5029
      %v5136 = vadd.f32 %v4297, %v5116
      %v5137 = vadd.f32 %v4298, %v5033
      %v5138 = vadd.f32 %v4299, %v5035
      %v5139 = vadd.f32 %v4300, %v5121
      %v5140 = vadd.f32 %v4301, %v5039
      %v5141 = vadd.f32 %v4302, %v5041
      %v5142 = vadd.f32 %v4303, %v5126
      %v5143 = vadd.f32 %v4304, %v5045
      %v5144 = vadd.f32 %v4305, %v5047
      %v5145 = vadd.f32 %v4306, %v5131
      %v5146 = vxor.u32 %v5134, 2147483648
      %v5147 = vxor.u32 %v5135, 2147483648
      %v5148 = vxor.u32 %v5136, 2147483648
      %v5149 = vmul.f32 %v5146, 1.442695
      %v5150 = vpow.pop %v5149
      %v5151 = vmul.f32 %v5147, 1.442695
      %v5152 = vpow.pop %v5151
      %v5153 = vmul.f32 %v5148, 1.442695
      %v5154 = vpow.pop %v5153
      %v5155 = vadd.f32 %v5150, 1.0
      %v5156 = vadd.f32 %v5152, 1.0
      %v5157 = vadd.f32 %v5154, 1.0
      %v5158 = vrcp.pop %v5155
      %v5159 = vmul.f32 1.0, %v5158
      %v5160 = vrcp.pop %v5156
      %v5161 = vmul.f32 1.0, %v5160
      %v5162 = vrcp.pop %v5157
      %v5163 = vmul.f32 1.0, %v5162
      %v5164 = vxor.u32 %v5137, 2147483648
      %v5165 = vxor.u32 %v5138, 2147483648
      %v5166 = vxor.u32 %v5139, 2147483648
      %v5167 = vmul.f32 %v5164, 1.442695
      %v5168 = vpow.pop %v5167
      %v5169 = vmul.f32 %v5165, 1.442695
      %v5170 = vpow.pop %v5169
      %v5171 = vmul.f32 %v5166, 1.442695
      %v5172 = vpow.pop %v5171
      %v5173 = vadd.f32 %v5168, 1.0
      %v5174 = vadd.f32 %v5170, 1.0
      %v5175 = vadd.f32 %v5172, 1.0
      %v5176 = vrcp.pop %v5173
      %v5177 = vmul.f32 1.0, %v5176
      %v5178 = vrcp.pop %v5174
      %v5179 = vmul.f32 1.0, %v5178
      %v5180 = vrcp.pop %v5175
      %v5181 = vmul.f32 1.0, %v5180
      %v5182 = vxor.u32 %v5140, 2147483648
      %v5183 = vxor.u32 %v5141, 2147483648
      %v5184 = vxor.u32 %v5142, 2147483648
      %v5185 = vmul.f32 %v5182, 1.442695
      %v5186 = vpow.pop %v5185
      %v5187 = vmul.f32 %v5183, 1.442695
      %v5188 = vpow.pop %v5187
      %v5189 = vmul.f32 %v5184, 1.442695
      %v5190 = vpow.pop %v5189
      %v5191 = vadd.f32 %v5186, 1.0
      %v5192 = vadd.f32 %v5188, 1.0
      %v5193 = vadd.f32 %v5190, 1.0
      %v5194 = vrcp.pop %v5191
      %v5195 = vmul.f32 1.0, %v5194
      %v5196 = vrcp.pop %v5192
      %v5197 = vmul.f32 1.0, %v5196
      %v5198 = vrcp.pop %v5193
      %v5199 = vmul.f32 1.0, %v5198
      %v5200 = vtanh.pop %v5143
      %v5201 = vtanh.pop %v5144
      %v5202 = vtanh.pop %v5145
      %v5203 = vmul.f32 %v4277, %v5177
      %v5204 = vmul.f32 %v4278, %v5179
      %v5205 = vmul.f32 %v4279, %v5181
      %v5206 = vmul.f32 %v5159, %v5200
      %v5207 = vmul.f32 %v5161, %v5201
      %v5208 = vmul.f32 %v5163, %v5202
      %v5209 = vadd.f32 %v5203, %v5206
      %v5210 = vadd.f32 %v5204, %v5207
      %v5211 = vadd.f32 %v5205, %v5208
      %v5212 = vtanh.pop %v5209
      %v5213 = vtanh.pop %v5210
      %v5214 = vtanh.pop %v5211
      %v5215 = vmul.f32 %v5195, %v5212
      %v5216 = vmul.f32 %v5197, %v5213
      %v5217 = vmul.f32 %v5199, %v5214
      %5218 = vst [vmem:[#allocation4 + $0x60] sm:$0xff] %v5215
      %5219 = vst [vmem:[#allocation4 + $0x68] sm:$0xff] %v5216
      %5220 = vst [vmem:[#allocation4 + $0x70] sm:$0xff] %v5217
      %v5221 = vld [vmem:[%s4] sm:$0x3f]
      %v5222 = vld [vmem:[#allocation4] sm:$0xff]
      %v5223 = vld [vmem:[#allocation4 + $0x8] sm:$0xff]
      %v5224 = vld [vmem:[#allocation4 + $0x10] sm:$0xff]
      %v5225 = vld [vmem:[#allocation4 + $0x18] sm:$0xff]
      %v5226 = vld [vmem:[#allocation4 + $0x20] sm:$0xff]
      %v5227 = vld [vmem:[#allocation4 + $0x28] sm:$0xff]
      %v5228 = vld [vmem:[#allocation4 + $0x30] sm:$0xff]
      %v5229 = vld [vmem:[#allocation4 + $0x38] sm:$0xff]
      %v5230 = vld [vmem:[#allocation4 + $0x40] sm:$0xff]
      %v5231 = vld [vmem:[#allocation4 + $0x48] sm:$0xff]
      %v5232 = vld [vmem:[#allocation4 + $0x50] sm:$0xff]
      %v5233 = vld [vmem:[#allocation4 + $0x58] sm:$0xff]
      %v5234 = vld [vmem:[#allocation4 + $0x60] sm:$0xff]
      %v5235 = vld [vmem:[#allocation4 + $0x68] sm:$0xff]
      %v5236 = vld [vmem:[#allocation4 + $0x70] sm:$0xff]
      %v5237 = vld [vmem:[%s5] sm:$0x3f]
      %5239 = vset.pattern.permute.xlu0 0
      %5240 = vperm.xlu0 %5239, %v5237
      %v5241 = vpop.permute.xlu0 %5240
      %vm5243 = vcmask 326656
      %v5245 = vsel %vm5243, %v5221, 0
      %5247 = vmatprep.subr.mxu0 0.0
      %5248 = vmatpush1.msra.mxu0 0.0
      %5249 = vmatprep.subr.mxu0 0.0
      %5250 = vmatpush1.msra.mxu0 0.0
      %5251 = vmatprep.subr.mxu0 0.0
      %5252 = vmatpush1.msra.mxu0 0.0
      %5253 = vmatprep.subr.mxu0 0.0
      %5254 = vmatpush1.msra.mxu0 0.0
      %5255 = vmatprep.subr.mxu0 0.0
      %5256 = vmatpush1.msra.mxu0 0.0
      %5257 = vmatprep.subr.mxu0 0.0
      %5258 = vmatpush1.msra.mxu0 0.0
      %5259 = vmatprep.subr.mxu0 0.0
      %5260 = vmatpush1.msra.mxu0 0.0
      %5261 = vmatprep.subr.mxu0 0.0
      %5262 = vmatpush1.msra.mxu0 0.0
      %5263 = vmatprep.subr.mxu0 0.0
      %5264 = vmatpush1.msra.mxu0 0.0
      %5265 = vmatprep.subr.mxu0 0.0
      %5266 = vmatpush1.msra.mxu0 0.0
      %5267 = vmatprep.subr.mxu0 0.0
      %5268 = vmatpush1.msra.mxu0 0.0
      %5269 = vmatprep.subr.mxu0 %v5235
      %5270 = vmatpush1.msra.mxu0 %v5234
      %5271 = vmatprep.subr.mxu0 %v5232
      %5272 = vmatpush1.msra.mxu0 %v5231
      %5273 = vmatprep.subr.mxu0 %v5229
      %5274 = vmatpush1.msra.mxu0 %v5228
      %5275 = vmatprep.subr.mxu0 %v5226
      %5276 = vmatpush1.msra.mxu0 %v5225
      %5277 = vmatprep.subr.mxu0 %v5223
      %5278 = vmatpush1.msra.mxu0 %v5222
      %5279 = vmatprep.subr.mxu0 0.0
      %5280 = vmatpush2.msra.mxu0 0.0
      %5281 = vmatprep.subr.mxu0 0.0
      %5282 = vmatpush2.msra.mxu0 0.0
      %5283 = vmatprep.subr.mxu0 0.0
      %5284 = vmatpush2.msra.mxu0 0.0
      %5285 = vmatprep.subr.mxu0 0.0
      %5286 = vmatpush2.msra.mxu0 0.0
      %5287 = vmatprep.subr.mxu0 0.0
      %5288 = vmatpush2.msra.mxu0 0.0
      %5289 = vmatprep.subr.mxu0 0.0
      %5290 = vmatpush2.msra.mxu0 0.0
      %5291 = vmatprep.subr.mxu0 0.0
      %5292 = vmatpush2.msra.mxu0 0.0
      %5293 = vmatprep.subr.mxu0 0.0
      %5294 = vmatpush2.msra.mxu0 0.0
      %5295 = vmatprep.subr.mxu0 0.0
      %5296 = vmatpush2.msra.mxu0 0.0
      %5297 = vmatprep.subr.mxu0 0.0
      %5298 = vmatpush2.msra.mxu0 0.0
      %5299 = vmatprep.subr.mxu0 0.0
      %5300 = vmatpush2.msra.mxu0 0.0
      %5301 = vmatprep.subr.mxu0 0.0
      %5302 = vmatpush2.msra.mxu0 0.0
      %5303 = vmatprep.subr.mxu0 0.0
      %5304 = vmatpush2.msra.mxu0 0.0
      %5305 = vmatprep.subr.mxu0 0.0
      %5306 = vmatpush2.msra.mxu0 0.0
      %5307 = vmatprep.subr.mxu0 0.0
      %5308 = vmatpush2.msra.mxu0 0.0
      %5309 = vmatprep.subr.mxu0 0.0
      %5310 = vmatpush2.msra.mxu0 0.0
      %5311 = vmatprep.mubr.f32.mxu0 0.0
      %5312 = vmatmul.mubr.f32.gmra.mxu0 %v5245
      %v5313 = vpop.f32.mrf.mxu0
      %v5314 = vadd.f32 %v5241, %v5313
      %v5315 = vpop.f32.mrf.mxu0
      %v5316 = vadd.f32 %v5241, %v5315
      %5317 = vdwg.mxu0
      %5318 = vmatprep.subr.mxu0 0.0
      %5319 = vmatpush1.msra.mxu0 0.0
      %5320 = vmatprep.subr.mxu0 0.0
      %5321 = vmatpush1.msra.mxu0 0.0
      %5322 = vmatprep.subr.mxu0 0.0
      %5323 = vmatpush1.msra.mxu0 0.0
      %5324 = vmatprep.subr.mxu0 0.0
      %5325 = vmatpush1.msra.mxu0 0.0
      %5326 = vmatprep.subr.mxu0 0.0
      %5327 = vmatpush1.msra.mxu0 0.0
      %5328 = vmatprep.subr.mxu0 0.0
      %5329 = vmatpush1.msra.mxu0 0.0
      %5330 = vmatprep.subr.mxu0 0.0
      %5331 = vmatpush1.msra.mxu0 0.0
      %5332 = vmatprep.subr.mxu0 0.0
      %5333 = vmatpush1.msra.mxu0 0.0
      %5334 = vmatprep.subr.mxu0 0.0
      %5335 = vmatpush1.msra.mxu0 0.0
      %5336 = vmatprep.subr.mxu0 0.0
      %5337 = vmatpush1.msra.mxu0 0.0
      %5338 = vmatprep.subr.mxu0 0.0
      %5339 = vmatpush1.msra.mxu0 0.0
      %5340 = vmatprep.subr.mxu0 0.0
      %5341 = vmatpush1.msra.mxu0 %v5236
      %5342 = vmatprep.subr.mxu0 0.0
      %5343 = vmatpush1.msra.mxu0 %v5233
      %5344 = vmatprep.subr.mxu0 0.0
      %5345 = vmatpush1.msra.mxu0 %v5230
      %5346 = vmatprep.subr.mxu0 0.0
      %5347 = vmatpush1.msra.mxu0 %v5227
      %5348 = vmatprep.subr.mxu0 0.0
      %5349 = vmatpush1.msra.mxu0 %v5224
      %5350 = vmatprep.subr.mxu0 0.0
      %5351 = vmatpush2.msra.mxu0 0.0
      %5352 = vmatprep.subr.mxu0 0.0
      %5353 = vmatpush2.msra.mxu0 0.0
      %5354 = vmatprep.subr.mxu0 0.0
      %5355 = vmatpush2.msra.mxu0 0.0
      %5356 = vmatprep.subr.mxu0 0.0
      %5357 = vmatpush2.msra.mxu0 0.0
      %5358 = vmatprep.subr.mxu0 0.0
      %5359 = vmatpush2.msra.mxu0 0.0
      %5360 = vmatprep.subr.mxu0 0.0
      %5361 = vmatpush2.msra.mxu0 0.0
      %5362 = vmatprep.subr.mxu0 0.0
      %5363 = vmatpush2.msra.mxu0 0.0
      %5364 = vmatprep.subr.mxu0 0.0
      %5365 = vmatpush2.msra.mxu0 0.0
      %5366 = vmatprep.subr.mxu0 0.0
      %5367 = vmatpush2.msra.mxu0 0.0
      %5368 = vmatprep.subr.mxu0 0.0
      %5369 = vmatpush2.msra.mxu0 0.0
      %5370 = vmatprep.subr.mxu0 0.0
      %5371 = vmatpush2.msra.mxu0 0.0
      %5372 = vmatprep.subr.mxu0 0.0
      %5373 = vmatpush2.msra.mxu0 0.0
      %5374 = vmatprep.subr.mxu0 0.0
      %5375 = vmatpush2.msra.mxu0 0.0
      %5376 = vmatprep.subr.mxu0 0.0
      %5377 = vmatpush2.msra.mxu0 0.0
      %5378 = vmatprep.subr.mxu0 0.0
      %5379 = vmatpush2.msra.mxu0 0.0
      %5380 = vmatprep.subr.mxu0 0.0
      %5381 = vmatpush2.msra.mxu0 0.0
      %5382 = vmatprep.mubr.f32.mxu0 0.0
      %5383 = vmatmul.mubr.f32.gmra.mxu0 %v5245
      %v5384 = vpop.f32.mrf.mxu0
      %v5385 = vadd.f32 %v5241, %v5384
      %v5386 = vpop.f32.mrf.mxu0
      %5387 = vdwg.mxu0
      %5388 = vst [vmem:[%s251] sm:$0x3f] %v5314
      %5389 = vst [vmem:[%s251 + $0x8] sm:$0x3f] %v5316
      %5390 = vst [vmem:[%s251 + $0x10] sm:$0x3f] %v5385
      %p5391 = scmp.lt.s32.totalorder %s17, 1
      %s5392 = scalar_select %p5391, %s17, 1
      %s5393 = smul.addr %s5392, 3
      %s5394 = smul.addr %s5393, 8
      %s5395 = scalar_lea.vmem %s6, %s5394
      // Predicated region
      $region45: #{tpu_custom_call.1} parent=43 // pred_check
        %p5396 = pneg %p166
      $region46: #{tpu_custom_call.1} parent=43 // pred_check_branch
        %5398 = sbr.rel (%p5396) target = $region48
      $region47: #{tpu_custom_call.1} parent=43 // pred_region
        _
      $region48: #{tpu_custom_call.1} parent=43 // pred_fallthru
        _
    $region44: #{tpu_custom_call.1} parent=5 // pred_fallthru
      _
    %p5399 = scmp.le.s32.totalorder 2, %s12
    // Predicated region
    $region49: #{tpu_custom_call.1} parent=5 // pred_check
      %p5400 = pneg %p5399
    $region50: #{tpu_custom_call.1} parent=5 // pred_check_branch
      %5402 = sbr.rel (%p5400) target = $region52
    $region51: #{tpu_custom_call.1} parent=5 // pred_region
      %s5403 = ssub.s32 %s12, 2
      // Predicated region
      $region53: #{tpu_custom_call.1} parent=51 // pred_check
        %p5404 = pneg %p172
      $region54: #{tpu_custom_call.1} parent=51 // pred_check_branch
        %5406 = sbr.rel (%p5404) target = $region56
      $region55: #{tpu_custom_call.1} parent=51 // pred_region
        %p5407 = scmp.lt.s32.totalorder %s18, 1
        %s5408 = scalar_select %p5407, %s18, 1
        %s5409 = smul.addr %s5408, 3
        %s5410 = smul.addr %s5409, 8
        %s5411 = scalar_lea.vmem %s6, %s5410
      $region56: #{tpu_custom_call.1} parent=51 // pred_fallthru
        _
    $region52: #{tpu_custom_call.1} parent=5 // pred_fallthru
      _
  $region6: #{tpu_custom_call.1} parent=0 // loop_footer
    %s16 = sadd.s32 1, %s12
  $region7: #{tpu_custom_call.1} parent=0 // loop_footer_branch
    %11 = sbr.rel target = $region3
  $region8: #{tpu_custom_call.1} parent=0 // loop_exit
    _

</llo_original>
